<compile_context>
chip_gen: v7x
topology: tpu7x:2x2x1
jax: 0.10.0
libtpu: 0.0.40
codegen_flags: <defaults>
</compile_context>

<pallas_src>
import functools
import math

import jax
import jax.numpy as jnp
from jax import lax
from jax.experimental import pallas as pl

# ---- small deterministic config (stands in for the HF config) ----
VOCAB = 100
HIDDEN = 32
HEADS = 2
HEAD_DIM = HIDDEN // HEADS
LAYERS = 2
INTERMEDIATE = 64
MAX_POS = 16
TYPE_VOCAB = 2
EPS = 1e-12


# -------------------- in-kernel helpers (pure value math, f32) --------------------

def _layer_norm(h, g, b, eps):
    mu = jnp.mean(h, axis=-1, keepdims=True)
    var = jnp.mean((h - mu) * (h - mu), axis=-1, keepdims=True)
    return (h - mu) * lax.rsqrt(var + eps) * g + b


def _gelu(y):
    # TODO(synk): HF BERT default is erf-gelu; tanh-approx gelu used in-kernel.
    return 0.5 * y * (1.0 + jnp.tanh(0.7978845608028654 * (y + 0.044715 * y * y * y)))


# -------------------- the fused forward kernel --------------------

def _fused_bert_kernel(emb_ref, attn_bias_ref, pool_mask_ref,
                       emb_ln_g_ref, emb_ln_b_ref,
                       wqkv_ref, bqkv_ref, wo_ref, bo_ref,
                       ln1_g_ref, ln1_b_ref,
                       w1_ref, b1_ref, w2_ref, b2_ref,
                       ln2_g_ref, ln2_b_ref,
                       out_ref, *, batch, seq, heads, head_dim, layers, eps):
    hidden = heads * head_dim
    scale = 1.0 / math.sqrt(head_dim)

    attn_bias = attn_bias_ref[...]    # (B, S)  additive key bias, precomputed in wrapper
    pool_mask = pool_mask_ref[...]    # (B, S)  float attention mask

    # --- BERT embeddings LayerNorm (no residual) ---
    x = _layer_norm(emb_ref[...], emb_ln_g_ref[...], emb_ln_b_ref[...], eps)  # (B*S, H)

    # --- encoder layers (post-LN), statically unrolled ---
    for l in range(layers):
        # fused QKV projection: (B*S, H) @ (H, 3H)
        qkv = jnp.dot(x, wqkv_ref[l], preferred_element_type=jnp.float32) + bqkv_ref[l]

        ctx_rows = []
        for b in range(batch):
            q_b = qkv[b * seq:(b + 1) * seq, 0:hidden]              # (S, H)
            k_b = qkv[b * seq:(b + 1) * seq, hidden:2 * hidden]     # (S, H)
            v_b = qkv[b * seq:(b + 1) * seq, 2 * hidden:3 * hidden]  # (S, H)
            bias_b = attn_bias[b:b + 1, :]                          # (1, S)

            head_ctx = []
            for h in range(heads):
                lo, hi = h * head_dim, (h + 1) * head_dim
                qh = q_b[:, lo:hi]                                  # (S, hd)
                kh = k_b[:, lo:hi]
                vh = v_b[:, lo:hi]
                # scores: contract head_dim of q with head_dim of k (no explicit k.T)
                s = lax.dot_general(qh, kh, (((1,), (1,)), ((), ())),
                                    preferred_element_type=jnp.float32)
                s = s * scale + bias_b                              # (S, S)
                s = s - jnp.max(s, axis=-1, keepdims=True)
                p = jnp.exp(s)
                p = p * pl.reciprocal(jnp.sum(p, axis=-1, keepdims=True), approx=True)
                head_ctx.append(jnp.dot(p, vh, preferred_element_type=jnp.float32))
            ctx_rows.append(jnp.concatenate(head_ctx, axis=-1))     # (S, H) merged heads
        ctx = jnp.concatenate(ctx_rows, axis=0)                     # (B*S, H)

        attn_out = jnp.dot(ctx, wo_ref[l], preferred_element_type=jnp.float32) + bo_ref[l]
        x = _layer_norm(attn_out + x, ln1_g_ref[l], ln1_b_ref[l], eps)

        inter = _gelu(jnp.dot(x, w1_ref[l], preferred_element_type=jnp.float32) + b1_ref[l])
        ffn = jnp.dot(inter, w2_ref[l], preferred_element_type=jnp.float32) + b2_ref[l]
        x = _layer_norm(ffn + x, ln2_g_ref[l], ln2_b_ref[l], eps)

    # --- masked mean pooling: (1,S) @ (S,H) masked-sum matmul per batch row ---
    pooled = []
    for b in range(batch):
        m_b = pool_mask[b:b + 1, :]                                 # (1, S)
        x_b = x[b * seq:(b + 1) * seq, :]                           # (S, H)
        num = jnp.dot(m_b, x_b, preferred_element_type=jnp.float32)  # (1, H)
        den = jnp.sum(m_b, axis=-1, keepdims=True)                  # (1, 1)
        pooled.append(num / den)
    out_ref[...] = jnp.concatenate(pooled, axis=0)                  # (B, H)


# -------------------- model (glue + single kernel call) --------------------

def init_params(key):
    def normal(k, shape, scale=0.02):
        return (scale * jax.random.normal(k, shape)).astype(jnp.float32)

    keys = iter(jax.random.split(key, 3 + 6 * LAYERS))
    params = {
        "word_emb": normal(next(keys), (VOCAB, HIDDEN)),
        "pos_emb": normal(next(keys), (MAX_POS, HIDDEN)),
        "type_emb": normal(next(keys), (TYPE_VOCAB, HIDDEN)),
        "emb_ln_g": jnp.ones((1, HIDDEN), jnp.float32),
        "emb_ln_b": jnp.zeros((1, HIDDEN), jnp.float32),
    }
    wqkv, wo, w1, w2 = [], [], [], []
    for _ in range(LAYERS):
        wq = normal(next(keys), (HIDDEN, HIDDEN))
        wk = normal(next(keys), (HIDDEN, HIDDEN))
        wv = normal(next(keys), (HIDDEN, HIDDEN))
        wqkv.append(jnp.concatenate([wq, wk, wv], axis=1))          # fused QKV weight
        wo.append(normal(next(keys), (HIDDEN, HIDDEN)))
        w1.append(normal(next(keys), (HIDDEN, INTERMEDIATE)))
        w2.append(normal(next(keys), (INTERMEDIATE, HIDDEN)))
    params.update({
        "wqkv": jnp.stack(wqkv),                                    # (L, H, 3H)
        "bqkv": jnp.zeros((LAYERS, 1, 3 * HIDDEN), jnp.float32),
        "wo": jnp.stack(wo),                                        # (L, H, H)
        "bo": jnp.zeros((LAYERS, 1, HIDDEN), jnp.float32),
        "ln1_g": jnp.ones((LAYERS, 1, HIDDEN), jnp.float32),
        "ln1_b": jnp.zeros((LAYERS, 1, HIDDEN), jnp.float32),
        "w1": jnp.stack(w1),                                        # (L, H, I)
        "b1": jnp.zeros((LAYERS, 1, INTERMEDIATE), jnp.float32),
        "w2": jnp.stack(w2),                                        # (L, I, H)
        "b2": jnp.zeros((LAYERS, 1, HIDDEN), jnp.float32),
        "ln2_g": jnp.ones((LAYERS, 1, HIDDEN), jnp.float32),
        "ln2_b": jnp.zeros((LAYERS, 1, HIDDEN), jnp.float32),
    })
    return params


def sr_title_embed_forward(params, input_ids_title, attention_mask_title):
    """Equivalent of SRTitleEmbedTransformer.forward (eval mode, dropout = identity)."""
    B, S = input_ids_title.shape
    amask = attention_mask_title.astype(jnp.float32)                # (B, S)

    # Embedding gathers are data-dependent -> JAX glue; everything else is one kernel.
    emb = (params["word_emb"][input_ids_title]
           + params["pos_emb"][jnp.arange(S)][None, :, :]
           + params["type_emb"][0][None, None, :]).reshape(B * S, HIDDEN)

    attn_bias = (1.0 - amask) * (-1e9)                              # (B, S), computed once

    kernel = functools.partial(
        _fused_bert_kernel,
        batch=B, seq=S, heads=HEADS, head_dim=HEAD_DIM, layers=LAYERS, eps=EPS)

    return pl.pallas_call(
        kernel,
        out_shape=jax.ShapeDtypeStruct((B, HIDDEN), jnp.float32),
    )(emb, attn_bias, amask,
      params["emb_ln_g"], params["emb_ln_b"],
      params["wqkv"], params["bqkv"], params["wo"], params["bo"],
      params["ln1_g"], params["ln1_b"],
      params["w1"], params["b1"], params["w2"], params["b2"],
      params["ln2_g"], params["ln2_b"])


if __name__ == "__main__":
    key = jax.random.PRNGKey(0)
    pkey, ikey = jax.random.split(key)
    params = init_params(pkey)

    B, S = 2, 8
    input_ids_title = jax.random.randint(ikey, (B, S), 0, VOCAB, dtype=jnp.int32)
    lengths = jnp.array([8, 5], dtype=jnp.int32)
    attention_mask_title = (jnp.arange(S)[None, :] < lengths[:, None]).astype(jnp.int32)

    out = jax.jit(sr_title_embed_forward)(params, input_ids_title, attention_mask_title)
    out = jax.block_until_ready(out)

    assert out.shape == (B, HIDDEN), out.shape
    assert bool(jnp.all(jnp.isfinite(out)))
    print("KERNEL_OK")
</pallas_src>

<mosaic_0001>
module attributes {stable_mosaic.version = 11 : i64} {
  func.func @_fused_bert_kernel(%arg0: memref<16x32xf32, #tpu.memory_space<vmem>>, %arg1: memref<2x8xf32, #tpu.memory_space<vmem>>, %arg2: memref<2x8xf32, #tpu.memory_space<vmem>>, %arg3: memref<1x32xf32, #tpu.memory_space<vmem>>, %arg4: memref<1x32xf32, #tpu.memory_space<vmem>>, %arg5: memref<2x32x96xf32, #tpu.memory_space<vmem>>, %arg6: memref<2x1x96xf32, #tpu.memory_space<vmem>>, %arg7: memref<2x32x32xf32, #tpu.memory_space<vmem>>, %arg8: memref<2x1x32xf32, #tpu.memory_space<vmem>>, %arg9: memref<2x1x32xf32, #tpu.memory_space<vmem>>, %arg10: memref<2x1x32xf32, #tpu.memory_space<vmem>>, %arg11: memref<2x32x64xf32, #tpu.memory_space<vmem>>, %arg12: memref<2x1x64xf32, #tpu.memory_space<vmem>>, %arg13: memref<2x64x32xf32, #tpu.memory_space<vmem>>, %arg14: memref<2x1x32xf32, #tpu.memory_space<vmem>>, %arg15: memref<2x1x32xf32, #tpu.memory_space<vmem>>, %arg16: memref<2x1x32xf32, #tpu.memory_space<vmem>>, %arg17: memref<2x32xf32, #tpu.memory_space<vmem>>) attributes {dimension_semantics = [], scalar_prefetch = 0 : i64, scratch_operands = 0 : i64, tpu.core_type = #tpu.core_type<tc>} {
    %c0 = arith.constant 0 : index
    %c0_0 = arith.constant 0 : index
    %0 = vector.load %arg1[%c0, %c0_0] : memref<2x8xf32, #tpu.memory_space<vmem>>, vector<2x8xf32>
    %c0_1 = arith.constant 0 : index
    %c0_2 = arith.constant 0 : index
    %1 = vector.load %arg2[%c0_1, %c0_2] : memref<2x8xf32, #tpu.memory_space<vmem>>, vector<2x8xf32>
    %c0_3 = arith.constant 0 : index
    %c0_4 = arith.constant 0 : index
    %2 = vector.load %arg0[%c0_3, %c0_4] : memref<16x32xf32, #tpu.memory_space<vmem>>, vector<16x32xf32>
    %c0_5 = arith.constant 0 : index
    %c0_6 = arith.constant 0 : index
    %3 = vector.load %arg3[%c0_5, %c0_6] : memref<1x32xf32, #tpu.memory_space<vmem>>, vector<1x32xf32>
    %c0_7 = arith.constant 0 : index
    %c0_8 = arith.constant 0 : index
    %4 = vector.load %arg4[%c0_7, %c0_8] : memref<1x32xf32, #tpu.memory_space<vmem>>, vector<1x32xf32>
    %cst = arith.constant dense<0.000000e+00> : vector<16xf32>
    %5 = vector.multi_reduction <add>, %2, %cst [1] : vector<16x32xf32> to vector<16xf32>
    %6 = vector.shape_cast %5 : vector<16xf32> to vector<16x1xf32>
    %cst_9 = arith.constant 3.200000e+01 : f32
    %7 = vector.broadcast %cst_9 : f32 to vector<16x1xf32>
    %8 = arith.divf %6, %7 : vector<16x1xf32>
    %9 = vector.broadcast %8 : vector<16x1xf32> to vector<16x32xf32>
    %10 = arith.subf %2, %9 : vector<16x32xf32>
    %11 = vector.broadcast %8 : vector<16x1xf32> to vector<16x32xf32>
    %12 = arith.subf %2, %11 : vector<16x32xf32>
    %13 = arith.mulf %10, %12 : vector<16x32xf32>
    %cst_10 = arith.constant dense<0.000000e+00> : vector<16xf32>
    %14 = vector.multi_reduction <add>, %13, %cst_10 [1] : vector<16x32xf32> to vector<16xf32>
    %15 = vector.shape_cast %14 : vector<16xf32> to vector<16x1xf32>
    %cst_11 = arith.constant 3.200000e+01 : f32
    %16 = vector.broadcast %cst_11 : f32 to vector<16x1xf32>
    %17 = arith.divf %15, %16 : vector<16x1xf32>
    %18 = vector.broadcast %8 : vector<16x1xf32> to vector<16x32xf32>
    %19 = arith.subf %2, %18 : vector<16x32xf32>
    %cst_12 = arith.constant 9.99999996E-13 : f32
    %20 = vector.broadcast %cst_12 : f32 to vector<16x1xf32>
    %21 = arith.addf %17, %20 : vector<16x1xf32>
    %22 = math.rsqrt %21 : vector<16x1xf32>
    %23 = vector.broadcast %22 : vector<16x1xf32> to vector<16x32xf32>
    %24 = arith.mulf %19, %23 : vector<16x32xf32>
    %25 = vector.broadcast %3 : vector<1x32xf32> to vector<16x32xf32>
    %26 = arith.mulf %24, %25 : vector<16x32xf32>
    %27 = vector.broadcast %4 : vector<1x32xf32> to vector<16x32xf32>
    %28 = arith.addf %26, %27 : vector<16x32xf32>
    %c0_13 = arith.constant 0 : index
    %c0_14 = arith.constant 0 : index
    %c0_15 = arith.constant 0 : index
    %29 = vector.load %arg5[%c0_13, %c0_14, %c0_15] : memref<2x32x96xf32, #tpu.memory_space<vmem>>, vector<1x32x96xf32>
    %30 = vector.shape_cast %29 : vector<1x32x96xf32> to vector<32x96xf32>
    %cst_16 = arith.constant dense<0.000000e+00> : vector<16x96xf32>
    %31 = tpu.matmul %28, %30, %cst_16 {dimension_numbers = #tpu.dot_dimension_numbers<[1], [0], [0], [1], [0, 0, 1, 1], [], []>} : vector<16x32xf32>, vector<32x96xf32>, vector<16x96xf32> -> vector<16x96xf32>
    %c0_17 = arith.constant 0 : index
    %c0_18 = arith.constant 0 : index
    %c0_19 = arith.constant 0 : index
    %32 = vector.load %arg6[%c0_17, %c0_18, %c0_19] : memref<2x1x96xf32, #tpu.memory_space<vmem>>, vector<1x1x96xf32>
    %33 = vector.shape_cast %32 : vector<1x1x96xf32> to vector<1x96xf32>
    %34 = vector.broadcast %33 : vector<1x96xf32> to vector<16x96xf32>
    %35 = arith.addf %31, %34 : vector<16x96xf32>
    %36 = vector.extract_strided_slice %35 {offsets = [0, 0], sizes = [8, 32], strides = [1, 1]} : vector<16x96xf32> to vector<8x32xf32>
    %37 = vector.extract_strided_slice %35 {offsets = [0, 32], sizes = [8, 32], strides = [1, 1]} : vector<16x96xf32> to vector<8x32xf32>
    %38 = vector.extract_strided_slice %35 {offsets = [0, 64], sizes = [8, 32], strides = [1, 1]} : vector<16x96xf32> to vector<8x32xf32>
    %39 = vector.extract_strided_slice %0 {offsets = [0, 0], sizes = [1, 8], strides = [1, 1]} : vector<2x8xf32> to vector<1x8xf32>
    %40 = vector.extract_strided_slice %36 {offsets = [0, 0], sizes = [8, 16], strides = [1, 1]} : vector<8x32xf32> to vector<8x16xf32>
    %41 = vector.extract_strided_slice %37 {offsets = [0, 0], sizes = [8, 16], strides = [1, 1]} : vector<8x32xf32> to vector<8x16xf32>
    %42 = vector.extract_strided_slice %38 {offsets = [0, 0], sizes = [8, 16], strides = [1, 1]} : vector<8x32xf32> to vector<8x16xf32>
    %cst_20 = arith.constant dense<0.000000e+00> : vector<8x8xf32>
    %43 = tpu.matmul %40, %41, %cst_20 {dimension_numbers = #tpu.dot_dimension_numbers<[1], [1], [0], [0], [0, 0, 1, 0], [], []>} : vector<8x16xf32>, vector<8x16xf32>, vector<8x8xf32> -> vector<8x8xf32>
    %cst_21 = arith.constant 2.500000e-01 : f32
    %44 = vector.broadcast %cst_21 : f32 to vector<8x8xf32>
    %45 = arith.mulf %43, %44 : vector<8x8xf32>
    %46 = vector.broadcast %39 : vector<1x8xf32> to vector<8x8xf32>
    %47 = arith.addf %45, %46 : vector<8x8xf32>
    %cst_22 = arith.constant dense<0xFF800000> : vector<8xf32>
    %48 = vector.multi_reduction <maximumf>, %47, %cst_22 [1] : vector<8x8xf32> to vector<8xf32>
    %49 = vector.shape_cast %48 : vector<8xf32> to vector<8x1xf32>
    %50 = vector.broadcast %49 : vector<8x1xf32> to vector<8x8xf32>
    %51 = arith.subf %47, %50 : vector<8x8xf32>
    %52 = math.exp %51 : vector<8x8xf32>
    %cst_23 = arith.constant dense<0.000000e+00> : vector<8xf32>
    %53 = vector.multi_reduction <add>, %52, %cst_23 [1] : vector<8x8xf32> to vector<8xf32>
    %54 = vector.shape_cast %53 : vector<8xf32> to vector<8x1xf32>
    %55 = tpu.reciprocal %54 {approx = true} : vector<8x1xf32> -> vector<8x1xf32>
    %56 = vector.broadcast %55 : vector<8x1xf32> to vector<8x8xf32>
    %57 = arith.mulf %52, %56 : vector<8x8xf32>
    %cst_24 = arith.constant dense<0.000000e+00> : vector<8x16xf32>
    %58 = tpu.matmul %57, %42, %cst_24 {dimension_numbers = #tpu.dot_dimension_numbers<[1], [0], [0], [1], [0, 0, 1, 1], [], []>} : vector<8x8xf32>, vector<8x16xf32>, vector<8x16xf32> -> vector<8x16xf32>
    %59 = vector.extract_strided_slice %36 {offsets = [0, 16], sizes = [8, 16], strides = [1, 1]} : vector<8x32xf32> to vector<8x16xf32>
    %60 = vector.extract_strided_slice %37 {offsets = [0, 16], sizes = [8, 16], strides = [1, 1]} : vector<8x32xf32> to vector<8x16xf32>
    %61 = vector.extract_strided_slice %38 {offsets = [0, 16], sizes = [8, 16], strides = [1, 1]} : vector<8x32xf32> to vector<8x16xf32>
    %cst_25 = arith.constant dense<0.000000e+00> : vector<8x8xf32>
    %62 = tpu.matmul %59, %60, %cst_25 {dimension_numbers = #tpu.dot_dimension_numbers<[1], [1], [0], [0], [0, 0, 1, 0], [], []>} : vector<8x16xf32>, vector<8x16xf32>, vector<8x8xf32> -> vector<8x8xf32>
    %cst_26 = arith.constant 2.500000e-01 : f32
    %63 = vector.broadcast %cst_26 : f32 to vector<8x8xf32>
    %64 = arith.mulf %62, %63 : vector<8x8xf32>
    %65 = vector.broadcast %39 : vector<1x8xf32> to vector<8x8xf32>
    %66 = arith.addf %64, %65 : vector<8x8xf32>
    %cst_27 = arith.constant dense<0xFF800000> : vector<8xf32>
    %67 = vector.multi_reduction <maximumf>, %66, %cst_27 [1] : vector<8x8xf32> to vector<8xf32>
    %68 = vector.shape_cast %67 : vector<8xf32> to vector<8x1xf32>
    %69 = vector.broadcast %68 : vector<8x1xf32> to vector<8x8xf32>
    %70 = arith.subf %66, %69 : vector<8x8xf32>
    %71 = math.exp %70 : vector<8x8xf32>
    %cst_28 = arith.constant dense<0.000000e+00> : vector<8xf32>
    %72 = vector.multi_reduction <add>, %71, %cst_28 [1] : vector<8x8xf32> to vector<8xf32>
    %73 = vector.shape_cast %72 : vector<8xf32> to vector<8x1xf32>
    %74 = tpu.reciprocal %73 {approx = true} : vector<8x1xf32> -> vector<8x1xf32>
    %75 = vector.broadcast %74 : vector<8x1xf32> to vector<8x8xf32>
    %76 = arith.mulf %71, %75 : vector<8x8xf32>
    %cst_29 = arith.constant dense<0.000000e+00> : vector<8x16xf32>
    %77 = tpu.matmul %76, %61, %cst_29 {dimension_numbers = #tpu.dot_dimension_numbers<[1], [0], [0], [1], [0, 0, 1, 1], [], []>} : vector<8x8xf32>, vector<8x16xf32>, vector<8x16xf32> -> vector<8x16xf32>
    %78 = tpu.concatenate %58, %77 in 1 : vector<8x16xf32>, vector<8x16xf32> -> vector<8x32xf32>
    %79 = vector.extract_strided_slice %35 {offsets = [8, 0], sizes = [8, 32], strides = [1, 1]} : vector<16x96xf32> to vector<8x32xf32>
    %80 = vector.extract_strided_slice %35 {offsets = [8, 32], sizes = [8, 32], strides = [1, 1]} : vector<16x96xf32> to vector<8x32xf32>
    %81 = vector.extract_strided_slice %35 {offsets = [8, 64], sizes = [8, 32], strides = [1, 1]} : vector<16x96xf32> to vector<8x32xf32>
    %82 = vector.extract_strided_slice %0 {offsets = [1, 0], sizes = [1, 8], strides = [1, 1]} : vector<2x8xf32> to vector<1x8xf32>
    %83 = vector.extract_strided_slice %79 {offsets = [0, 0], sizes = [8, 16], strides = [1, 1]} : vector<8x32xf32> to vector<8x16xf32>
    %84 = vector.extract_strided_slice %80 {offsets = [0, 0], sizes = [8, 16], strides = [1, 1]} : vector<8x32xf32> to vector<8x16xf32>
    %85 = vector.extract_strided_slice %81 {offsets = [0, 0], sizes = [8, 16], strides = [1, 1]} : vector<8x32xf32> to vector<8x16xf32>
    %cst_30 = arith.constant dense<0.000000e+00> : vector<8x8xf32>
    %86 = tpu.matmul %83, %84, %cst_30 {dimension_numbers = #tpu.dot_dimension_numbers<[1], [1], [0], [0], [0, 0, 1, 0], [], []>} : vector<8x16xf32>, vector<8x16xf32>, vector<8x8xf32> -> vector<8x8xf32>
    %cst_31 = arith.constant 2.500000e-01 : f32
    %87 = vector.broadcast %cst_31 : f32 to vector<8x8xf32>
    %88 = arith.mulf %86, %87 : vector<8x8xf32>
    %89 = vector.broadcast %82 : vector<1x8xf32> to vector<8x8xf32>
    %90 = arith.addf %88, %89 : vector<8x8xf32>
    %cst_32 = arith.constant dense<0xFF800000> : vector<8xf32>
    %91 = vector.multi_reduction <maximumf>, %90, %cst_32 [1] : vector<8x8xf32> to vector<8xf32>
    %92 = vector.shape_cast %91 : vector<8xf32> to vector<8x1xf32>
    %93 = vector.broadcast %92 : vector<8x1xf32> to vector<8x8xf32>
    %94 = arith.subf %90, %93 : vector<8x8xf32>
    %95 = math.exp %94 : vector<8x8xf32>
    %cst_33 = arith.constant dense<0.000000e+00> : vector<8xf32>
    %96 = vector.multi_reduction <add>, %95, %cst_33 [1] : vector<8x8xf32> to vector<8xf32>
    %97 = vector.shape_cast %96 : vector<8xf32> to vector<8x1xf32>
    %98 = tpu.reciprocal %97 {approx = true} : vector<8x1xf32> -> vector<8x1xf32>
    %99 = vector.broadcast %98 : vector<8x1xf32> to vector<8x8xf32>
    %100 = arith.mulf %95, %99 : vector<8x8xf32>
    %cst_34 = arith.constant dense<0.000000e+00> : vector<8x16xf32>
    %101 = tpu.matmul %100, %85, %cst_34 {dimension_numbers = #tpu.dot_dimension_numbers<[1], [0], [0], [1], [0, 0, 1, 1], [], []>} : vector<8x8xf32>, vector<8x16xf32>, vector<8x16xf32> -> vector<8x16xf32>
    %102 = vector.extract_strided_slice %79 {offsets = [0, 16], sizes = [8, 16], strides = [1, 1]} : vector<8x32xf32> to vector<8x16xf32>
    %103 = vector.extract_strided_slice %80 {offsets = [0, 16], sizes = [8, 16], strides = [1, 1]} : vector<8x32xf32> to vector<8x16xf32>
    %104 = vector.extract_strided_slice %81 {offsets = [0, 16], sizes = [8, 16], strides = [1, 1]} : vector<8x32xf32> to vector<8x16xf32>
    %cst_35 = arith.constant dense<0.000000e+00> : vector<8x8xf32>
    %105 = tpu.matmul %102, %103, %cst_35 {dimension_numbers = #tpu.dot_dimension_numbers<[1], [1], [0], [0], [0, 0, 1, 0], [], []>} : vector<8x16xf32>, vector<8x16xf32>, vector<8x8xf32> -> vector<8x8xf32>
    %cst_36 = arith.constant 2.500000e-01 : f32
    %106 = vector.broadcast %cst_36 : f32 to vector<8x8xf32>
    %107 = arith.mulf %105, %106 : vector<8x8xf32>
    %108 = vector.broadcast %82 : vector<1x8xf32> to vector<8x8xf32>
    %109 = arith.addf %107, %108 : vector<8x8xf32>
    %cst_37 = arith.constant dense<0xFF800000> : vector<8xf32>
    %110 = vector.multi_reduction <maximumf>, %109, %cst_37 [1] : vector<8x8xf32> to vector<8xf32>
    %111 = vector.shape_cast %110 : vector<8xf32> to vector<8x1xf32>
    %112 = vector.broadcast %111 : vector<8x1xf32> to vector<8x8xf32>
    %113 = arith.subf %109, %112 : vector<8x8xf32>
    %114 = math.exp %113 : vector<8x8xf32>
    %cst_38 = arith.constant dense<0.000000e+00> : vector<8xf32>
    %115 = vector.multi_reduction <add>, %114, %cst_38 [1] : vector<8x8xf32> to vector<8xf32>
    %116 = vector.shape_cast %115 : vector<8xf32> to vector<8x1xf32>
    %117 = tpu.reciprocal %116 {approx = true} : vector<8x1xf32> -> vector<8x1xf32>
    %118 = vector.broadcast %117 : vector<8x1xf32> to vector<8x8xf32>
    %119 = arith.mulf %114, %118 : vector<8x8xf32>
    %cst_39 = arith.constant dense<0.000000e+00> : vector<8x16xf32>
    %120 = tpu.matmul %119, %104, %cst_39 {dimension_numbers = #tpu.dot_dimension_numbers<[1], [0], [0], [1], [0, 0, 1, 1], [], []>} : vector<8x8xf32>, vector<8x16xf32>, vector<8x16xf32> -> vector<8x16xf32>
    %121 = tpu.concatenate %101, %120 in 1 : vector<8x16xf32>, vector<8x16xf32> -> vector<8x32xf32>
    %122 = tpu.concatenate %78, %121 in 0 : vector<8x32xf32>, vector<8x32xf32> -> vector<16x32xf32>
    %c0_40 = arith.constant 0 : index
    %c0_41 = arith.constant 0 : index
    %c0_42 = arith.constant 0 : index
    %123 = vector.load %arg7[%c0_40, %c0_41, %c0_42] : memref<2x32x32xf32, #tpu.memory_space<vmem>>, vector<1x32x32xf32>
    %124 = vector.shape_cast %123 : vector<1x32x32xf32> to vector<32x32xf32>
    %cst_43 = arith.constant dense<0.000000e+00> : vector<16x32xf32>
    %125 = tpu.matmul %122, %124, %cst_43 {dimension_numbers = #tpu.dot_dimension_numbers<[1], [0], [0], [1], [0, 0, 1, 1], [], []>} : vector<16x32xf32>, vector<32x32xf32>, vector<16x32xf32> -> vector<16x32xf32>
    %c0_44 = arith.constant 0 : index
    %c0_45 = arith.constant 0 : index
    %c0_46 = arith.constant 0 : index
    %126 = vector.load %arg8[%c0_44, %c0_45, %c0_46] : memref<2x1x32xf32, #tpu.memory_space<vmem>>, vector<1x1x32xf32>
    %127 = vector.shape_cast %126 : vector<1x1x32xf32> to vector<1x32xf32>
    %128 = vector.broadcast %127 : vector<1x32xf32> to vector<16x32xf32>
    %129 = arith.addf %125, %128 : vector<16x32xf32>
    %130 = arith.addf %129, %28 : vector<16x32xf32>
    %c0_47 = arith.constant 0 : index
    %c0_48 = arith.constant 0 : index
    %c0_49 = arith.constant 0 : index
    %131 = vector.load %arg9[%c0_47, %c0_48, %c0_49] : memref<2x1x32xf32, #tpu.memory_space<vmem>>, vector<1x1x32xf32>
    %132 = vector.shape_cast %131 : vector<1x1x32xf32> to vector<1x32xf32>
    %c0_50 = arith.constant 0 : index
    %c0_51 = arith.constant 0 : index
    %c0_52 = arith.constant 0 : index
    %133 = vector.load %arg10[%c0_50, %c0_51, %c0_52] : memref<2x1x32xf32, #tpu.memory_space<vmem>>, vector<1x1x32xf32>
    %134 = vector.shape_cast %133 : vector<1x1x32xf32> to vector<1x32xf32>
    %cst_53 = arith.constant dense<0.000000e+00> : vector<16xf32>
    %135 = vector.multi_reduction <add>, %130, %cst_53 [1] : vector<16x32xf32> to vector<16xf32>
    %136 = vector.shape_cast %135 : vector<16xf32> to vector<16x1xf32>
    %cst_54 = arith.constant 3.200000e+01 : f32
    %137 = vector.broadcast %cst_54 : f32 to vector<16x1xf32>
    %138 = arith.divf %136, %137 : vector<16x1xf32>
    %139 = vector.broadcast %138 : vector<16x1xf32> to vector<16x32xf32>
    %140 = arith.subf %130, %139 : vector<16x32xf32>
    %141 = vector.broadcast %138 : vector<16x1xf32> to vector<16x32xf32>
    %142 = arith.subf %130, %141 : vector<16x32xf32>
    %143 = arith.mulf %140, %142 : vector<16x32xf32>
    %cst_55 = arith.constant dense<0.000000e+00> : vector<16xf32>
    %144 = vector.multi_reduction <add>, %143, %cst_55 [1] : vector<16x32xf32> to vector<16xf32>
    %145 = vector.shape_cast %144 : vector<16xf32> to vector<16x1xf32>
    %cst_56 = arith.constant 3.200000e+01 : f32
    %146 = vector.broadcast %cst_56 : f32 to vector<16x1xf32>
    %147 = arith.divf %145, %146 : vector<16x1xf32>
    %148 = vector.broadcast %138 : vector<16x1xf32> to vector<16x32xf32>
    %149 = arith.subf %130, %148 : vector<16x32xf32>
    %cst_57 = arith.constant 9.99999996E-13 : f32
    %150 = vector.broadcast %cst_57 : f32 to vector<16x1xf32>
    %151 = arith.addf %147, %150 : vector<16x1xf32>
    %152 = math.rsqrt %151 : vector<16x1xf32>
    %153 = vector.broadcast %152 : vector<16x1xf32> to vector<16x32xf32>
    %154 = arith.mulf %149, %153 : vector<16x32xf32>
    %155 = vector.broadcast %132 : vector<1x32xf32> to vector<16x32xf32>
    %156 = arith.mulf %154, %155 : vector<16x32xf32>
    %157 = vector.broadcast %134 : vector<1x32xf32> to vector<16x32xf32>
    %158 = arith.addf %156, %157 : vector<16x32xf32>
    %c0_58 = arith.constant 0 : index
    %c0_59 = arith.constant 0 : index
    %c0_60 = arith.constant 0 : index
    %159 = vector.load %arg11[%c0_58, %c0_59, %c0_60] : memref<2x32x64xf32, #tpu.memory_space<vmem>>, vector<1x32x64xf32>
    %160 = vector.shape_cast %159 : vector<1x32x64xf32> to vector<32x64xf32>
    %cst_61 = arith.constant dense<0.000000e+00> : vector<16x64xf32>
    %161 = tpu.matmul %158, %160, %cst_61 {dimension_numbers = #tpu.dot_dimension_numbers<[1], [0], [0], [1], [0, 0, 1, 1], [], []>} : vector<16x32xf32>, vector<32x64xf32>, vector<16x64xf32> -> vector<16x64xf32>
    %c0_62 = arith.constant 0 : index
    %c0_63 = arith.constant 0 : index
    %c0_64 = arith.constant 0 : index
    %162 = vector.load %arg12[%c0_62, %c0_63, %c0_64] : memref<2x1x64xf32, #tpu.memory_space<vmem>>, vector<1x1x64xf32>
    %163 = vector.shape_cast %162 : vector<1x1x64xf32> to vector<1x64xf32>
    %164 = vector.broadcast %163 : vector<1x64xf32> to vector<16x64xf32>
    %165 = arith.addf %161, %164 : vector<16x64xf32>
    %cst_65 = arith.constant 5.000000e-01 : f32
    %166 = vector.broadcast %cst_65 : f32 to vector<16x64xf32>
    %167 = arith.mulf %166, %165 : vector<16x64xf32>
    %cst_66 = arith.constant 4.471500e-02 : f32
    %168 = vector.broadcast %cst_66 : f32 to vector<16x64xf32>
    %169 = arith.mulf %168, %165 : vector<16x64xf32>
    %170 = arith.mulf %169, %165 : vector<16x64xf32>
    %171 = arith.mulf %170, %165 : vector<16x64xf32>
    %172 = arith.addf %165, %171 : vector<16x64xf32>
    %cst_67 = arith.constant 0.797884583 : f32
    %173 = vector.broadcast %cst_67 : f32 to vector<16x64xf32>
    %174 = arith.mulf %173, %172 : vector<16x64xf32>
    %175 = math.tanh %174 : vector<16x64xf32>
    %cst_68 = arith.constant 1.000000e+00 : f32
    %176 = vector.broadcast %cst_68 : f32 to vector<16x64xf32>
    %177 = arith.addf %176, %175 : vector<16x64xf32>
    %178 = arith.mulf %167, %177 : vector<16x64xf32>
    %c0_69 = arith.constant 0 : index
    %c0_70 = arith.constant 0 : index
    %c0_71 = arith.constant 0 : index
    %179 = vector.load %arg13[%c0_69, %c0_70, %c0_71] : memref<2x64x32xf32, #tpu.memory_space<vmem>>, vector<1x64x32xf32>
    %180 = vector.shape_cast %179 : vector<1x64x32xf32> to vector<64x32xf32>
    %cst_72 = arith.constant dense<0.000000e+00> : vector<16x32xf32>
    %181 = tpu.matmul %178, %180, %cst_72 {dimension_numbers = #tpu.dot_dimension_numbers<[1], [0], [0], [1], [0, 0, 1, 1], [], []>} : vector<16x64xf32>, vector<64x32xf32>, vector<16x32xf32> -> vector<16x32xf32>
    %c0_73 = arith.constant 0 : index
    %c0_74 = arith.constant 0 : index
    %c0_75 = arith.constant 0 : index
    %182 = vector.load %arg14[%c0_73, %c0_74, %c0_75] : memref<2x1x32xf32, #tpu.memory_space<vmem>>, vector<1x1x32xf32>
    %183 = vector.shape_cast %182 : vector<1x1x32xf32> to vector<1x32xf32>
    %184 = vector.broadcast %183 : vector<1x32xf32> to vector<16x32xf32>
    %185 = arith.addf %181, %184 : vector<16x32xf32>
    %186 = arith.addf %185, %158 : vector<16x32xf32>
    %c0_76 = arith.constant 0 : index
    %c0_77 = arith.constant 0 : index
    %c0_78 = arith.constant 0 : index
    %187 = vector.load %arg15[%c0_76, %c0_77, %c0_78] : memref<2x1x32xf32, #tpu.memory_space<vmem>>, vector<1x1x32xf32>
    %188 = vector.shape_cast %187 : vector<1x1x32xf32> to vector<1x32xf32>
    %c0_79 = arith.constant 0 : index
    %c0_80 = arith.constant 0 : index
    %c0_81 = arith.constant 0 : index
    %189 = vector.load %arg16[%c0_79, %c0_80, %c0_81] : memref<2x1x32xf32, #tpu.memory_space<vmem>>, vector<1x1x32xf32>
    %190 = vector.shape_cast %189 : vector<1x1x32xf32> to vector<1x32xf32>
    %cst_82 = arith.constant dense<0.000000e+00> : vector<16xf32>
    %191 = vector.multi_reduction <add>, %186, %cst_82 [1] : vector<16x32xf32> to vector<16xf32>
    %192 = vector.shape_cast %191 : vector<16xf32> to vector<16x1xf32>
    %cst_83 = arith.constant 3.200000e+01 : f32
    %193 = vector.broadcast %cst_83 : f32 to vector<16x1xf32>
    %194 = arith.divf %192, %193 : vector<16x1xf32>
    %195 = vector.broadcast %194 : vector<16x1xf32> to vector<16x32xf32>
    %196 = arith.subf %186, %195 : vector<16x32xf32>
    %197 = vector.broadcast %194 : vector<16x1xf32> to vector<16x32xf32>
    %198 = arith.subf %186, %197 : vector<16x32xf32>
    %199 = arith.mulf %196, %198 : vector<16x32xf32>
    %cst_84 = arith.constant dense<0.000000e+00> : vector<16xf32>
    %200 = vector.multi_reduction <add>, %199, %cst_84 [1] : vector<16x32xf32> to vector<16xf32>
    %201 = vector.shape_cast %200 : vector<16xf32> to vector<16x1xf32>
    %cst_85 = arith.constant 3.200000e+01 : f32
    %202 = vector.broadcast %cst_85 : f32 to vector<16x1xf32>
    %203 = arith.divf %201, %202 : vector<16x1xf32>
    %204 = vector.broadcast %194 : vector<16x1xf32> to vector<16x32xf32>
    %205 = arith.subf %186, %204 : vector<16x32xf32>
    %cst_86 = arith.constant 9.99999996E-13 : f32
    %206 = vector.broadcast %cst_86 : f32 to vector<16x1xf32>
    %207 = arith.addf %203, %206 : vector<16x1xf32>
    %208 = math.rsqrt %207 : vector<16x1xf32>
    %209 = vector.broadcast %208 : vector<16x1xf32> to vector<16x32xf32>
    %210 = arith.mulf %205, %209 : vector<16x32xf32>
    %211 = vector.broadcast %188 : vector<1x32xf32> to vector<16x32xf32>
    %212 = arith.mulf %210, %211 : vector<16x32xf32>
    %213 = vector.broadcast %190 : vector<1x32xf32> to vector<16x32xf32>
    %214 = arith.addf %212, %213 : vector<16x32xf32>
    %c1 = arith.constant 1 : index
    %c0_87 = arith.constant 0 : index
    %c0_88 = arith.constant 0 : index
    %215 = vector.load %arg5[%c1, %c0_87, %c0_88] : memref<2x32x96xf32, #tpu.memory_space<vmem>>, vector<1x32x96xf32>
    %216 = vector.shape_cast %215 : vector<1x32x96xf32> to vector<32x96xf32>
    %cst_89 = arith.constant dense<0.000000e+00> : vector<16x96xf32>
    %217 = tpu.matmul %214, %216, %cst_89 {dimension_numbers = #tpu.dot_dimension_numbers<[1], [0], [0], [1], [0, 0, 1, 1], [], []>} : vector<16x32xf32>, vector<32x96xf32>, vector<16x96xf32> -> vector<16x96xf32>
    %c1_90 = arith.constant 1 : index
    %c0_91 = arith.constant 0 : index
    %c0_92 = arith.constant 0 : index
    %218 = vector.load %arg6[%c1_90, %c0_91, %c0_92] : memref<2x1x96xf32, #tpu.memory_space<vmem>>, vector<1x1x96xf32>
    %219 = vector.shape_cast %218 : vector<1x1x96xf32> to vector<1x96xf32>
    %220 = vector.broadcast %219 : vector<1x96xf32> to vector<16x96xf32>
    %221 = arith.addf %217, %220 : vector<16x96xf32>
    %222 = vector.extract_strided_slice %221 {offsets = [0, 0], sizes = [8, 32], strides = [1, 1]} : vector<16x96xf32> to vector<8x32xf32>
    %223 = vector.extract_strided_slice %221 {offsets = [0, 32], sizes = [8, 32], strides = [1, 1]} : vector<16x96xf32> to vector<8x32xf32>
    %224 = vector.extract_strided_slice %221 {offsets = [0, 64], sizes = [8, 32], strides = [1, 1]} : vector<16x96xf32> to vector<8x32xf32>
    %225 = vector.extract_strided_slice %0 {offsets = [0, 0], sizes = [1, 8], strides = [1, 1]} : vector<2x8xf32> to vector<1x8xf32>
    %226 = vector.extract_strided_slice %222 {offsets = [0, 0], sizes = [8, 16], strides = [1, 1]} : vector<8x32xf32> to vector<8x16xf32>
    %227 = vector.extract_strided_slice %223 {offsets = [0, 0], sizes = [8, 16], strides = [1, 1]} : vector<8x32xf32> to vector<8x16xf32>
    %228 = vector.extract_strided_slice %224 {offsets = [0, 0], sizes = [8, 16], strides = [1, 1]} : vector<8x32xf32> to vector<8x16xf32>
    %cst_93 = arith.constant dense<0.000000e+00> : vector<8x8xf32>
    %229 = tpu.matmul %226, %227, %cst_93 {dimension_numbers = #tpu.dot_dimension_numbers<[1], [1], [0], [0], [0, 0, 1, 0], [], []>} : vector<8x16xf32>, vector<8x16xf32>, vector<8x8xf32> -> vector<8x8xf32>
    %cst_94 = arith.constant 2.500000e-01 : f32
    %230 = vector.broadcast %cst_94 : f32 to vector<8x8xf32>
    %231 = arith.mulf %229, %230 : vector<8x8xf32>
    %232 = vector.broadcast %225 : vector<1x8xf32> to vector<8x8xf32>
    %233 = arith.addf %231, %232 : vector<8x8xf32>
    %cst_95 = arith.constant dense<0xFF800000> : vector<8xf32>
    %234 = vector.multi_reduction <maximumf>, %233, %cst_95 [1] : vector<8x8xf32> to vector<8xf32>
    %235 = vector.shape_cast %234 : vector<8xf32> to vector<8x1xf32>
    %236 = vector.broadcast %235 : vector<8x1xf32> to vector<8x8xf32>
    %237 = arith.subf %233, %236 : vector<8x8xf32>
    %238 = math.exp %237 : vector<8x8xf32>
    %cst_96 = arith.constant dense<0.000000e+00> : vector<8xf32>
    %239 = vector.multi_reduction <add>, %238, %cst_96 [1] : vector<8x8xf32> to vector<8xf32>
    %240 = vector.shape_cast %239 : vector<8xf32> to vector<8x1xf32>
    %241 = tpu.reciprocal %240 {approx = true} : vector<8x1xf32> -> vector<8x1xf32>
    %242 = vector.broadcast %241 : vector<8x1xf32> to vector<8x8xf32>
    %243 = arith.mulf %238, %242 : vector<8x8xf32>
    %cst_97 = arith.constant dense<0.000000e+00> : vector<8x16xf32>
    %244 = tpu.matmul %243, %228, %cst_97 {dimension_numbers = #tpu.dot_dimension_numbers<[1], [0], [0], [1], [0, 0, 1, 1], [], []>} : vector<8x8xf32>, vector<8x16xf32>, vector<8x16xf32> -> vector<8x16xf32>
    %245 = vector.extract_strided_slice %222 {offsets = [0, 16], sizes = [8, 16], strides = [1, 1]} : vector<8x32xf32> to vector<8x16xf32>
    %246 = vector.extract_strided_slice %223 {offsets = [0, 16], sizes = [8, 16], strides = [1, 1]} : vector<8x32xf32> to vector<8x16xf32>
    %247 = vector.extract_strided_slice %224 {offsets = [0, 16], sizes = [8, 16], strides = [1, 1]} : vector<8x32xf32> to vector<8x16xf32>
    %cst_98 = arith.constant dense<0.000000e+00> : vector<8x8xf32>
    %248 = tpu.matmul %245, %246, %cst_98 {dimension_numbers = #tpu.dot_dimension_numbers<[1], [1], [0], [0], [0, 0, 1, 0], [], []>} : vector<8x16xf32>, vector<8x16xf32>, vector<8x8xf32> -> vector<8x8xf32>
    %cst_99 = arith.constant 2.500000e-01 : f32
    %249 = vector.broadcast %cst_99 : f32 to vector<8x8xf32>
    %250 = arith.mulf %248, %249 : vector<8x8xf32>
    %251 = vector.broadcast %225 : vector<1x8xf32> to vector<8x8xf32>
    %252 = arith.addf %250, %251 : vector<8x8xf32>
    %cst_100 = arith.constant dense<0xFF800000> : vector<8xf32>
    %253 = vector.multi_reduction <maximumf>, %252, %cst_100 [1] : vector<8x8xf32> to vector<8xf32>
    %254 = vector.shape_cast %253 : vector<8xf32> to vector<8x1xf32>
    %255 = vector.broadcast %254 : vector<8x1xf32> to vector<8x8xf32>
    %256 = arith.subf %252, %255 : vector<8x8xf32>
    %257 = math.exp %256 : vector<8x8xf32>
    %cst_101 = arith.constant dense<0.000000e+00> : vector<8xf32>
    %258 = vector.multi_reduction <add>, %257, %cst_101 [1] : vector<8x8xf32> to vector<8xf32>
    %259 = vector.shape_cast %258 : vector<8xf32> to vector<8x1xf32>
    %260 = tpu.reciprocal %259 {approx = true} : vector<8x1xf32> -> vector<8x1xf32>
    %261 = vector.broadcast %260 : vector<8x1xf32> to vector<8x8xf32>
    %262 = arith.mulf %257, %261 : vector<8x8xf32>
    %cst_102 = arith.constant dense<0.000000e+00> : vector<8x16xf32>
    %263 = tpu.matmul %262, %247, %cst_102 {dimension_numbers = #tpu.dot_dimension_numbers<[1], [0], [0], [1], [0, 0, 1, 1], [], []>} : vector<8x8xf32>, vector<8x16xf32>, vector<8x16xf32> -> vector<8x16xf32>
    %264 = tpu.concatenate %244, %263 in 1 : vector<8x16xf32>, vector<8x16xf32> -> vector<8x32xf32>
    %265 = vector.extract_strided_slice %221 {offsets = [8, 0], sizes = [8, 32], strides = [1, 1]} : vector<16x96xf32> to vector<8x32xf32>
    %266 = vector.extract_strided_slice %221 {offsets = [8, 32], sizes = [8, 32], strides = [1, 1]} : vector<16x96xf32> to vector<8x32xf32>
    %267 = vector.extract_strided_slice %221 {offsets = [8, 64], sizes = [8, 32], strides = [1, 1]} : vector<16x96xf32> to vector<8x32xf32>
    %268 = vector.extract_strided_slice %0 {offsets = [1, 0], sizes = [1, 8], strides = [1, 1]} : vector<2x8xf32> to vector<1x8xf32>
    %269 = vector.extract_strided_slice %265 {offsets = [0, 0], sizes = [8, 16], strides = [1, 1]} : vector<8x32xf32> to vector<8x16xf32>
    %270 = vector.extract_strided_slice %266 {offsets = [0, 0], sizes = [8, 16], strides = [1, 1]} : vector<8x32xf32> to vector<8x16xf32>
    %271 = vector.extract_strided_slice %267 {offsets = [0, 0], sizes = [8, 16], strides = [1, 1]} : vector<8x32xf32> to vector<8x16xf32>
    %cst_103 = arith.constant dense<0.000000e+00> : vector<8x8xf32>
    %272 = tpu.matmul %269, %270, %cst_103 {dimension_numbers = #tpu.dot_dimension_numbers<[1], [1], [0], [0], [0, 0, 1, 0], [], []>} : vector<8x16xf32>, vector<8x16xf32>, vector<8x8xf32> -> vector<8x8xf32>
    %cst_104 = arith.constant 2.500000e-01 : f32
    %273 = vector.broadcast %cst_104 : f32 to vector<8x8xf32>
    %274 = arith.mulf %272, %273 : vector<8x8xf32>
    %275 = vector.broadcast %268 : vector<1x8xf32> to vector<8x8xf32>
    %276 = arith.addf %274, %275 : vector<8x8xf32>
    %cst_105 = arith.constant dense<0xFF800000> : vector<8xf32>
    %277 = vector.multi_reduction <maximumf>, %276, %cst_105 [1] : vector<8x8xf32> to vector<8xf32>
    %278 = vector.shape_cast %277 : vector<8xf32> to vector<8x1xf32>
    %279 = vector.broadcast %278 : vector<8x1xf32> to vector<8x8xf32>
    %280 = arith.subf %276, %279 : vector<8x8xf32>
    %281 = math.exp %280 : vector<8x8xf32>
    %cst_106 = arith.constant dense<0.000000e+00> : vector<8xf32>
    %282 = vector.multi_reduction <add>, %281, %cst_106 [1] : vector<8x8xf32> to vector<8xf32>
    %283 = vector.shape_cast %282 : vector<8xf32> to vector<8x1xf32>
    %284 = tpu.reciprocal %283 {approx = true} : vector<8x1xf32> -> vector<8x1xf32>
    %285 = vector.broadcast %284 : vector<8x1xf32> to vector<8x8xf32>
    %286 = arith.mulf %281, %285 : vector<8x8xf32>
    %cst_107 = arith.constant dense<0.000000e+00> : vector<8x16xf32>
    %287 = tpu.matmul %286, %271, %cst_107 {dimension_numbers = #tpu.dot_dimension_numbers<[1], [0], [0], [1], [0, 0, 1, 1], [], []>} : vector<8x8xf32>, vector<8x16xf32>, vector<8x16xf32> -> vector<8x16xf32>
    %288 = vector.extract_strided_slice %265 {offsets = [0, 16], sizes = [8, 16], strides = [1, 1]} : vector<8x32xf32> to vector<8x16xf32>
    %289 = vector.extract_strided_slice %266 {offsets = [0, 16], sizes = [8, 16], strides = [1, 1]} : vector<8x32xf32> to vector<8x16xf32>
    %290 = vector.extract_strided_slice %267 {offsets = [0, 16], sizes = [8, 16], strides = [1, 1]} : vector<8x32xf32> to vector<8x16xf32>
    %cst_108 = arith.constant dense<0.000000e+00> : vector<8x8xf32>
    %291 = tpu.matmul %288, %289, %cst_108 {dimension_numbers = #tpu.dot_dimension_numbers<[1], [1], [0], [0], [0, 0, 1, 0], [], []>} : vector<8x16xf32>, vector<8x16xf32>, vector<8x8xf32> -> vector<8x8xf32>
    %cst_109 = arith.constant 2.500000e-01 : f32
    %292 = vector.broadcast %cst_109 : f32 to vector<8x8xf32>
    %293 = arith.mulf %291, %292 : vector<8x8xf32>
    %294 = vector.broadcast %268 : vector<1x8xf32> to vector<8x8xf32>
    %295 = arith.addf %293, %294 : vector<8x8xf32>
    %cst_110 = arith.constant dense<0xFF800000> : vector<8xf32>
    %296 = vector.multi_reduction <maximumf>, %295, %cst_110 [1] : vector<8x8xf32> to vector<8xf32>
    %297 = vector.shape_cast %296 : vector<8xf32> to vector<8x1xf32>
    %298 = vector.broadcast %297 : vector<8x1xf32> to vector<8x8xf32>
    %299 = arith.subf %295, %298 : vector<8x8xf32>
    %300 = math.exp %299 : vector<8x8xf32>
    %cst_111 = arith.constant dense<0.000000e+00> : vector<8xf32>
    %301 = vector.multi_reduction <add>, %300, %cst_111 [1] : vector<8x8xf32> to vector<8xf32>
    %302 = vector.shape_cast %301 : vector<8xf32> to vector<8x1xf32>
    %303 = tpu.reciprocal %302 {approx = true} : vector<8x1xf32> -> vector<8x1xf32>
    %304 = vector.broadcast %303 : vector<8x1xf32> to vector<8x8xf32>
    %305 = arith.mulf %300, %304 : vector<8x8xf32>
    %cst_112 = arith.constant dense<0.000000e+00> : vector<8x16xf32>
    %306 = tpu.matmul %305, %290, %cst_112 {dimension_numbers = #tpu.dot_dimension_numbers<[1], [0], [0], [1], [0, 0, 1, 1], [], []>} : vector<8x8xf32>, vector<8x16xf32>, vector<8x16xf32> -> vector<8x16xf32>
    %307 = tpu.concatenate %287, %306 in 1 : vector<8x16xf32>, vector<8x16xf32> -> vector<8x32xf32>
    %308 = tpu.concatenate %264, %307 in 0 : vector<8x32xf32>, vector<8x32xf32> -> vector<16x32xf32>
    %c1_113 = arith.constant 1 : index
    %c0_114 = arith.constant 0 : index
    %c0_115 = arith.constant 0 : index
    %309 = vector.load %arg7[%c1_113, %c0_114, %c0_115] : memref<2x32x32xf32, #tpu.memory_space<vmem>>, vector<1x32x32xf32>
    %310 = vector.shape_cast %309 : vector<1x32x32xf32> to vector<32x32xf32>
    %cst_116 = arith.constant dense<0.000000e+00> : vector<16x32xf32>
    %311 = tpu.matmul %308, %310, %cst_116 {dimension_numbers = #tpu.dot_dimension_numbers<[1], [0], [0], [1], [0, 0, 1, 1], [], []>} : vector<16x32xf32>, vector<32x32xf32>, vector<16x32xf32> -> vector<16x32xf32>
    %c1_117 = arith.constant 1 : index
    %c0_118 = arith.constant 0 : index
    %c0_119 = arith.constant 0 : index
    %312 = vector.load %arg8[%c1_117, %c0_118, %c0_119] : memref<2x1x32xf32, #tpu.memory_space<vmem>>, vector<1x1x32xf32>
    %313 = vector.shape_cast %312 : vector<1x1x32xf32> to vector<1x32xf32>
    %314 = vector.broadcast %313 : vector<1x32xf32> to vector<16x32xf32>
    %315 = arith.addf %311, %314 : vector<16x32xf32>
    %316 = arith.addf %315, %214 : vector<16x32xf32>
    %c1_120 = arith.constant 1 : index
    %c0_121 = arith.constant 0 : index
    %c0_122 = arith.constant 0 : index
    %317 = vector.load %arg9[%c1_120, %c0_121, %c0_122] : memref<2x1x32xf32, #tpu.memory_space<vmem>>, vector<1x1x32xf32>
    %318 = vector.shape_cast %317 : vector<1x1x32xf32> to vector<1x32xf32>
    %c1_123 = arith.constant 1 : index
    %c0_124 = arith.constant 0 : index
    %c0_125 = arith.constant 0 : index
    %319 = vector.load %arg10[%c1_123, %c0_124, %c0_125] : memref<2x1x32xf32, #tpu.memory_space<vmem>>, vector<1x1x32xf32>
    %320 = vector.shape_cast %319 : vector<1x1x32xf32> to vector<1x32xf32>
    %cst_126 = arith.constant dense<0.000000e+00> : vector<16xf32>
    %321 = vector.multi_reduction <add>, %316, %cst_126 [1] : vector<16x32xf32> to vector<16xf32>
    %322 = vector.shape_cast %321 : vector<16xf32> to vector<16x1xf32>
    %cst_127 = arith.constant 3.200000e+01 : f32
    %323 = vector.broadcast %cst_127 : f32 to vector<16x1xf32>
    %324 = arith.divf %322, %323 : vector<16x1xf32>
    %325 = vector.broadcast %324 : vector<16x1xf32> to vector<16x32xf32>
    %326 = arith.subf %316, %325 : vector<16x32xf32>
    %327 = vector.broadcast %324 : vector<16x1xf32> to vector<16x32xf32>
    %328 = arith.subf %316, %327 : vector<16x32xf32>
    %329 = arith.mulf %326, %328 : vector<16x32xf32>
    %cst_128 = arith.constant dense<0.000000e+00> : vector<16xf32>
    %330 = vector.multi_reduction <add>, %329, %cst_128 [1] : vector<16x32xf32> to vector<16xf32>
    %331 = vector.shape_cast %330 : vector<16xf32> to vector<16x1xf32>
    %cst_129 = arith.constant 3.200000e+01 : f32
    %332 = vector.broadcast %cst_129 : f32 to vector<16x1xf32>
    %333 = arith.divf %331, %332 : vector<16x1xf32>
    %334 = vector.broadcast %324 : vector<16x1xf32> to vector<16x32xf32>
    %335 = arith.subf %316, %334 : vector<16x32xf32>
    %cst_130 = arith.constant 9.99999996E-13 : f32
    %336 = vector.broadcast %cst_130 : f32 to vector<16x1xf32>
    %337 = arith.addf %333, %336 : vector<16x1xf32>
    %338 = math.rsqrt %337 : vector<16x1xf32>
    %339 = vector.broadcast %338 : vector<16x1xf32> to vector<16x32xf32>
    %340 = arith.mulf %335, %339 : vector<16x32xf32>
    %341 = vector.broadcast %318 : vector<1x32xf32> to vector<16x32xf32>
    %342 = arith.mulf %340, %341 : vector<16x32xf32>
    %343 = vector.broadcast %320 : vector<1x32xf32> to vector<16x32xf32>
    %344 = arith.addf %342, %343 : vector<16x32xf32>
    %c1_131 = arith.constant 1 : index
    %c0_132 = arith.constant 0 : index
    %c0_133 = arith.constant 0 : index
    %345 = vector.load %arg11[%c1_131, %c0_132, %c0_133] : memref<2x32x64xf32, #tpu.memory_space<vmem>>, vector<1x32x64xf32>
    %346 = vector.shape_cast %345 : vector<1x32x64xf32> to vector<32x64xf32>
    %cst_134 = arith.constant dense<0.000000e+00> : vector<16x64xf32>
    %347 = tpu.matmul %344, %346, %cst_134 {dimension_numbers = #tpu.dot_dimension_numbers<[1], [0], [0], [1], [0, 0, 1, 1], [], []>} : vector<16x32xf32>, vector<32x64xf32>, vector<16x64xf32> -> vector<16x64xf32>
    %c1_135 = arith.constant 1 : index
    %c0_136 = arith.constant 0 : index
    %c0_137 = arith.constant 0 : index
    %348 = vector.load %arg12[%c1_135, %c0_136, %c0_137] : memref<2x1x64xf32, #tpu.memory_space<vmem>>, vector<1x1x64xf32>
    %349 = vector.shape_cast %348 : vector<1x1x64xf32> to vector<1x64xf32>
    %350 = vector.broadcast %349 : vector<1x64xf32> to vector<16x64xf32>
    %351 = arith.addf %347, %350 : vector<16x64xf32>
    %cst_138 = arith.constant 5.000000e-01 : f32
    %352 = vector.broadcast %cst_138 : f32 to vector<16x64xf32>
    %353 = arith.mulf %352, %351 : vector<16x64xf32>
    %cst_139 = arith.constant 4.471500e-02 : f32
    %354 = vector.broadcast %cst_139 : f32 to vector<16x64xf32>
    %355 = arith.mulf %354, %351 : vector<16x64xf32>
    %356 = arith.mulf %355, %351 : vector<16x64xf32>
    %357 = arith.mulf %356, %351 : vector<16x64xf32>
    %358 = arith.addf %351, %357 : vector<16x64xf32>
    %cst_140 = arith.constant 0.797884583 : f32
    %359 = vector.broadcast %cst_140 : f32 to vector<16x64xf32>
    %360 = arith.mulf %359, %358 : vector<16x64xf32>
    %361 = math.tanh %360 : vector<16x64xf32>
    %cst_141 = arith.constant 1.000000e+00 : f32
    %362 = vector.broadcast %cst_141 : f32 to vector<16x64xf32>
    %363 = arith.addf %362, %361 : vector<16x64xf32>
    %364 = arith.mulf %353, %363 : vector<16x64xf32>
    %c1_142 = arith.constant 1 : index
    %c0_143 = arith.constant 0 : index
    %c0_144 = arith.constant 0 : index
    %365 = vector.load %arg13[%c1_142, %c0_143, %c0_144] : memref<2x64x32xf32, #tpu.memory_space<vmem>>, vector<1x64x32xf32>
    %366 = vector.shape_cast %365 : vector<1x64x32xf32> to vector<64x32xf32>
    %cst_145 = arith.constant dense<0.000000e+00> : vector<16x32xf32>
    %367 = tpu.matmul %364, %366, %cst_145 {dimension_numbers = #tpu.dot_dimension_numbers<[1], [0], [0], [1], [0, 0, 1, 1], [], []>} : vector<16x64xf32>, vector<64x32xf32>, vector<16x32xf32> -> vector<16x32xf32>
    %c1_146 = arith.constant 1 : index
    %c0_147 = arith.constant 0 : index
    %c0_148 = arith.constant 0 : index
    %368 = vector.load %arg14[%c1_146, %c0_147, %c0_148] : memref<2x1x32xf32, #tpu.memory_space<vmem>>, vector<1x1x32xf32>
    %369 = vector.shape_cast %368 : vector<1x1x32xf32> to vector<1x32xf32>
    %370 = vector.broadcast %369 : vector<1x32xf32> to vector<16x32xf32>
    %371 = arith.addf %367, %370 : vector<16x32xf32>
    %372 = arith.addf %371, %344 : vector<16x32xf32>
    %c1_149 = arith.constant 1 : index
    %c0_150 = arith.constant 0 : index
    %c0_151 = arith.constant 0 : index
    %373 = vector.load %arg15[%c1_149, %c0_150, %c0_151] : memref<2x1x32xf32, #tpu.memory_space<vmem>>, vector<1x1x32xf32>
    %374 = vector.shape_cast %373 : vector<1x1x32xf32> to vector<1x32xf32>
    %c1_152 = arith.constant 1 : index
    %c0_153 = arith.constant 0 : index
    %c0_154 = arith.constant 0 : index
    %375 = vector.load %arg16[%c1_152, %c0_153, %c0_154] : memref<2x1x32xf32, #tpu.memory_space<vmem>>, vector<1x1x32xf32>
    %376 = vector.shape_cast %375 : vector<1x1x32xf32> to vector<1x32xf32>
    %cst_155 = arith.constant dense<0.000000e+00> : vector<16xf32>
    %377 = vector.multi_reduction <add>, %372, %cst_155 [1] : vector<16x32xf32> to vector<16xf32>
    %378 = vector.shape_cast %377 : vector<16xf32> to vector<16x1xf32>
    %cst_156 = arith.constant 3.200000e+01 : f32
    %379 = vector.broadcast %cst_156 : f32 to vector<16x1xf32>
    %380 = arith.divf %378, %379 : vector<16x1xf32>
    %381 = vector.broadcast %380 : vector<16x1xf32> to vector<16x32xf32>
    %382 = arith.subf %372, %381 : vector<16x32xf32>
    %383 = vector.broadcast %380 : vector<16x1xf32> to vector<16x32xf32>
    %384 = arith.subf %372, %383 : vector<16x32xf32>
    %385 = arith.mulf %382, %384 : vector<16x32xf32>
    %cst_157 = arith.constant dense<0.000000e+00> : vector<16xf32>
    %386 = vector.multi_reduction <add>, %385, %cst_157 [1] : vector<16x32xf32> to vector<16xf32>
    %387 = vector.shape_cast %386 : vector<16xf32> to vector<16x1xf32>
    %cst_158 = arith.constant 3.200000e+01 : f32
    %388 = vector.broadcast %cst_158 : f32 to vector<16x1xf32>
    %389 = arith.divf %387, %388 : vector<16x1xf32>
    %390 = vector.broadcast %380 : vector<16x1xf32> to vector<16x32xf32>
    %391 = arith.subf %372, %390 : vector<16x32xf32>
    %cst_159 = arith.constant 9.99999996E-13 : f32
    %392 = vector.broadcast %cst_159 : f32 to vector<16x1xf32>
    %393 = arith.addf %389, %392 : vector<16x1xf32>
    %394 = math.rsqrt %393 : vector<16x1xf32>
    %395 = vector.broadcast %394 : vector<16x1xf32> to vector<16x32xf32>
    %396 = arith.mulf %391, %395 : vector<16x32xf32>
    %397 = vector.broadcast %374 : vector<1x32xf32> to vector<16x32xf32>
    %398 = arith.mulf %396, %397 : vector<16x32xf32>
    %399 = vector.broadcast %376 : vector<1x32xf32> to vector<16x32xf32>
    %400 = arith.addf %398, %399 : vector<16x32xf32>
    %401 = vector.extract_strided_slice %1 {offsets = [0, 0], sizes = [1, 8], strides = [1, 1]} : vector<2x8xf32> to vector<1x8xf32>
    %402 = vector.extract_strided_slice %400 {offsets = [0, 0], sizes = [8, 32], strides = [1, 1]} : vector<16x32xf32> to vector<8x32xf32>
    %cst_160 = arith.constant dense<0.000000e+00> : vector<1x32xf32>
    %403 = tpu.matmul %401, %402, %cst_160 {dimension_numbers = #tpu.dot_dimension_numbers<[1], [0], [0], [1], [0, 0, 1, 1], [], []>} : vector<1x8xf32>, vector<8x32xf32>, vector<1x32xf32> -> vector<1x32xf32>
    %cst_161 = arith.constant dense<0.000000e+00> : vector<1xf32>
    %404 = vector.multi_reduction <add>, %401, %cst_161 [1] : vector<1x8xf32> to vector<1xf32>
    %405 = vector.shape_cast %404 : vector<1xf32> to vector<1x1xf32>
    %406 = vector.broadcast %405 : vector<1x1xf32> to vector<1x32xf32>
    %407 = arith.divf %403, %406 : vector<1x32xf32>
    %408 = vector.extract_strided_slice %1 {offsets = [1, 0], sizes = [1, 8], strides = [1, 1]} : vector<2x8xf32> to vector<1x8xf32>
    %409 = vector.extract_strided_slice %400 {offsets = [8, 0], sizes = [8, 32], strides = [1, 1]} : vector<16x32xf32> to vector<8x32xf32>
    %cst_162 = arith.constant dense<0.000000e+00> : vector<1x32xf32>
    %410 = tpu.matmul %408, %409, %cst_162 {dimension_numbers = #tpu.dot_dimension_numbers<[1], [0], [0], [1], [0, 0, 1, 1], [], []>} : vector<1x8xf32>, vector<8x32xf32>, vector<1x32xf32> -> vector<1x32xf32>
    %cst_163 = arith.constant dense<0.000000e+00> : vector<1xf32>
    %411 = vector.multi_reduction <add>, %408, %cst_163 [1] : vector<1x8xf32> to vector<1xf32>
    %412 = vector.shape_cast %411 : vector<1xf32> to vector<1x1xf32>
    %413 = vector.broadcast %412 : vector<1x1xf32> to vector<1x32xf32>
    %414 = arith.divf %410, %413 : vector<1x32xf32>
    %415 = tpu.concatenate %407, %414 in 0 : vector<1x32xf32>, vector<1x32xf32> -> vector<2x32xf32>
    %c0_164 = arith.constant 0 : index
    %c0_165 = arith.constant 0 : index
    %416 = vector.load %arg17[%c0_164, %c0_165] : memref<2x32xf32, #tpu.memory_space<vmem>>, vector<2x32xf32>
    tpu.vector_store %arg17[%c0_164, %c0_165], %415 {strides = array<i32>} : memref<2x32xf32, #tpu.memory_space<vmem>>, vector<2x32xf32>,
    return
  }
}

</mosaic_0001>

<llo_original>
// kernel: sr_title_embed_forward.1
$region0: #{sr_title_embed_forward.1}
  #allocation0 [shape = 'u32[]', space=smem, size = 0x4, offset = 0x4, fixed_abs, tag = 'smem constant byte address 0x4 - core index']
  #allocation1 [shape = 'u32[144,128]{1,0:T(1,128)}', space=vmem, size = 0x12000, scoped, tag = 'internal scratch']
  %s0 = inlined_call_operand.vmem [shape: f32[16,32], index: 0, kind: input, shape index: {}]
  %s1 = inlined_call_operand.vmem [shape: f32[2,8], index: 1, kind: input, shape index: {}]
  %s2 = inlined_call_operand.vmem [shape: f32[2,8], index: 2, kind: input, shape index: {}]
  %s3 = inlined_call_operand.vmem [shape: f32[1,32], index: 3, kind: input, shape index: {}]
  %s4 = inlined_call_operand.vmem [shape: f32[1,32], index: 4, kind: input, shape index: {}]
  %s5 = inlined_call_operand.vmem [shape: f32[2,32,96], index: 5, kind: input, shape index: {}]
  %s6 = inlined_call_operand.vmem [shape: f32[2,1,96], index: 6, kind: input, shape index: {}]
  %s7 = inlined_call_operand.vmem [shape: f32[2,32,32], index: 7, kind: input, shape index: {}]
  %s8 = inlined_call_operand.vmem [shape: f32[2,1,32], index: 8, kind: input, shape index: {}]
  %s9 = inlined_call_operand.vmem [shape: f32[2,1,32], index: 9, kind: input, shape index: {}]
  %s10 = inlined_call_operand.vmem [shape: f32[2,1,32], index: 10, kind: input, shape index: {}]
  %s11 = inlined_call_operand.vmem [shape: f32[2,32,64], index: 11, kind: input, shape index: {}]
  %s12 = inlined_call_operand.vmem [shape: f32[2,1,64], index: 12, kind: input, shape index: {}]
  %s13 = inlined_call_operand.vmem [shape: f32[2,64,32], index: 13, kind: input, shape index: {}]
  %s14 = inlined_call_operand.vmem [shape: f32[2,1,32], index: 14, kind: input, shape index: {}]
  %s15 = inlined_call_operand.vmem [shape: f32[2,1,32], index: 15, kind: input, shape index: {}]
  %s16 = inlined_call_operand.vmem [shape: f32[2,1,32], index: 16, kind: input, shape index: {}]
  %s17 = inlined_call_operand.hbm [shape: f32[2,32], index: 17, kind: output, shape index: {}]
  %s18 = sld [smem:[#allocation0]]
  $region78: #{sr_title_embed_forward.1} parent=0
    _
  %s20 = ssub.s32 1, %s18
  %s21 = scalar_select 0, %s20, %s18
  $region1: #{sr_title_embed_forward.1} parent=0
    #allocation2 [shape = 'u8[1024]{0}', space=vmem, size = 0x400, scoped, tag = 'output window, operand 0, single buffered']
    #allocation3 [shape = 's32[1]{0}', space=sflag, size = 0x4, scoped, tag = 'scoped memory for sr_title_embed_forward.1']
    %22 = vsyncpa [#allocation3], 0
    // Predicated region
    $region2: #{sr_title_embed_forward.1} parent=1 // pred_check
      _
    $region3: #{sr_title_embed_forward.1} parent=1 // pred_check_branch
      %24 = sbr.rel (0) target = $region5
    $region4: #{sr_title_embed_forward.1} parent=1 // pred_region
      _
    $region5: #{sr_title_embed_forward.1} parent=1 // pred_fallthru
      _
    // Predicated region
    $region6: #{sr_title_embed_forward.1} parent=1 // pred_check
      _
    $region7: #{sr_title_embed_forward.1} parent=1 // pred_check_branch
      %26 = sbr.rel (0) target = $region9
    $region8: #{sr_title_embed_forward.1} parent=1 // pred_region
      _
    $region9: #{sr_title_embed_forward.1} parent=1 // pred_fallthru
      _
    // Predicated region
    $region10: #{sr_title_embed_forward.1} parent=1 // pred_check
      _
    $region11: #{sr_title_embed_forward.1} parent=1 // pred_check_branch
      %28 = sbr.rel (0) target = $region13
    $region12: #{sr_title_embed_forward.1} parent=1 // pred_region
      _
    $region13: #{sr_title_embed_forward.1} parent=1 // pred_fallthru
      _
    // Predicated region
    $region14: #{sr_title_embed_forward.1} parent=1 // pred_check
      _
    $region15: #{sr_title_embed_forward.1} parent=1 // pred_check_branch
      %30 = sbr.rel (0) target = $region17
    $region16: #{sr_title_embed_forward.1} parent=1 // pred_region
      _
    $region17: #{sr_title_embed_forward.1} parent=1 // pred_fallthru
      _
    // Predicated region
    $region18: #{sr_title_embed_forward.1} parent=1 // pred_check
      _
    $region19: #{sr_title_embed_forward.1} parent=1 // pred_check_branch
      %32 = sbr.rel (0) target = $region21
    $region20: #{sr_title_embed_forward.1} parent=1 // pred_region
      _
    $region21: #{sr_title_embed_forward.1} parent=1 // pred_fallthru
      _
    // Predicated region
    $region22: #{sr_title_embed_forward.1} parent=1 // pred_check
      _
    $region23: #{sr_title_embed_forward.1} parent=1 // pred_check_branch
      %34 = sbr.rel (0) target = $region25
    $region24: #{sr_title_embed_forward.1} parent=1 // pred_region
      _
    $region25: #{sr_title_embed_forward.1} parent=1 // pred_fallthru
      _
    // Predicated region
    $region26: #{sr_title_embed_forward.1} parent=1 // pred_check
      _
    $region27: #{sr_title_embed_forward.1} parent=1 // pred_check_branch
      %36 = sbr.rel (0) target = $region29
    $region28: #{sr_title_embed_forward.1} parent=1 // pred_region
      _
    $region29: #{sr_title_embed_forward.1} parent=1 // pred_fallthru
      _
    // Predicated region
    $region30: #{sr_title_embed_forward.1} parent=1 // pred_check
      _
    $region31: #{sr_title_embed_forward.1} parent=1 // pred_check_branch
      %38 = sbr.rel (0) target = $region33
    $region32: #{sr_title_embed_forward.1} parent=1 // pred_region
      _
    $region33: #{sr_title_embed_forward.1} parent=1 // pred_fallthru
      _
    // Predicated region
    $region34: #{sr_title_embed_forward.1} parent=1 // pred_check
      _
    $region35: #{sr_title_embed_forward.1} parent=1 // pred_check_branch
      %40 = sbr.rel (0) target = $region37
    $region36: #{sr_title_embed_forward.1} parent=1 // pred_region
      _
    $region37: #{sr_title_embed_forward.1} parent=1 // pred_fallthru
      _
    // Predicated region
    $region38: #{sr_title_embed_forward.1} parent=1 // pred_check
      _
    $region39: #{sr_title_embed_forward.1} parent=1 // pred_check_branch
      %42 = sbr.rel (0) target = $region41
    $region40: #{sr_title_embed_forward.1} parent=1 // pred_region
      _
    $region41: #{sr_title_embed_forward.1} parent=1 // pred_fallthru
      _
    // Predicated region
    $region42: #{sr_title_embed_forward.1} parent=1 // pred_check
      _
    $region43: #{sr_title_embed_forward.1} parent=1 // pred_check_branch
      %44 = sbr.rel (0) target = $region45
    $region44: #{sr_title_embed_forward.1} parent=1 // pred_region
      _
    $region45: #{sr_title_embed_forward.1} parent=1 // pred_fallthru
      _
    // Predicated region
    $region46: #{sr_title_embed_forward.1} parent=1 // pred_check
      _
    $region47: #{sr_title_embed_forward.1} parent=1 // pred_check_branch
      %46 = sbr.rel (0) target = $region49
    $region48: #{sr_title_embed_forward.1} parent=1 // pred_region
      _
    $region49: #{sr_title_embed_forward.1} parent=1 // pred_fallthru
      _
    // Predicated region
    $region50: #{sr_title_embed_forward.1} parent=1 // pred_check
      _
    $region51: #{sr_title_embed_forward.1} parent=1 // pred_check_branch
      %48 = sbr.rel (0) target = $region53
    $region52: #{sr_title_embed_forward.1} parent=1 // pred_region
      _
    $region53: #{sr_title_embed_forward.1} parent=1 // pred_fallthru
      _
    // Predicated region
    $region54: #{sr_title_embed_forward.1} parent=1 // pred_check
      _
    $region55: #{sr_title_embed_forward.1} parent=1 // pred_check_branch
      %50 = sbr.rel (0) target = $region57
    $region56: #{sr_title_embed_forward.1} parent=1 // pred_region
      _
    $region57: #{sr_title_embed_forward.1} parent=1 // pred_fallthru
      _
    // Predicated region
    $region58: #{sr_title_embed_forward.1} parent=1 // pred_check
      _
    $region59: #{sr_title_embed_forward.1} parent=1 // pred_check_branch
      %52 = sbr.rel (0) target = $region61
    $region60: #{sr_title_embed_forward.1} parent=1 // pred_region
      _
    $region61: #{sr_title_embed_forward.1} parent=1 // pred_fallthru
      _
    // Predicated region
    $region62: #{sr_title_embed_forward.1} parent=1 // pred_check
      _
    $region63: #{sr_title_embed_forward.1} parent=1 // pred_check_branch
      %54 = sbr.rel (0) target = $region65
    $region64: #{sr_title_embed_forward.1} parent=1 // pred_region
      _
    $region65: #{sr_title_embed_forward.1} parent=1 // pred_fallthru
      _
    // Predicated region
    $region66: #{sr_title_embed_forward.1} parent=1 // pred_check
      _
    $region67: #{sr_title_embed_forward.1} parent=1 // pred_check_branch
      %56 = sbr.rel (0) target = $region69
    $region68: #{sr_title_embed_forward.1} parent=1 // pred_region
      _
    $region69: #{sr_title_embed_forward.1} parent=1 // pred_fallthru
      _
    %v57 = vld [vmem:[%s1] sm:$0x3]
    %v58 = vld [vmem:[%s2] sm:$0x3]
    %v59 = vld [vmem:[%s0] sm:$0xff]
    %v60 = vld [vmem:[%s0 + $0x8] sm:$0xff]
    %v61 = vld [vmem:[%s3] sm:$0x1]
    %v62 = vld [vmem:[%s4] sm:$0x1]
    %vm63 = vcmask 261120
    %v64 = vsel %vm63, %v59, 0.0
    %65 = vadd.xlane.f32.xlu0 %v64
    %v66 = vpop.xlane.xlu0 %65
    %v67 = vsel %vm63, %v60, 0.0
    %68 = vadd.xlane.f32.xlu0 %v67
    %v69 = vpop.xlane.xlu0 %68
    %v70 = vrcp.pop 32.0
    %v71 = vmul.f32 %v66, %v70
    %v72 = vmul.f32 %v69, %v70
    %v73 = vsub.f32 %v59, %v71
    %v74 = vsub.f32 %v60, %v72
    %v75 = vmul.f32 %v73, %v73
    %v76 = vmul.f32 %v74, %v74
    %v77 = vsel %vm63, %v75, 0.0
    %78 = vadd.xlane.f32.xlu0 %v77
    %v79 = vpop.xlane.xlu0 %78
    %v80 = vsel %vm63, %v76, 0.0
    %81 = vadd.xlane.f32.xlu0 %v80
    %v82 = vpop.xlane.xlu0 %81
    %v83 = vmul.f32 %v79, %v70
    %v84 = vmul.f32 %v82, %v70
    %v85 = vadd.f32 %v83, 1e-12
    %v86 = vadd.f32 %v84, 1e-12
    %v87 = vrsqrt.pop %v85
    %v88 = vrsqrt.pop %v86
    %v89 = vmul.f32 %v73, %v87
    %v90 = vmul.f32 %v74, %v88
    %v92 = vlaneseq
    %v93 = vshrl.u32 %v92, 7
    %v94 = vsub.s32 0, %v93
    %v95 = vrot.slane %v61, %v94
    %v97 = vmul.f32 %v89, %v95
    %v98 = vmul.f32 %v90, %v95
    %v100 = vlaneseq
    %v101 = vshrl.u32 %v100, 7
    %v102 = vsub.s32 0, %v101
    %v103 = vrot.slane %v62, %v102
    %v105 = vadd.f32 %v97, %v103
    %v106 = vadd.f32 %v98, %v103
    %v107 = vld [vmem:[%s5] sm:$0xff]
    %v108 = vld [vmem:[%s5 + $0x8] sm:$0xff]
    %v109 = vld [vmem:[%s5 + $0x10] sm:$0xff]
    %v110 = vld [vmem:[%s5 + $0x18] sm:$0xff]
    %v111 = vld [vmem:[%s6] sm:$0x1]
    %v113 = vlaneseq
    %v114 = vshrl.u32 %v113, 7
    %v115 = vsub.s32 0, %v114
    %v116 = vrot.slane %v111, %v115
    %v119 = vsel %vm63, %v105, 0
    %v122 = vsel %vm63, %v106, 0
    %124 = vmatprep.subr.mxu0 0.0
    %125 = vmatpush1.msra.mxu0 %v107
    %126 = vmatprep.subr.mxu0 0.0
    %127 = vmatpush1.msra.mxu0 %v108
    %128 = vmatprep.subr.mxu0 0.0
    %129 = vmatpush1.msra.mxu0 %v109
    %130 = vmatprep.subr.mxu0 0.0
    %131 = vmatpush1.msra.mxu0 %v110
    %132 = vmatprep.subr.mxu0 0.0
    %133 = vmatpush1.msra.mxu0 0.0
    %134 = vmatprep.subr.mxu0 0.0
    %135 = vmatpush1.msra.mxu0 0.0
    %136 = vmatprep.subr.mxu0 0.0
    %137 = vmatpush1.msra.mxu0 0.0
    %138 = vmatprep.subr.mxu0 0.0
    %139 = vmatpush1.msra.mxu0 0.0
    %140 = vmatprep.subr.mxu0 0.0
    %141 = vmatpush1.msra.mxu0 0.0
    %142 = vmatprep.subr.mxu0 0.0
    %143 = vmatpush1.msra.mxu0 0.0
    %144 = vmatprep.subr.mxu0 0.0
    %145 = vmatpush1.msra.mxu0 0.0
    %146 = vmatprep.subr.mxu0 0.0
    %147 = vmatpush1.msra.mxu0 0.0
    %148 = vmatprep.subr.mxu0 0.0
    %149 = vmatpush1.msra.mxu0 0.0
    %150 = vmatprep.subr.mxu0 0.0
    %151 = vmatpush1.msra.mxu0 0.0
    %152 = vmatprep.subr.mxu0 0.0
    %153 = vmatpush1.msra.mxu0 0.0
    %154 = vmatprep.subr.mxu0 0.0
    %155 = vmatpush1.msra.mxu0 0.0
    %156 = vmatprep.subr.mxu0 0.0
    %157 = vmatpush1.msra.mxu0 0.0
    %158 = vmatprep.subr.mxu0 0.0
    %159 = vmatpush1.msra.mxu0 0.0
    %160 = vmatprep.subr.mxu0 0.0
    %161 = vmatpush1.msra.mxu0 0.0
    %162 = vmatprep.subr.mxu0 0.0
    %163 = vmatpush1.msra.mxu0 0.0
    %164 = vmatprep.subr.mxu0 0.0
    %165 = vmatpush1.msra.mxu0 0.0
    %166 = vmatprep.subr.mxu0 0.0
    %167 = vmatpush1.msra.mxu0 0.0
    %168 = vmatprep.subr.mxu0 0.0
    %169 = vmatpush1.msra.mxu0 0.0
    %170 = vmatprep.subr.mxu0 0.0
    %171 = vmatpush1.msra.mxu0 0.0
    %172 = vmatprep.subr.mxu0 0.0
    %173 = vmatpush1.msra.mxu0 0.0
    %174 = vmatprep.subr.mxu0 0.0
    %175 = vmatpush1.msra.mxu0 0.0
    %176 = vmatprep.subr.mxu0 0.0
    %177 = vmatpush1.msra.mxu0 0.0
    %178 = vmatprep.subr.mxu0 0.0
    %179 = vmatpush1.msra.mxu0 0.0
    %180 = vmatprep.subr.mxu0 0.0
    %181 = vmatpush1.msra.mxu0 0.0
    %182 = vmatprep.subr.mxu0 0.0
    %183 = vmatpush1.msra.mxu0 0.0
    %184 = vmatprep.subr.mxu0 0.0
    %185 = vmatpush1.msra.mxu0 0.0
    %186 = vmatprep.subr.mxu0 0.0
    %187 = vmatpush1.msra.mxu0 0.0
    %188 = vmatprep.mubr.f32.mxu0 0.0
    %189 = vmatmul.mubr.f32.gmra.mrb[0].mxu0 %v119
    %v190 = vpop.f32.mrb[0].mxu0
    %v191 = vadd.f32 %v116, %v190
    %v192 = vpop.f32.mrb[0].mxu0
    %193 = vmatprep.mubr.f32.mxu0 0.0
    %194 = vmatmul.mubr.f32.gmra.mrb[0].mxu0 %v122
    %v195 = vpop.f32.mrb[0].mxu0
    %v196 = vadd.f32 %v116, %v195
    %v197 = vpop.f32.mrb[0].mxu0
    %198 = vdwg.mxu0
    %200 = vrot.lane.b32.xlu0 %v191, 96
    %v201 = vpop.permute.xlu0 %200
    %vm202 = vcmask 130048
    %v203 = vsel %vm202, %v191, 0
    %v205 = vsel %vm202, %v201, 0
    %207 = vmatprep.subr.mxu0 0.0
    %208 = vmatpush1.xpose.msra.mxu0 %v205
    %209 = vmatprep.subr.mxu0 0.0
    %210 = vmatpush1.xpose.msra.mxu0 0.0
    %211 = vmatprep.subr.mxu0 0.0
    %212 = vmatpush1.xpose.msra.mxu0 0.0
    %213 = vmatprep.subr.mxu0 0.0
    %214 = vmatpush1.xpose.msra.mxu0 0.0
    %215 = vmatprep.subr.mxu0 0.0
    %216 = vmatpush1.xpose.msra.mxu0 0.0
    %217 = vmatprep.subr.mxu0 0.0
    %218 = vmatpush1.xpose.msra.mxu0 0.0
    %219 = vmatprep.subr.mxu0 0.0
    %220 = vmatpush1.xpose.msra.mxu0 0.0
    %221 = vmatprep.subr.mxu0 0.0
    %222 = vmatpush1.xpose.msra.mxu0 0.0
    %223 = vmatprep.subr.mxu0 0.0
    %224 = vmatpush1.xpose.msra.mxu0 0.0
    %225 = vmatprep.subr.mxu0 0.0
    %226 = vmatpush1.xpose.msra.mxu0 0.0
    %227 = vmatprep.subr.mxu0 0.0
    %228 = vmatpush1.xpose.msra.mxu0 0.0
    %229 = vmatprep.subr.mxu0 0.0
    %230 = vmatpush1.xpose.msra.mxu0 0.0
    %231 = vmatprep.subr.mxu0 0.0
    %232 = vmatpush1.xpose.msra.mxu0 0.0
    %233 = vmatprep.subr.mxu0 0.0
    %234 = vmatpush1.xpose.msra.mxu0 0.0
    %235 = vmatprep.subr.mxu0 0.0
    %236 = vmatpush1.xpose.msra.mxu0 0.0
    %237 = vmatprep.subr.mxu0 0.0
    %238 = vmatpush1.xpose.msra.mxu0 0.0
    %239 = vmatprep.subr.mxu0 0.0
    %240 = vmatpush1.xpose.msra.mxu0 0.0
    %241 = vmatprep.subr.mxu0 0.0
    %242 = vmatpush1.xpose.msra.mxu0 0.0
    %243 = vmatprep.subr.mxu0 0.0
    %244 = vmatpush1.xpose.msra.mxu0 0.0
    %245 = vmatprep.subr.mxu0 0.0
    %246 = vmatpush1.xpose.msra.mxu0 0.0
    %247 = vmatprep.subr.mxu0 0.0
    %248 = vmatpush1.xpose.msra.mxu0 0.0
    %249 = vmatprep.subr.mxu0 0.0
    %250 = vmatpush1.xpose.msra.mxu0 0.0
    %251 = vmatprep.subr.mxu0 0.0
    %252 = vmatpush1.xpose.msra.mxu0 0.0
    %253 = vmatprep.subr.mxu0 0.0
    %254 = vmatpush1.xpose.msra.mxu0 0.0
    %255 = vmatprep.subr.mxu0 0.0
    %256 = vmatpush1.xpose.msra.mxu0 0.0
    %257 = vmatprep.subr.mxu0 0.0
    %258 = vmatpush1.xpose.msra.mxu0 0.0
    %259 = vmatprep.subr.mxu0 0.0
    %260 = vmatpush1.xpose.msra.mxu0 0.0
    %261 = vmatprep.subr.mxu0 0.0
    %262 = vmatpush1.xpose.msra.mxu0 0.0
    %263 = vmatprep.subr.mxu0 0.0
    %264 = vmatpush1.xpose.msra.mxu0 0.0
    %265 = vmatprep.subr.mxu0 0.0
    %266 = vmatpush1.xpose.msra.mxu0 0.0
    %267 = vmatprep.subr.mxu0 0.0
    %268 = vmatpush1.xpose.msra.mxu0 0.0
    %269 = vmatprep.subr.mxu0 0.0
    %270 = vmatpush1.xpose.msra.mxu0 0.0
    %271 = vmatprep.mubr.f32.mxu0 0.0
    %272 = vmatmul.mubr.f32.gmra.mrb[0].mxu0 %v203
    %v273 = vpop.f32.mrb[0].mxu0
    %v274 = vadd.f32 0.0, %v273
    %v275 = vpop.f32.mrb[0].mxu0
    %276 = vdwg.mxu0
    %v277 = vmul.f32 %v274, 0.25
    %v278 = vlaneseq
    %v279 = vshrl.u32 %v278, 7
    %v280 = vsub.s32 0, %v279
    %v281 = vrot.slane %v57, %v280
    %v282 = vadd.f32 %v277, %v281
    %vm283 = vcmask 64512
    %v284 = vsel %vm283, %v282, -inf
    %285 = vmax.xlane.f32.xlu0 %v284
    %v286 = vpop.xlane.xlu0 %285
    %v287 = vsub.f32 %v282, %v286
    %v288 = vmul.f32 %v287, 1.442695
    %v289 = vpow.pop %v288
    %v290 = vsel %vm283, %v289, 0.0
    %291 = vadd.xlane.f32.xlu0 %v290
    %v292 = vpop.xlane.xlu0 %291
    %v293 = vrcp.pop %v292
    %v294 = vmul.f32 %v289, %v293
    %295 = vrot.lane.b32.xlu0 %v191, 64
    %v296 = vpop.permute.xlu0 %295
    %v299 = vsel %vm283, %v294, 0
    %301 = vmatprep.subr.mxu0 0.0
    %302 = vmatpush1.msra.mxu0 %v296
    %303 = vmatprep.subr.mxu0 0.0
    %304 = vmatpush1.msra.mxu0 0.0
    %305 = vmatprep.subr.mxu0 0.0
    %306 = vmatpush1.msra.mxu0 0.0
    %307 = vmatprep.subr.mxu0 0.0
    %308 = vmatpush1.msra.mxu0 0.0
    %309 = vmatprep.subr.mxu0 0.0
    %310 = vmatpush1.msra.mxu0 0.0
    %311 = vmatprep.subr.mxu0 0.0
    %312 = vmatpush1.msra.mxu0 0.0
    %313 = vmatprep.subr.mxu0 0.0
    %314 = vmatpush1.msra.mxu0 0.0
    %315 = vmatprep.subr.mxu0 0.0
    %316 = vmatpush1.msra.mxu0 0.0
    %317 = vmatprep.subr.mxu0 0.0
    %318 = vmatpush1.msra.mxu0 0.0
    %319 = vmatprep.subr.mxu0 0.0
    %320 = vmatpush1.msra.mxu0 0.0
    %321 = vmatprep.subr.mxu0 0.0
    %322 = vmatpush1.msra.mxu0 0.0
    %323 = vmatprep.subr.mxu0 0.0
    %324 = vmatpush1.msra.mxu0 0.0
    %325 = vmatprep.subr.mxu0 0.0
    %326 = vmatpush1.msra.mxu0 0.0
    %327 = vmatprep.subr.mxu0 0.0
    %328 = vmatpush1.msra.mxu0 0.0
    %329 = vmatprep.subr.mxu0 0.0
    %330 = vmatpush1.msra.mxu0 0.0
    %331 = vmatprep.subr.mxu0 0.0
    %332 = vmatpush1.msra.mxu0 0.0
    %333 = vmatprep.subr.mxu0 0.0
    %334 = vmatpush1.msra.mxu0 0.0
    %335 = vmatprep.subr.mxu0 0.0
    %336 = vmatpush1.msra.mxu0 0.0
    %337 = vmatprep.subr.mxu0 0.0
    %338 = vmatpush1.msra.mxu0 0.0
    %339 = vmatprep.subr.mxu0 0.0
    %340 = vmatpush1.msra.mxu0 0.0
    %341 = vmatprep.subr.mxu0 0.0
    %342 = vmatpush1.msra.mxu0 0.0
    %343 = vmatprep.subr.mxu0 0.0
    %344 = vmatpush1.msra.mxu0 0.0
    %345 = vmatprep.subr.mxu0 0.0
    %346 = vmatpush1.msra.mxu0 0.0
    %347 = vmatprep.subr.mxu0 0.0
    %348 = vmatpush1.msra.mxu0 0.0
    %349 = vmatprep.subr.mxu0 0.0
    %350 = vmatpush1.msra.mxu0 0.0
    %351 = vmatprep.subr.mxu0 0.0
    %352 = vmatpush1.msra.mxu0 0.0
    %353 = vmatprep.subr.mxu0 0.0
    %354 = vmatpush1.msra.mxu0 0.0
    %355 = vmatprep.subr.mxu0 0.0
    %356 = vmatpush1.msra.mxu0 0.0
    %357 = vmatprep.subr.mxu0 0.0
    %358 = vmatpush1.msra.mxu0 0.0
    %359 = vmatprep.subr.mxu0 0.0
    %360 = vmatpush1.msra.mxu0 0.0
    %361 = vmatprep.subr.mxu0 0.0
    %362 = vmatpush1.msra.mxu0 0.0
    %363 = vmatprep.subr.mxu0 0.0
    %364 = vmatpush1.msra.mxu0 0.0
    %365 = vmatprep.mubr.f32.mxu0 0.0
    %366 = vmatmul.mubr.f32.gmra.mrb[0].mxu0 %v299
    %v367 = vpop.f32.mrb[0].mxu0
    %v368 = vadd.f32 0.0, %v367
    %v369 = vpop.f32.mrb[0].mxu0
    %370 = vdwg.mxu0
    %371 = vrot.lane.b32.xlu0 %v191, 112
    %v372 = vpop.permute.xlu0 %371
    %373 = vrot.lane.b32.xlu0 %v191, 80
    %v374 = vpop.permute.xlu0 %373
    %v375 = vsel %vm202, %v372, 0
    %v377 = vsel %vm202, %v374, 0
    %379 = vmatprep.subr.mxu0 0.0
    %380 = vmatpush1.xpose.msra.mxu0 %v377
    %381 = vmatprep.subr.mxu0 0.0
    %382 = vmatpush1.xpose.msra.mxu0 0.0
    %383 = vmatprep.subr.mxu0 0.0
    %384 = vmatpush1.xpose.msra.mxu0 0.0
    %385 = vmatprep.subr.mxu0 0.0
    %386 = vmatpush1.xpose.msra.mxu0 0.0
    %387 = vmatprep.subr.mxu0 0.0
    %388 = vmatpush1.xpose.msra.mxu0 0.0
    %389 = vmatprep.subr.mxu0 0.0
    %390 = vmatpush1.xpose.msra.mxu0 0.0
    %391 = vmatprep.subr.mxu0 0.0
    %392 = vmatpush1.xpose.msra.mxu0 0.0
    %393 = vmatprep.subr.mxu0 0.0
    %394 = vmatpush1.xpose.msra.mxu0 0.0
    %395 = vmatprep.subr.mxu0 0.0
    %396 = vmatpush1.xpose.msra.mxu0 0.0
    %397 = vmatprep.subr.mxu0 0.0
    %398 = vmatpush1.xpose.msra.mxu0 0.0
    %399 = vmatprep.subr.mxu0 0.0
    %400 = vmatpush1.xpose.msra.mxu0 0.0
    %401 = vmatprep.subr.mxu0 0.0
    %402 = vmatpush1.xpose.msra.mxu0 0.0
    %403 = vmatprep.subr.mxu0 0.0
    %404 = vmatpush1.xpose.msra.mxu0 0.0
    %405 = vmatprep.subr.mxu0 0.0
    %406 = vmatpush1.xpose.msra.mxu0 0.0
    %407 = vmatprep.subr.mxu0 0.0
    %408 = vmatpush1.xpose.msra.mxu0 0.0
    %409 = vmatprep.subr.mxu0 0.0
    %410 = vmatpush1.xpose.msra.mxu0 0.0
    %411 = vmatprep.subr.mxu0 0.0
    %412 = vmatpush1.xpose.msra.mxu0 0.0
    %413 = vmatprep.subr.mxu0 0.0
    %414 = vmatpush1.xpose.msra.mxu0 0.0
    %415 = vmatprep.subr.mxu0 0.0
    %416 = vmatpush1.xpose.msra.mxu0 0.0
    %417 = vmatprep.subr.mxu0 0.0
    %418 = vmatpush1.xpose.msra.mxu0 0.0
    %419 = vmatprep.subr.mxu0 0.0
    %420 = vmatpush1.xpose.msra.mxu0 0.0
    %421 = vmatprep.subr.mxu0 0.0
    %422 = vmatpush1.xpose.msra.mxu0 0.0
    %423 = vmatprep.subr.mxu0 0.0
    %424 = vmatpush1.xpose.msra.mxu0 0.0
    %425 = vmatprep.subr.mxu0 0.0
    %426 = vmatpush1.xpose.msra.mxu0 0.0
    %427 = vmatprep.subr.mxu0 0.0
    %428 = vmatpush1.xpose.msra.mxu0 0.0
    %429 = vmatprep.subr.mxu0 0.0
    %430 = vmatpush1.xpose.msra.mxu0 0.0
    %431 = vmatprep.subr.mxu0 0.0
    %432 = vmatpush1.xpose.msra.mxu0 0.0
    %433 = vmatprep.subr.mxu0 0.0
    %434 = vmatpush1.xpose.msra.mxu0 0.0
    %435 = vmatprep.subr.mxu0 0.0
    %436 = vmatpush1.xpose.msra.mxu0 0.0
    %437 = vmatprep.subr.mxu0 0.0
    %438 = vmatpush1.xpose.msra.mxu0 0.0
    %439 = vmatprep.subr.mxu0 0.0
    %440 = vmatpush1.xpose.msra.mxu0 0.0
    %441 = vmatprep.subr.mxu0 0.0
    %442 = vmatpush1.xpose.msra.mxu0 0.0
    %443 = vmatprep.mubr.f32.mxu0 0.0
    %444 = vmatmul.mubr.f32.gmra.mrb[0].mxu0 %v375
    %v445 = vpop.f32.mrb[0].mxu0
    %v446 = vadd.f32 0.0, %v445
    %v447 = vpop.f32.mrb[0].mxu0
    %448 = vdwg.mxu0
    %v449 = vmul.f32 %v446, 0.25
    %v450 = vadd.f32 %v449, %v281
    %v451 = vsel %vm283, %v450, -inf
    %452 = vmax.xlane.f32.xlu0 %v451
    %v453 = vpop.xlane.xlu0 %452
    %v454 = vsub.f32 %v450, %v453
    %v455 = vmul.f32 %v454, 1.442695
    %v456 = vpow.pop %v455
    %v457 = vsel %vm283, %v456, 0.0
    %458 = vadd.xlane.f32.xlu0 %v457
    %v459 = vpop.xlane.xlu0 %458
    %v460 = vrcp.pop %v459
    %v461 = vmul.f32 %v456, %v460
    %462 = vrot.lane.b32.xlu0 %v191, 48
    %v463 = vpop.permute.xlu0 %462
    %v466 = vsel %vm283, %v461, 0
    %468 = vmatprep.subr.mxu0 0.0
    %469 = vmatpush1.msra.mxu0 %v463
    %470 = vmatprep.subr.mxu0 0.0
    %471 = vmatpush1.msra.mxu0 0.0
    %472 = vmatprep.subr.mxu0 0.0
    %473 = vmatpush1.msra.mxu0 0.0
    %474 = vmatprep.subr.mxu0 0.0
    %475 = vmatpush1.msra.mxu0 0.0
    %476 = vmatprep.subr.mxu0 0.0
    %477 = vmatpush1.msra.mxu0 0.0
    %478 = vmatprep.subr.mxu0 0.0
    %479 = vmatpush1.msra.mxu0 0.0
    %480 = vmatprep.subr.mxu0 0.0
    %481 = vmatpush1.msra.mxu0 0.0
    %482 = vmatprep.subr.mxu0 0.0
    %483 = vmatpush1.msra.mxu0 0.0
    %484 = vmatprep.subr.mxu0 0.0
    %485 = vmatpush1.msra.mxu0 0.0
    %486 = vmatprep.subr.mxu0 0.0
    %487 = vmatpush1.msra.mxu0 0.0
    %488 = vmatprep.subr.mxu0 0.0
    %489 = vmatpush1.msra.mxu0 0.0
    %490 = vmatprep.subr.mxu0 0.0
    %491 = vmatpush1.msra.mxu0 0.0
    %492 = vmatprep.subr.mxu0 0.0
    %493 = vmatpush1.msra.mxu0 0.0
    %494 = vmatprep.subr.mxu0 0.0
    %495 = vmatpush1.msra.mxu0 0.0
    %496 = vmatprep.subr.mxu0 0.0
    %497 = vmatpush1.msra.mxu0 0.0
    %498 = vmatprep.subr.mxu0 0.0
    %499 = vmatpush1.msra.mxu0 0.0
    %500 = vmatprep.subr.mxu0 0.0
    %501 = vmatpush1.msra.mxu0 0.0
    %502 = vmatprep.subr.mxu0 0.0
    %503 = vmatpush1.msra.mxu0 0.0
    %504 = vmatprep.subr.mxu0 0.0
    %505 = vmatpush1.msra.mxu0 0.0
    %506 = vmatprep.subr.mxu0 0.0
    %507 = vmatpush1.msra.mxu0 0.0
    %508 = vmatprep.subr.mxu0 0.0
    %509 = vmatpush1.msra.mxu0 0.0
    %510 = vmatprep.subr.mxu0 0.0
    %511 = vmatpush1.msra.mxu0 0.0
    %512 = vmatprep.subr.mxu0 0.0
    %513 = vmatpush1.msra.mxu0 0.0
    %514 = vmatprep.subr.mxu0 0.0
    %515 = vmatpush1.msra.mxu0 0.0
    %516 = vmatprep.subr.mxu0 0.0
    %517 = vmatpush1.msra.mxu0 0.0
    %518 = vmatprep.subr.mxu0 0.0
    %519 = vmatpush1.msra.mxu0 0.0
    %520 = vmatprep.subr.mxu0 0.0
    %521 = vmatpush1.msra.mxu0 0.0
    %522 = vmatprep.subr.mxu0 0.0
    %523 = vmatpush1.msra.mxu0 0.0
    %524 = vmatprep.subr.mxu0 0.0
    %525 = vmatpush1.msra.mxu0 0.0
    %526 = vmatprep.subr.mxu0 0.0
    %527 = vmatpush1.msra.mxu0 0.0
    %528 = vmatprep.subr.mxu0 0.0
    %529 = vmatpush1.msra.mxu0 0.0
    %530 = vmatprep.subr.mxu0 0.0
    %531 = vmatpush1.msra.mxu0 0.0
    %532 = vmatprep.mubr.f32.mxu0 0.0
    %533 = vmatmul.mubr.f32.gmra.mrb[0].mxu0 %v466
    %v534 = vpop.f32.mrb[0].mxu0
    %v535 = vadd.f32 0.0, %v534
    %v536 = vpop.f32.mrb[0].mxu0
    %537 = vdwg.mxu0
    %539 = vrot.lane.b32.xlu0 %v535, 16
    %v540 = vpop.permute.xlu0 %539
    %v542 = vsel %vm202, %v368, %v540
    %544 = vrot.lane.b32.xlu0 %v196, 96
    %v545 = vpop.permute.xlu0 %544
    %v546 = vsel %vm202, %v196, 0
    %v548 = vsel %vm202, %v545, 0
    %550 = vmatprep.subr.mxu0 0.0
    %551 = vmatpush1.xpose.msra.mxu0 %v548
    %552 = vmatprep.subr.mxu0 0.0
    %553 = vmatpush1.xpose.msra.mxu0 0.0
    %554 = vmatprep.subr.mxu0 0.0
    %555 = vmatpush1.xpose.msra.mxu0 0.0
    %556 = vmatprep.subr.mxu0 0.0
    %557 = vmatpush1.xpose.msra.mxu0 0.0
    %558 = vmatprep.subr.mxu0 0.0
    %559 = vmatpush1.xpose.msra.mxu0 0.0
    %560 = vmatprep.subr.mxu0 0.0
    %561 = vmatpush1.xpose.msra.mxu0 0.0
    %562 = vmatprep.subr.mxu0 0.0
    %563 = vmatpush1.xpose.msra.mxu0 0.0
    %564 = vmatprep.subr.mxu0 0.0
    %565 = vmatpush1.xpose.msra.mxu0 0.0
    %566 = vmatprep.subr.mxu0 0.0
    %567 = vmatpush1.xpose.msra.mxu0 0.0
    %568 = vmatprep.subr.mxu0 0.0
    %569 = vmatpush1.xpose.msra.mxu0 0.0
    %570 = vmatprep.subr.mxu0 0.0
    %571 = vmatpush1.xpose.msra.mxu0 0.0
    %572 = vmatprep.subr.mxu0 0.0
    %573 = vmatpush1.xpose.msra.mxu0 0.0
    %574 = vmatprep.subr.mxu0 0.0
    %575 = vmatpush1.xpose.msra.mxu0 0.0
    %576 = vmatprep.subr.mxu0 0.0
    %577 = vmatpush1.xpose.msra.mxu0 0.0
    %578 = vmatprep.subr.mxu0 0.0
    %579 = vmatpush1.xpose.msra.mxu0 0.0
    %580 = vmatprep.subr.mxu0 0.0
    %581 = vmatpush1.xpose.msra.mxu0 0.0
    %582 = vmatprep.subr.mxu0 0.0
    %583 = vmatpush1.xpose.msra.mxu0 0.0
    %584 = vmatprep.subr.mxu0 0.0
    %585 = vmatpush1.xpose.msra.mxu0 0.0
    %586 = vmatprep.subr.mxu0 0.0
    %587 = vmatpush1.xpose.msra.mxu0 0.0
    %588 = vmatprep.subr.mxu0 0.0
    %589 = vmatpush1.xpose.msra.mxu0 0.0
    %590 = vmatprep.subr.mxu0 0.0
    %591 = vmatpush1.xpose.msra.mxu0 0.0
    %592 = vmatprep.subr.mxu0 0.0
    %593 = vmatpush1.xpose.msra.mxu0 0.0
    %594 = vmatprep.subr.mxu0 0.0
    %595 = vmatpush1.xpose.msra.mxu0 0.0
    %596 = vmatprep.subr.mxu0 0.0
    %597 = vmatpush1.xpose.msra.mxu0 0.0
    %598 = vmatprep.subr.mxu0 0.0
    %599 = vmatpush1.xpose.msra.mxu0 0.0
    %600 = vmatprep.subr.mxu0 0.0
    %601 = vmatpush1.xpose.msra.mxu0 0.0
    %602 = vmatprep.subr.mxu0 0.0
    %603 = vmatpush1.xpose.msra.mxu0 0.0
    %604 = vmatprep.subr.mxu0 0.0
    %605 = vmatpush1.xpose.msra.mxu0 0.0
    %606 = vmatprep.subr.mxu0 0.0
    %607 = vmatpush1.xpose.msra.mxu0 0.0
    %608 = vmatprep.subr.mxu0 0.0
    %609 = vmatpush1.xpose.msra.mxu0 0.0
    %610 = vmatprep.subr.mxu0 0.0
    %611 = vmatpush1.xpose.msra.mxu0 0.0
    %612 = vmatprep.subr.mxu0 0.0
    %613 = vmatpush1.xpose.msra.mxu0 0.0
    %614 = vmatprep.mubr.f32.mxu0 0.0
    %615 = vmatmul.mubr.f32.gmra.mrb[0].mxu0 %v546
    %v616 = vpop.f32.mrb[0].mxu0
    %v617 = vadd.f32 0.0, %v616
    %v618 = vpop.f32.mrb[0].mxu0
    %619 = vdwg.mxu0
    %v620 = vmul.f32 %v617, 0.25
    %v621 = vlaneseq
    %v622 = vshrl.u32 %v621, 7
    %v623 = vsub.s32 1, %v622
    %v624 = vrot.slane %v57, %v623
    %v625 = vadd.f32 %v620, %v624
    %v626 = vsel %vm283, %v625, -inf
    %627 = vmax.xlane.f32.xlu0 %v626
    %v628 = vpop.xlane.xlu0 %627
    %v629 = vsub.f32 %v625, %v628
    %v630 = vmul.f32 %v629, 1.442695
    %v631 = vpow.pop %v630
    %v632 = vsel %vm283, %v631, 0.0
    %633 = vadd.xlane.f32.xlu0 %v632
    %v634 = vpop.xlane.xlu0 %633
    %v635 = vrcp.pop %v634
    %v636 = vmul.f32 %v631, %v635
    %637 = vrot.lane.b32.xlu0 %v196, 64
    %v638 = vpop.permute.xlu0 %637
    %v641 = vsel %vm283, %v636, 0
    %643 = vmatprep.subr.mxu0 0.0
    %644 = vmatpush1.msra.mxu0 %v638
    %645 = vmatprep.subr.mxu0 0.0
    %646 = vmatpush1.msra.mxu0 0.0
    %647 = vmatprep.subr.mxu0 0.0
    %648 = vmatpush1.msra.mxu0 0.0
    %649 = vmatprep.subr.mxu0 0.0
    %650 = vmatpush1.msra.mxu0 0.0
    %651 = vmatprep.subr.mxu0 0.0
    %652 = vmatpush1.msra.mxu0 0.0
    %653 = vmatprep.subr.mxu0 0.0
    %654 = vmatpush1.msra.mxu0 0.0
    %655 = vmatprep.subr.mxu0 0.0
    %656 = vmatpush1.msra.mxu0 0.0
    %657 = vmatprep.subr.mxu0 0.0
    %658 = vmatpush1.msra.mxu0 0.0
    %659 = vmatprep.subr.mxu0 0.0
    %660 = vmatpush1.msra.mxu0 0.0
    %661 = vmatprep.subr.mxu0 0.0
    %662 = vmatpush1.msra.mxu0 0.0
    %663 = vmatprep.subr.mxu0 0.0
    %664 = vmatpush1.msra.mxu0 0.0
    %665 = vmatprep.subr.mxu0 0.0
    %666 = vmatpush1.msra.mxu0 0.0
    %667 = vmatprep.subr.mxu0 0.0
    %668 = vmatpush1.msra.mxu0 0.0
    %669 = vmatprep.subr.mxu0 0.0
    %670 = vmatpush1.msra.mxu0 0.0
    %671 = vmatprep.subr.mxu0 0.0
    %672 = vmatpush1.msra.mxu0 0.0
    %673 = vmatprep.subr.mxu0 0.0
    %674 = vmatpush1.msra.mxu0 0.0
    %675 = vmatprep.subr.mxu0 0.0
    %676 = vmatpush1.msra.mxu0 0.0
    %677 = vmatprep.subr.mxu0 0.0
    %678 = vmatpush1.msra.mxu0 0.0
    %679 = vmatprep.subr.mxu0 0.0
    %680 = vmatpush1.msra.mxu0 0.0
    %681 = vmatprep.subr.mxu0 0.0
    %682 = vmatpush1.msra.mxu0 0.0
    %683 = vmatprep.subr.mxu0 0.0
    %684 = vmatpush1.msra.mxu0 0.0
    %685 = vmatprep.subr.mxu0 0.0
    %686 = vmatpush1.msra.mxu0 0.0
    %687 = vmatprep.subr.mxu0 0.0
    %688 = vmatpush1.msra.mxu0 0.0
    %689 = vmatprep.subr.mxu0 0.0
    %690 = vmatpush1.msra.mxu0 0.0
    %691 = vmatprep.subr.mxu0 0.0
    %692 = vmatpush1.msra.mxu0 0.0
    %693 = vmatprep.subr.mxu0 0.0
    %694 = vmatpush1.msra.mxu0 0.0
    %695 = vmatprep.subr.mxu0 0.0
    %696 = vmatpush1.msra.mxu0 0.0
    %697 = vmatprep.subr.mxu0 0.0
    %698 = vmatpush1.msra.mxu0 0.0
    %699 = vmatprep.subr.mxu0 0.0
    %700 = vmatpush1.msra.mxu0 0.0
    %701 = vmatprep.subr.mxu0 0.0
    %702 = vmatpush1.msra.mxu0 0.0
    %703 = vmatprep.subr.mxu0 0.0
    %704 = vmatpush1.msra.mxu0 0.0
    %705 = vmatprep.subr.mxu0 0.0
    %706 = vmatpush1.msra.mxu0 0.0
    %707 = vmatprep.mubr.f32.mxu0 0.0
    %708 = vmatmul.mubr.f32.gmra.mrb[0].mxu0 %v641
    %v709 = vpop.f32.mrb[0].mxu0
    %v710 = vadd.f32 0.0, %v709
    %v711 = vpop.f32.mrb[0].mxu0
    %712 = vdwg.mxu0
    %713 = vrot.lane.b32.xlu0 %v196, 112
    %v714 = vpop.permute.xlu0 %713
    %715 = vrot.lane.b32.xlu0 %v196, 80
    %v716 = vpop.permute.xlu0 %715
    %v717 = vsel %vm202, %v714, 0
    %v719 = vsel %vm202, %v716, 0
    %721 = vmatprep.subr.mxu0 0.0
    %722 = vmatpush1.xpose.msra.mxu0 %v719
    %723 = vmatprep.subr.mxu0 0.0
    %724 = vmatpush1.xpose.msra.mxu0 0.0
    %725 = vmatprep.subr.mxu0 0.0
    %726 = vmatpush1.xpose.msra.mxu0 0.0
    %727 = vmatprep.subr.mxu0 0.0
    %728 = vmatpush1.xpose.msra.mxu0 0.0
    %729 = vmatprep.subr.mxu0 0.0
    %730 = vmatpush1.xpose.msra.mxu0 0.0
    %731 = vmatprep.subr.mxu0 0.0
    %732 = vmatpush1.xpose.msra.mxu0 0.0
    %733 = vmatprep.subr.mxu0 0.0
    %734 = vmatpush1.xpose.msra.mxu0 0.0
    %735 = vmatprep.subr.mxu0 0.0
    %736 = vmatpush1.xpose.msra.mxu0 0.0
    %737 = vmatprep.subr.mxu0 0.0
    %738 = vmatpush1.xpose.msra.mxu0 0.0
    %739 = vmatprep.subr.mxu0 0.0
    %740 = vmatpush1.xpose.msra.mxu0 0.0
    %741 = vmatprep.subr.mxu0 0.0
    %742 = vmatpush1.xpose.msra.mxu0 0.0
    %743 = vmatprep.subr.mxu0 0.0
    %744 = vmatpush1.xpose.msra.mxu0 0.0
    %745 = vmatprep.subr.mxu0 0.0
    %746 = vmatpush1.xpose.msra.mxu0 0.0
    %747 = vmatprep.subr.mxu0 0.0
    %748 = vmatpush1.xpose.msra.mxu0 0.0
    %749 = vmatprep.subr.mxu0 0.0
    %750 = vmatpush1.xpose.msra.mxu0 0.0
    %751 = vmatprep.subr.mxu0 0.0
    %752 = vmatpush1.xpose.msra.mxu0 0.0
    %753 = vmatprep.subr.mxu0 0.0
    %754 = vmatpush1.xpose.msra.mxu0 0.0
    %755 = vmatprep.subr.mxu0 0.0
    %756 = vmatpush1.xpose.msra.mxu0 0.0
    %757 = vmatprep.subr.mxu0 0.0
    %758 = vmatpush1.xpose.msra.mxu0 0.0
    %759 = vmatprep.subr.mxu0 0.0
    %760 = vmatpush1.xpose.msra.mxu0 0.0
    %761 = vmatprep.subr.mxu0 0.0
    %762 = vmatpush1.xpose.msra.mxu0 0.0
    %763 = vmatprep.subr.mxu0 0.0
    %764 = vmatpush1.xpose.msra.mxu0 0.0
    %765 = vmatprep.subr.mxu0 0.0
    %766 = vmatpush1.xpose.msra.mxu0 0.0
    %767 = vmatprep.subr.mxu0 0.0
    %768 = vmatpush1.xpose.msra.mxu0 0.0
    %769 = vmatprep.subr.mxu0 0.0
    %770 = vmatpush1.xpose.msra.mxu0 0.0
    %771 = vmatprep.subr.mxu0 0.0
    %772 = vmatpush1.xpose.msra.mxu0 0.0
    %773 = vmatprep.subr.mxu0 0.0
    %774 = vmatpush1.xpose.msra.mxu0 0.0
    %775 = vmatprep.subr.mxu0 0.0
    %776 = vmatpush1.xpose.msra.mxu0 0.0
    %777 = vmatprep.subr.mxu0 0.0
    %778 = vmatpush1.xpose.msra.mxu0 0.0
    %779 = vmatprep.subr.mxu0 0.0
    %780 = vmatpush1.xpose.msra.mxu0 0.0
    %781 = vmatprep.subr.mxu0 0.0
    %782 = vmatpush1.xpose.msra.mxu0 0.0
    %783 = vmatprep.subr.mxu0 0.0
    %784 = vmatpush1.xpose.msra.mxu0 0.0
    %785 = vmatprep.mubr.f32.mxu0 0.0
    %786 = vmatmul.mubr.f32.gmra.mrb[0].mxu0 %v717
    %v787 = vpop.f32.mrb[0].mxu0
    %v788 = vadd.f32 0.0, %v787
    %v789 = vpop.f32.mrb[0].mxu0
    %790 = vdwg.mxu0
    %v791 = vmul.f32 %v788, 0.25
    %v792 = vadd.f32 %v791, %v624
    %v793 = vsel %vm283, %v792, -inf
    %794 = vmax.xlane.f32.xlu0 %v793
    %v795 = vpop.xlane.xlu0 %794
    %v796 = vsub.f32 %v792, %v795
    %v797 = vmul.f32 %v796, 1.442695
    %v798 = vpow.pop %v797
    %v799 = vsel %vm283, %v798, 0.0
    %800 = vadd.xlane.f32.xlu0 %v799
    %v801 = vpop.xlane.xlu0 %800
    %v802 = vrcp.pop %v801
    %v803 = vmul.f32 %v798, %v802
    %804 = vrot.lane.b32.xlu0 %v196, 48
    %v805 = vpop.permute.xlu0 %804
    %v808 = vsel %vm283, %v803, 0
    %810 = vmatprep.subr.mxu0 0.0
    %811 = vmatpush1.msra.mxu0 %v805
    %812 = vmatprep.subr.mxu0 0.0
    %813 = vmatpush1.msra.mxu0 0.0
    %814 = vmatprep.subr.mxu0 0.0
    %815 = vmatpush1.msra.mxu0 0.0
    %816 = vmatprep.subr.mxu0 0.0
    %817 = vmatpush1.msra.mxu0 0.0
    %818 = vmatprep.subr.mxu0 0.0
    %819 = vmatpush1.msra.mxu0 0.0
    %820 = vmatprep.subr.mxu0 0.0
    %821 = vmatpush1.msra.mxu0 0.0
    %822 = vmatprep.subr.mxu0 0.0
    %823 = vmatpush1.msra.mxu0 0.0
    %824 = vmatprep.subr.mxu0 0.0
    %825 = vmatpush1.msra.mxu0 0.0
    %826 = vmatprep.subr.mxu0 0.0
    %827 = vmatpush1.msra.mxu0 0.0
    %828 = vmatprep.subr.mxu0 0.0
    %829 = vmatpush1.msra.mxu0 0.0
    %830 = vmatprep.subr.mxu0 0.0
    %831 = vmatpush1.msra.mxu0 0.0
    %832 = vmatprep.subr.mxu0 0.0
    %833 = vmatpush1.msra.mxu0 0.0
    %834 = vmatprep.subr.mxu0 0.0
    %835 = vmatpush1.msra.mxu0 0.0
    %836 = vmatprep.subr.mxu0 0.0
    %837 = vmatpush1.msra.mxu0 0.0
    %838 = vmatprep.subr.mxu0 0.0
    %839 = vmatpush1.msra.mxu0 0.0
    %840 = vmatprep.subr.mxu0 0.0
    %841 = vmatpush1.msra.mxu0 0.0
    %842 = vmatprep.subr.mxu0 0.0
    %843 = vmatpush1.msra.mxu0 0.0
    %844 = vmatprep.subr.mxu0 0.0
    %845 = vmatpush1.msra.mxu0 0.0
    %846 = vmatprep.subr.mxu0 0.0
    %847 = vmatpush1.msra.mxu0 0.0
    %848 = vmatprep.subr.mxu0 0.0
    %849 = vmatpush1.msra.mxu0 0.0
    %850 = vmatprep.subr.mxu0 0.0
    %851 = vmatpush1.msra.mxu0 0.0
    %852 = vmatprep.subr.mxu0 0.0
    %853 = vmatpush1.msra.mxu0 0.0
    %854 = vmatprep.subr.mxu0 0.0
    %855 = vmatpush1.msra.mxu0 0.0
    %856 = vmatprep.subr.mxu0 0.0
    %857 = vmatpush1.msra.mxu0 0.0
    %858 = vmatprep.subr.mxu0 0.0
    %859 = vmatpush1.msra.mxu0 0.0
    %860 = vmatprep.subr.mxu0 0.0
    %861 = vmatpush1.msra.mxu0 0.0
    %862 = vmatprep.subr.mxu0 0.0
    %863 = vmatpush1.msra.mxu0 0.0
    %864 = vmatprep.subr.mxu0 0.0
    %865 = vmatpush1.msra.mxu0 0.0
    %866 = vmatprep.subr.mxu0 0.0
    %867 = vmatpush1.msra.mxu0 0.0
    %868 = vmatprep.subr.mxu0 0.0
    %869 = vmatpush1.msra.mxu0 0.0
    %870 = vmatprep.subr.mxu0 0.0
    %871 = vmatpush1.msra.mxu0 0.0
    %872 = vmatprep.subr.mxu0 0.0
    %873 = vmatpush1.msra.mxu0 0.0
    %874 = vmatprep.mubr.f32.mxu0 0.0
    %875 = vmatmul.mubr.f32.gmra.mrb[0].mxu0 %v808
    %v876 = vpop.f32.mrb[0].mxu0
    %v877 = vadd.f32 0.0, %v876
    %v878 = vpop.f32.mrb[0].mxu0
    %879 = vdwg.mxu0
    %881 = vrot.lane.b32.xlu0 %v877, 16
    %v882 = vpop.permute.xlu0 %881
    %v884 = vsel %vm202, %v710, %v882
    %v885 = vld [vmem:[%s7] sm:$0xff]
    %v886 = vld [vmem:[%s7 + $0x8] sm:$0xff]
    %v887 = vld [vmem:[%s7 + $0x10] sm:$0xff]
    %v888 = vld [vmem:[%s7 + $0x18] sm:$0xff]
    %v889 = vld [vmem:[%s8] sm:$0x1]
    %v891 = vlaneseq
    %v892 = vshrl.u32 %v891, 7
    %v893 = vsub.s32 0, %v892
    %v894 = vrot.slane %v889, %v893
    %v897 = vsel %vm63, %v542, 0
    %v900 = vsel %vm63, %v884, 0
    %902 = vmatprep.subr.mxu0 0.0
    %903 = vmatpush1.msra.mxu0 %v885
    %904 = vmatprep.subr.mxu0 0.0
    %905 = vmatpush1.msra.mxu0 %v886
    %906 = vmatprep.subr.mxu0 0.0
    %907 = vmatpush1.msra.mxu0 %v887
    %908 = vmatprep.subr.mxu0 0.0
    %909 = vmatpush1.msra.mxu0 %v888
    %910 = vmatprep.subr.mxu0 0.0
    %911 = vmatpush1.msra.mxu0 0.0
    %912 = vmatprep.subr.mxu0 0.0
    %913 = vmatpush1.msra.mxu0 0.0
    %914 = vmatprep.subr.mxu0 0.0
    %915 = vmatpush1.msra.mxu0 0.0
    %916 = vmatprep.subr.mxu0 0.0
    %917 = vmatpush1.msra.mxu0 0.0
    %918 = vmatprep.subr.mxu0 0.0
    %919 = vmatpush1.msra.mxu0 0.0
    %920 = vmatprep.subr.mxu0 0.0
    %921 = vmatpush1.msra.mxu0 0.0
    %922 = vmatprep.subr.mxu0 0.0
    %923 = vmatpush1.msra.mxu0 0.0
    %924 = vmatprep.subr.mxu0 0.0
    %925 = vmatpush1.msra.mxu0 0.0
    %926 = vmatprep.subr.mxu0 0.0
    %927 = vmatpush1.msra.mxu0 0.0
    %928 = vmatprep.subr.mxu0 0.0
    %929 = vmatpush1.msra.mxu0 0.0
    %930 = vmatprep.subr.mxu0 0.0
    %931 = vmatpush1.msra.mxu0 0.0
    %932 = vmatprep.subr.mxu0 0.0
    %933 = vmatpush1.msra.mxu0 0.0
    %934 = vmatprep.subr.mxu0 0.0
    %935 = vmatpush1.msra.mxu0 0.0
    %936 = vmatprep.subr.mxu0 0.0
    %937 = vmatpush1.msra.mxu0 0.0
    %938 = vmatprep.subr.mxu0 0.0
    %939 = vmatpush1.msra.mxu0 0.0
    %940 = vmatprep.subr.mxu0 0.0
    %941 = vmatpush1.msra.mxu0 0.0
    %942 = vmatprep.subr.mxu0 0.0
    %943 = vmatpush1.msra.mxu0 0.0
    %944 = vmatprep.subr.mxu0 0.0
    %945 = vmatpush1.msra.mxu0 0.0
    %946 = vmatprep.subr.mxu0 0.0
    %947 = vmatpush1.msra.mxu0 0.0
    %948 = vmatprep.subr.mxu0 0.0
    %949 = vmatpush1.msra.mxu0 0.0
    %950 = vmatprep.subr.mxu0 0.0
    %951 = vmatpush1.msra.mxu0 0.0
    %952 = vmatprep.subr.mxu0 0.0
    %953 = vmatpush1.msra.mxu0 0.0
    %954 = vmatprep.subr.mxu0 0.0
    %955 = vmatpush1.msra.mxu0 0.0
    %956 = vmatprep.subr.mxu0 0.0
    %957 = vmatpush1.msra.mxu0 0.0
    %958 = vmatprep.subr.mxu0 0.0
    %959 = vmatpush1.msra.mxu0 0.0
    %960 = vmatprep.subr.mxu0 0.0
    %961 = vmatpush1.msra.mxu0 0.0
    %962 = vmatprep.subr.mxu0 0.0
    %963 = vmatpush1.msra.mxu0 0.0
    %964 = vmatprep.subr.mxu0 0.0
    %965 = vmatpush1.msra.mxu0 0.0
    %966 = vmatprep.mubr.f32.mxu0 0.0
    %967 = vmatmul.mubr.f32.gmra.mrb[0].mxu0 %v897
    %v968 = vpop.f32.mrb[0].mxu0
    %v969 = vadd.f32 %v894, %v968
    %v970 = vpop.f32.mrb[0].mxu0
    %971 = vmatprep.mubr.f32.mxu0 0.0
    %972 = vmatmul.mubr.f32.gmra.mrb[0].mxu0 %v900
    %v973 = vpop.f32.mrb[0].mxu0
    %v974 = vadd.f32 %v894, %v973
    %v975 = vpop.f32.mrb[0].mxu0
    %976 = vdwg.mxu0
    %v977 = vadd.f32 %v969, %v105
    %v978 = vadd.f32 %v974, %v106
    %v979 = vld [vmem:[%s9] sm:$0x1]
    %v980 = vld [vmem:[%s10] sm:$0x1]
    %v981 = vsel %vm63, %v977, 0.0
    %982 = vadd.xlane.f32.xlu0 %v981
    %v983 = vpop.xlane.xlu0 %982
    %v984 = vsel %vm63, %v978, 0.0
    %985 = vadd.xlane.f32.xlu0 %v984
    %v986 = vpop.xlane.xlu0 %985
    %v987 = vmul.f32 %v983, %v70
    %v988 = vmul.f32 %v986, %v70
    %v989 = vsub.f32 %v977, %v987
    %v990 = vsub.f32 %v978, %v988
    %v991 = vmul.f32 %v989, %v989
    %v992 = vmul.f32 %v990, %v990
    %v993 = vsel %vm63, %v991, 0.0
    %994 = vadd.xlane.f32.xlu0 %v993
    %v995 = vpop.xlane.xlu0 %994
    %v996 = vsel %vm63, %v992, 0.0
    %997 = vadd.xlane.f32.xlu0 %v996
    %v998 = vpop.xlane.xlu0 %997
    %v999 = vmul.f32 %v995, %v70
    %v1000 = vmul.f32 %v998, %v70
    %v1001 = vadd.f32 %v999, 1e-12
    %v1002 = vadd.f32 %v1000, 1e-12
    %v1003 = vrsqrt.pop %v1001
    %v1004 = vrsqrt.pop %v1002
    %v1005 = vmul.f32 %v989, %v1003
    %v1006 = vmul.f32 %v990, %v1004
    %v1008 = vlaneseq
    %v1009 = vshrl.u32 %v1008, 7
    %v1010 = vsub.s32 0, %v1009
    %v1011 = vrot.slane %v979, %v1010
    %v1013 = vmul.f32 %v1005, %v1011
    %v1014 = vmul.f32 %v1006, %v1011
    %v1016 = vlaneseq
    %v1017 = vshrl.u32 %v1016, 7
    %v1018 = vsub.s32 0, %v1017
    %v1019 = vrot.slane %v980, %v1018
    %v1021 = vadd.f32 %v1013, %v1019
    %v1022 = vadd.f32 %v1014, %v1019
    %v1023 = vld [vmem:[%s11] sm:$0xff]
    %v1024 = vld [vmem:[%s11 + $0x8] sm:$0xff]
    %v1025 = vld [vmem:[%s11 + $0x10] sm:$0xff]
    %v1026 = vld [vmem:[%s11 + $0x18] sm:$0xff]
    %v1027 = vld [vmem:[%s12] sm:$0x1]
    %v1029 = vlaneseq
    %v1030 = vshrl.u32 %v1029, 7
    %v1031 = vsub.s32 0, %v1030
    %v1032 = vrot.slane %v1027, %v1031
    %v1035 = vsel %vm63, %v1021, 0
    %v1038 = vsel %vm63, %v1022, 0
    %1040 = vmatprep.subr.mxu0 0.0
    %1041 = vmatpush1.msra.mxu0 %v1023
    %1042 = vmatprep.subr.mxu0 0.0
    %1043 = vmatpush1.msra.mxu0 %v1024
    %1044 = vmatprep.subr.mxu0 0.0
    %1045 = vmatpush1.msra.mxu0 %v1025
    %1046 = vmatprep.subr.mxu0 0.0
    %1047 = vmatpush1.msra.mxu0 %v1026
    %1048 = vmatprep.subr.mxu0 0.0
    %1049 = vmatpush1.msra.mxu0 0.0
    %1050 = vmatprep.subr.mxu0 0.0
    %1051 = vmatpush1.msra.mxu0 0.0
    %1052 = vmatprep.subr.mxu0 0.0
    %1053 = vmatpush1.msra.mxu0 0.0
    %1054 = vmatprep.subr.mxu0 0.0
    %1055 = vmatpush1.msra.mxu0 0.0
    %1056 = vmatprep.subr.mxu0 0.0
    %1057 = vmatpush1.msra.mxu0 0.0
    %1058 = vmatprep.subr.mxu0 0.0
    %1059 = vmatpush1.msra.mxu0 0.0
    %1060 = vmatprep.subr.mxu0 0.0
    %1061 = vmatpush1.msra.mxu0 0.0
    %1062 = vmatprep.subr.mxu0 0.0
    %1063 = vmatpush1.msra.mxu0 0.0
    %1064 = vmatprep.subr.mxu0 0.0
    %1065 = vmatpush1.msra.mxu0 0.0
    %1066 = vmatprep.subr.mxu0 0.0
    %1067 = vmatpush1.msra.mxu0 0.0
    %1068 = vmatprep.subr.mxu0 0.0
    %1069 = vmatpush1.msra.mxu0 0.0
    %1070 = vmatprep.subr.mxu0 0.0
    %1071 = vmatpush1.msra.mxu0 0.0
    %1072 = vmatprep.subr.mxu0 0.0
    %1073 = vmatpush1.msra.mxu0 0.0
    %1074 = vmatprep.subr.mxu0 0.0
    %1075 = vmatpush1.msra.mxu0 0.0
    %1076 = vmatprep.subr.mxu0 0.0
    %1077 = vmatpush1.msra.mxu0 0.0
    %1078 = vmatprep.subr.mxu0 0.0
    %1079 = vmatpush1.msra.mxu0 0.0
    %1080 = vmatprep.subr.mxu0 0.0
    %1081 = vmatpush1.msra.mxu0 0.0
    %1082 = vmatprep.subr.mxu0 0.0
    %1083 = vmatpush1.msra.mxu0 0.0
    %1084 = vmatprep.subr.mxu0 0.0
    %1085 = vmatpush1.msra.mxu0 0.0
    %1086 = vmatprep.subr.mxu0 0.0
    %1087 = vmatpush1.msra.mxu0 0.0
    %1088 = vmatprep.subr.mxu0 0.0
    %1089 = vmatpush1.msra.mxu0 0.0
    %1090 = vmatprep.subr.mxu0 0.0
    %1091 = vmatpush1.msra.mxu0 0.0
    %1092 = vmatprep.subr.mxu0 0.0
    %1093 = vmatpush1.msra.mxu0 0.0
    %1094 = vmatprep.subr.mxu0 0.0
    %1095 = vmatpush1.msra.mxu0 0.0
    %1096 = vmatprep.subr.mxu0 0.0
    %1097 = vmatpush1.msra.mxu0 0.0
    %1098 = vmatprep.subr.mxu0 0.0
    %1099 = vmatpush1.msra.mxu0 0.0
    %1100 = vmatprep.subr.mxu0 0.0
    %1101 = vmatpush1.msra.mxu0 0.0
    %1102 = vmatprep.subr.mxu0 0.0
    %1103 = vmatpush1.msra.mxu0 0.0
    %1104 = vmatprep.mubr.f32.mxu0 0.0
    %1105 = vmatmul.mubr.f32.gmra.mrb[0].mxu0 %v1035
    %v1106 = vpop.f32.mrb[0].mxu0
    %v1107 = vadd.f32 %v1032, %v1106
    %v1108 = vpop.f32.mrb[0].mxu0
    %1109 = vmatprep.mubr.f32.mxu0 0.0
    %1110 = vmatmul.mubr.f32.gmra.mrb[0].mxu0 %v1038
    %v1111 = vpop.f32.mrb[0].mxu0
    %v1112 = vadd.f32 %v1032, %v1111
    %v1113 = vpop.f32.mrb[0].mxu0
    %1114 = vdwg.mxu0
    %v1115 = vmul.f32 %v1107, 0.5
    %v1116 = vmul.f32 %v1112, 0.5
    %v1117 = vmul.f32 %v1107, 0.044715
    %v1118 = vmul.f32 %v1112, 0.044715
    %v1119 = vmul.f32 %v1117, %v1107
    %v1120 = vmul.f32 %v1118, %v1112
    %v1121 = vmul.f32 %v1119, %v1107
    %v1122 = vmul.f32 %v1120, %v1112
    %v1123 = vadd.f32 %v1107, %v1121
    %v1124 = vadd.f32 %v1112, %v1122
    %v1125 = vmul.f32 %v1123, 0.7978846
    %v1126 = vmul.f32 %v1124, 0.7978846
    %v1127 = vtanh.pop %v1125
    %v1128 = vtanh.pop %v1126
    %v1129 = vadd.f32 %v1127, 1.0
    %v1130 = vadd.f32 %v1128, 1.0
    %v1131 = vmul.f32 %v1115, %v1129
    %v1132 = vmul.f32 %v1116, %v1130
    %v1133 = vld [vmem:[%s13] sm:$0xff]
    %v1134 = vld [vmem:[%s13 + $0x8] sm:$0xff]
    %v1135 = vld [vmem:[%s13 + $0x10] sm:$0xff]
    %v1136 = vld [vmem:[%s13 + $0x18] sm:$0xff]
    %v1137 = vld [vmem:[%s13 + $0x20] sm:$0xff]
    %v1138 = vld [vmem:[%s13 + $0x28] sm:$0xff]
    %v1139 = vld [vmem:[%s13 + $0x30] sm:$0xff]
    %v1140 = vld [vmem:[%s13 + $0x38] sm:$0xff]
    %v1141 = vld [vmem:[%s14] sm:$0x1]
    %v1143 = vlaneseq
    %v1144 = vshrl.u32 %v1143, 7
    %v1145 = vsub.s32 0, %v1144
    %v1146 = vrot.slane %v1141, %v1145
    %vm1148 = vcmask 523264
    %v1150 = vsel %vm1148, %v1131, 0
    %v1153 = vsel %vm1148, %v1132, 0
    %1155 = vmatprep.subr.mxu0 0.0
    %1156 = vmatpush1.msra.mxu0 %v1133
    %1157 = vmatprep.subr.mxu0 0.0
    %1158 = vmatpush1.msra.mxu0 %v1134
    %1159 = vmatprep.subr.mxu0 0.0
    %1160 = vmatpush1.msra.mxu0 %v1135
    %1161 = vmatprep.subr.mxu0 0.0
    %1162 = vmatpush1.msra.mxu0 %v1136
    %1163 = vmatprep.subr.mxu0 0.0
    %1164 = vmatpush1.msra.mxu0 %v1137
    %1165 = vmatprep.subr.mxu0 0.0
    %1166 = vmatpush1.msra.mxu0 %v1138
    %1167 = vmatprep.subr.mxu0 0.0
    %1168 = vmatpush1.msra.mxu0 %v1139
    %1169 = vmatprep.subr.mxu0 0.0
    %1170 = vmatpush1.msra.mxu0 %v1140
    %1171 = vmatprep.subr.mxu0 0.0
    %1172 = vmatpush1.msra.mxu0 0.0
    %1173 = vmatprep.subr.mxu0 0.0
    %1174 = vmatpush1.msra.mxu0 0.0
    %1175 = vmatprep.subr.mxu0 0.0
    %1176 = vmatpush1.msra.mxu0 0.0
    %1177 = vmatprep.subr.mxu0 0.0
    %1178 = vmatpush1.msra.mxu0 0.0
    %1179 = vmatprep.subr.mxu0 0.0
    %1180 = vmatpush1.msra.mxu0 0.0
    %1181 = vmatprep.subr.mxu0 0.0
    %1182 = vmatpush1.msra.mxu0 0.0
    %1183 = vmatprep.subr.mxu0 0.0
    %1184 = vmatpush1.msra.mxu0 0.0
    %1185 = vmatprep.subr.mxu0 0.0
    %1186 = vmatpush1.msra.mxu0 0.0
    %1187 = vmatprep.subr.mxu0 0.0
    %1188 = vmatpush1.msra.mxu0 0.0
    %1189 = vmatprep.subr.mxu0 0.0
    %1190 = vmatpush1.msra.mxu0 0.0
    %1191 = vmatprep.subr.mxu0 0.0
    %1192 = vmatpush1.msra.mxu0 0.0
    %1193 = vmatprep.subr.mxu0 0.0
    %1194 = vmatpush1.msra.mxu0 0.0
    %1195 = vmatprep.subr.mxu0 0.0
    %1196 = vmatpush1.msra.mxu0 0.0
    %1197 = vmatprep.subr.mxu0 0.0
    %1198 = vmatpush1.msra.mxu0 0.0
    %1199 = vmatprep.subr.mxu0 0.0
    %1200 = vmatpush1.msra.mxu0 0.0
    %1201 = vmatprep.subr.mxu0 0.0
    %1202 = vmatpush1.msra.mxu0 0.0
    %1203 = vmatprep.subr.mxu0 0.0
    %1204 = vmatpush1.msra.mxu0 0.0
    %1205 = vmatprep.subr.mxu0 0.0
    %1206 = vmatpush1.msra.mxu0 0.0
    %1207 = vmatprep.subr.mxu0 0.0
    %1208 = vmatpush1.msra.mxu0 0.0
    %1209 = vmatprep.subr.mxu0 0.0
    %1210 = vmatpush1.msra.mxu0 0.0
    %1211 = vmatprep.subr.mxu0 0.0
    %1212 = vmatpush1.msra.mxu0 0.0
    %1213 = vmatprep.subr.mxu0 0.0
    %1214 = vmatpush1.msra.mxu0 0.0
    %1215 = vmatprep.subr.mxu0 0.0
    %1216 = vmatpush1.msra.mxu0 0.0
    %1217 = vmatprep.subr.mxu0 0.0
    %1218 = vmatpush1.msra.mxu0 0.0
    %1219 = vmatprep.mubr.f32.mxu0 0.0
    %1220 = vmatmul.mubr.f32.gmra.mrb[0].mxu0 %v1150
    %v1221 = vpop.f32.mrb[0].mxu0
    %v1222 = vadd.f32 %v1146, %v1221
    %v1223 = vpop.f32.mrb[0].mxu0
    %1224 = vmatprep.mubr.f32.mxu0 0.0
    %1225 = vmatmul.mubr.f32.gmra.mrb[0].mxu0 %v1153
    %v1226 = vpop.f32.mrb[0].mxu0
    %v1227 = vadd.f32 %v1146, %v1226
    %v1228 = vpop.f32.mrb[0].mxu0
    %1229 = vdwg.mxu0
    %v1230 = vadd.f32 %v1222, %v1021
    %v1231 = vadd.f32 %v1227, %v1022
    %v1232 = vld [vmem:[%s15] sm:$0x1]
    %v1233 = vld [vmem:[%s16] sm:$0x1]
    %v1234 = vsel %vm63, %v1230, 0.0
    %1235 = vadd.xlane.f32.xlu0 %v1234
    %v1236 = vpop.xlane.xlu0 %1235
    %v1237 = vsel %vm63, %v1231, 0.0
    %1238 = vadd.xlane.f32.xlu0 %v1237
    %v1239 = vpop.xlane.xlu0 %1238
    %v1240 = vmul.f32 %v1236, %v70
    %v1241 = vmul.f32 %v1239, %v70
    %v1242 = vsub.f32 %v1230, %v1240
    %v1243 = vsub.f32 %v1231, %v1241
    %v1244 = vmul.f32 %v1242, %v1242
    %v1245 = vmul.f32 %v1243, %v1243
    %v1246 = vsel %vm63, %v1244, 0.0
    %1247 = vadd.xlane.f32.xlu0 %v1246
    %v1248 = vpop.xlane.xlu0 %1247
    %v1249 = vsel %vm63, %v1245, 0.0
    %1250 = vadd.xlane.f32.xlu0 %v1249
    %v1251 = vpop.xlane.xlu0 %1250
    %v1252 = vmul.f32 %v1248, %v70
    %v1253 = vmul.f32 %v1251, %v70
    %v1254 = vadd.f32 %v1252, 1e-12
    %v1255 = vadd.f32 %v1253, 1e-12
    %v1256 = vrsqrt.pop %v1254
    %v1257 = vrsqrt.pop %v1255
    %v1258 = vmul.f32 %v1242, %v1256
    %v1259 = vmul.f32 %v1243, %v1257
    %v1261 = vlaneseq
    %v1262 = vshrl.u32 %v1261, 7
    %v1263 = vsub.s32 0, %v1262
    %v1264 = vrot.slane %v1232, %v1263
    %v1266 = vmul.f32 %v1258, %v1264
    %v1267 = vmul.f32 %v1259, %v1264
    %v1269 = vlaneseq
    %v1270 = vshrl.u32 %v1269, 7
    %v1271 = vsub.s32 0, %v1270
    %v1272 = vrot.slane %v1233, %v1271
    %v1274 = vadd.f32 %v1266, %v1272
    %v1275 = vadd.f32 %v1267, %v1272
    %s1276 = scalar_lea.vmem %s5, 32
    %v1277 = vld [vmem:[%s1276] sm:$0xff]
    %v1278 = vld [vmem:[%s1276 + $0x8] sm:$0xff]
    %v1279 = vld [vmem:[%s1276 + $0x10] sm:$0xff]
    %v1280 = vld [vmem:[%s1276 + $0x18] sm:$0xff]
    %s1281 = scalar_lea.vmem %s6, 1
    %v1282 = vld [vmem:[%s1281] sm:$0x1]
    %v1284 = vlaneseq
    %v1285 = vshrl.u32 %v1284, 7
    %v1286 = vsub.s32 0, %v1285
    %v1287 = vrot.slane %v1282, %v1286
    %v1290 = vsel %vm63, %v1274, 0
    %v1293 = vsel %vm63, %v1275, 0
    %1295 = vmatprep.subr.mxu0 0.0
    %1296 = vmatpush1.msra.mxu0 %v1277
    %1297 = vmatprep.subr.mxu0 0.0
    %1298 = vmatpush1.msra.mxu0 %v1278
    %1299 = vmatprep.subr.mxu0 0.0
    %1300 = vmatpush1.msra.mxu0 %v1279
    %1301 = vmatprep.subr.mxu0 0.0
    %1302 = vmatpush1.msra.mxu0 %v1280
    %1303 = vmatprep.subr.mxu0 0.0
    %1304 = vmatpush1.msra.mxu0 0.0
    %1305 = vmatprep.subr.mxu0 0.0
    %1306 = vmatpush1.msra.mxu0 0.0
    %1307 = vmatprep.subr.mxu0 0.0
    %1308 = vmatpush1.msra.mxu0 0.0
    %1309 = vmatprep.subr.mxu0 0.0
    %1310 = vmatpush1.msra.mxu0 0.0
    %1311 = vmatprep.subr.mxu0 0.0
    %1312 = vmatpush1.msra.mxu0 0.0
    %1313 = vmatprep.subr.mxu0 0.0
    %1314 = vmatpush1.msra.mxu0 0.0
    %1315 = vmatprep.subr.mxu0 0.0
    %1316 = vmatpush1.msra.mxu0 0.0
    %1317 = vmatprep.subr.mxu0 0.0
    %1318 = vmatpush1.msra.mxu0 0.0
    %1319 = vmatprep.subr.mxu0 0.0
    %1320 = vmatpush1.msra.mxu0 0.0
    %1321 = vmatprep.subr.mxu0 0.0
    %1322 = vmatpush1.msra.mxu0 0.0
    %1323 = vmatprep.subr.mxu0 0.0
    %1324 = vmatpush1.msra.mxu0 0.0
    %1325 = vmatprep.subr.mxu0 0.0
    %1326 = vmatpush1.msra.mxu0 0.0
    %1327 = vmatprep.subr.mxu0 0.0
    %1328 = vmatpush1.msra.mxu0 0.0
    %1329 = vmatprep.subr.mxu0 0.0
    %1330 = vmatpush1.msra.mxu0 0.0
    %1331 = vmatprep.subr.mxu0 0.0
    %1332 = vmatpush1.msra.mxu0 0.0
    %1333 = vmatprep.subr.mxu0 0.0
    %1334 = vmatpush1.msra.mxu0 0.0
    %1335 = vmatprep.subr.mxu0 0.0
    %1336 = vmatpush1.msra.mxu0 0.0
    %1337 = vmatprep.subr.mxu0 0.0
    %1338 = vmatpush1.msra.mxu0 0.0
    %1339 = vmatprep.subr.mxu0 0.0
    %1340 = vmatpush1.msra.mxu0 0.0
    %1341 = vmatprep.subr.mxu0 0.0
    %1342 = vmatpush1.msra.mxu0 0.0
    %1343 = vmatprep.subr.mxu0 0.0
    %1344 = vmatpush1.msra.mxu0 0.0
    %1345 = vmatprep.subr.mxu0 0.0
    %1346 = vmatpush1.msra.mxu0 0.0
    %1347 = vmatprep.subr.mxu0 0.0
    %1348 = vmatpush1.msra.mxu0 0.0
    %1349 = vmatprep.subr.mxu0 0.0
    %1350 = vmatpush1.msra.mxu0 0.0
    %1351 = vmatprep.subr.mxu0 0.0
    %1352 = vmatpush1.msra.mxu0 0.0
    %1353 = vmatprep.subr.mxu0 0.0
    %1354 = vmatpush1.msra.mxu0 0.0
    %1355 = vmatprep.subr.mxu0 0.0
    %1356 = vmatpush1.msra.mxu0 0.0
    %1357 = vmatprep.subr.mxu0 0.0
    %1358 = vmatpush1.msra.mxu0 0.0
    %1359 = vmatprep.mubr.f32.mxu0 0.0
    %1360 = vmatmul.mubr.f32.gmra.mrb[0].mxu0 %v1290
    %v1361 = vpop.f32.mrb[0].mxu0
    %v1362 = vadd.f32 %v1287, %v1361
    %v1363 = vpop.f32.mrb[0].mxu0
    %1364 = vmatprep.mubr.f32.mxu0 0.0
    %1365 = vmatmul.mubr.f32.gmra.mrb[0].mxu0 %v1293
    %v1366 = vpop.f32.mrb[0].mxu0
    %v1367 = vadd.f32 %v1287, %v1366
    %v1368 = vpop.f32.mrb[0].mxu0
    %1369 = vdwg.mxu0
    %1371 = vrot.lane.b32.xlu0 %v1362, 96
    %v1372 = vpop.permute.xlu0 %1371
    %v1373 = vsel %vm202, %v1362, 0
    %v1375 = vsel %vm202, %v1372, 0
    %1377 = vmatprep.subr.mxu0 0.0
    %1378 = vmatpush1.xpose.msra.mxu0 %v1375
    %1379 = vmatprep.subr.mxu0 0.0
    %1380 = vmatpush1.xpose.msra.mxu0 0.0
    %1381 = vmatprep.subr.mxu0 0.0
    %1382 = vmatpush1.xpose.msra.mxu0 0.0
    %1383 = vmatprep.subr.mxu0 0.0
    %1384 = vmatpush1.xpose.msra.mxu0 0.0
    %1385 = vmatprep.subr.mxu0 0.0
    %1386 = vmatpush1.xpose.msra.mxu0 0.0
    %1387 = vmatprep.subr.mxu0 0.0
    %1388 = vmatpush1.xpose.msra.mxu0 0.0
    %1389 = vmatprep.subr.mxu0 0.0
    %1390 = vmatpush1.xpose.msra.mxu0 0.0
    %1391 = vmatprep.subr.mxu0 0.0
    %1392 = vmatpush1.xpose.msra.mxu0 0.0
    %1393 = vmatprep.subr.mxu0 0.0
    %1394 = vmatpush1.xpose.msra.mxu0 0.0
    %1395 = vmatprep.subr.mxu0 0.0
    %1396 = vmatpush1.xpose.msra.mxu0 0.0
    %1397 = vmatprep.subr.mxu0 0.0
    %1398 = vmatpush1.xpose.msra.mxu0 0.0
    %1399 = vmatprep.subr.mxu0 0.0
    %1400 = vmatpush1.xpose.msra.mxu0 0.0
    %1401 = vmatprep.subr.mxu0 0.0
    %1402 = vmatpush1.xpose.msra.mxu0 0.0
    %1403 = vmatprep.subr.mxu0 0.0
    %1404 = vmatpush1.xpose.msra.mxu0 0.0
    %1405 = vmatprep.subr.mxu0 0.0
    %1406 = vmatpush1.xpose.msra.mxu0 0.0
    %1407 = vmatprep.subr.mxu0 0.0
    %1408 = vmatpush1.xpose.msra.mxu0 0.0
    %1409 = vmatprep.subr.mxu0 0.0
    %1410 = vmatpush1.xpose.msra.mxu0 0.0
    %1411 = vmatprep.subr.mxu0 0.0
    %1412 = vmatpush1.xpose.msra.mxu0 0.0
    %1413 = vmatprep.subr.mxu0 0.0
    %1414 = vmatpush1.xpose.msra.mxu0 0.0
    %1415 = vmatprep.subr.mxu0 0.0
    %1416 = vmatpush1.xpose.msra.mxu0 0.0
    %1417 = vmatprep.subr.mxu0 0.0
    %1418 = vmatpush1.xpose.msra.mxu0 0.0
    %1419 = vmatprep.subr.mxu0 0.0
    %1420 = vmatpush1.xpose.msra.mxu0 0.0
    %1421 = vmatprep.subr.mxu0 0.0
    %1422 = vmatpush1.xpose.msra.mxu0 0.0
    %1423 = vmatprep.subr.mxu0 0.0
    %1424 = vmatpush1.xpose.msra.mxu0 0.0
    %1425 = vmatprep.subr.mxu0 0.0
    %1426 = vmatpush1.xpose.msra.mxu0 0.0
    %1427 = vmatprep.subr.mxu0 0.0
    %1428 = vmatpush1.xpose.msra.mxu0 0.0
    %1429 = vmatprep.subr.mxu0 0.0
    %1430 = vmatpush1.xpose.msra.mxu0 0.0
    %1431 = vmatprep.subr.mxu0 0.0
    %1432 = vmatpush1.xpose.msra.mxu0 0.0
    %1433 = vmatprep.subr.mxu0 0.0
    %1434 = vmatpush1.xpose.msra.mxu0 0.0
    %1435 = vmatprep.subr.mxu0 0.0
    %1436 = vmatpush1.xpose.msra.mxu0 0.0
    %1437 = vmatprep.subr.mxu0 0.0
    %1438 = vmatpush1.xpose.msra.mxu0 0.0
    %1439 = vmatprep.subr.mxu0 0.0
    %1440 = vmatpush1.xpose.msra.mxu0 0.0
    %1441 = vmatprep.mubr.f32.mxu0 0.0
    %1442 = vmatmul.mubr.f32.gmra.mrb[0].mxu0 %v1373
    %v1443 = vpop.f32.mrb[0].mxu0
    %v1444 = vadd.f32 0.0, %v1443
    %v1445 = vpop.f32.mrb[0].mxu0
    %1446 = vdwg.mxu0
    %v1447 = vmul.f32 %v1444, 0.25
    %v1448 = vadd.f32 %v1447, %v281
    %v1449 = vsel %vm283, %v1448, -inf
    %1450 = vmax.xlane.f32.xlu0 %v1449
    %v1451 = vpop.xlane.xlu0 %1450
    %v1452 = vsub.f32 %v1448, %v1451
    %v1453 = vmul.f32 %v1452, 1.442695
    %v1454 = vpow.pop %v1453
    %v1455 = vsel %vm283, %v1454, 0.0
    %1456 = vadd.xlane.f32.xlu0 %v1455
    %v1457 = vpop.xlane.xlu0 %1456
    %v1458 = vrcp.pop %v1457
    %v1459 = vmul.f32 %v1454, %v1458
    %1460 = vrot.lane.b32.xlu0 %v1362, 64
    %v1461 = vpop.permute.xlu0 %1460
    %v1464 = vsel %vm283, %v1459, 0
    %1466 = vmatprep.subr.mxu0 0.0
    %1467 = vmatpush1.msra.mxu0 %v1461
    %1468 = vmatprep.subr.mxu0 0.0
    %1469 = vmatpush1.msra.mxu0 0.0
    %1470 = vmatprep.subr.mxu0 0.0
    %1471 = vmatpush1.msra.mxu0 0.0
    %1472 = vmatprep.subr.mxu0 0.0
    %1473 = vmatpush1.msra.mxu0 0.0
    %1474 = vmatprep.subr.mxu0 0.0
    %1475 = vmatpush1.msra.mxu0 0.0
    %1476 = vmatprep.subr.mxu0 0.0
    %1477 = vmatpush1.msra.mxu0 0.0
    %1478 = vmatprep.subr.mxu0 0.0
    %1479 = vmatpush1.msra.mxu0 0.0
    %1480 = vmatprep.subr.mxu0 0.0
    %1481 = vmatpush1.msra.mxu0 0.0
    %1482 = vmatprep.subr.mxu0 0.0
    %1483 = vmatpush1.msra.mxu0 0.0
    %1484 = vmatprep.subr.mxu0 0.0
    %1485 = vmatpush1.msra.mxu0 0.0
    %1486 = vmatprep.subr.mxu0 0.0
    %1487 = vmatpush1.msra.mxu0 0.0
    %1488 = vmatprep.subr.mxu0 0.0
    %1489 = vmatpush1.msra.mxu0 0.0
    %1490 = vmatprep.subr.mxu0 0.0
    %1491 = vmatpush1.msra.mxu0 0.0
    %1492 = vmatprep.subr.mxu0 0.0
    %1493 = vmatpush1.msra.mxu0 0.0
    %1494 = vmatprep.subr.mxu0 0.0
    %1495 = vmatpush1.msra.mxu0 0.0
    %1496 = vmatprep.subr.mxu0 0.0
    %1497 = vmatpush1.msra.mxu0 0.0
    %1498 = vmatprep.subr.mxu0 0.0
    %1499 = vmatpush1.msra.mxu0 0.0
    %1500 = vmatprep.subr.mxu0 0.0
    %1501 = vmatpush1.msra.mxu0 0.0
    %1502 = vmatprep.subr.mxu0 0.0
    %1503 = vmatpush1.msra.mxu0 0.0
    %1504 = vmatprep.subr.mxu0 0.0
    %1505 = vmatpush1.msra.mxu0 0.0
    %1506 = vmatprep.subr.mxu0 0.0
    %1507 = vmatpush1.msra.mxu0 0.0
    %1508 = vmatprep.subr.mxu0 0.0
    %1509 = vmatpush1.msra.mxu0 0.0
    %1510 = vmatprep.subr.mxu0 0.0
    %1511 = vmatpush1.msra.mxu0 0.0
    %1512 = vmatprep.subr.mxu0 0.0
    %1513 = vmatpush1.msra.mxu0 0.0
    %1514 = vmatprep.subr.mxu0 0.0
    %1515 = vmatpush1.msra.mxu0 0.0
    %1516 = vmatprep.subr.mxu0 0.0
    %1517 = vmatpush1.msra.mxu0 0.0
    %1518 = vmatprep.subr.mxu0 0.0
    %1519 = vmatpush1.msra.mxu0 0.0
    %1520 = vmatprep.subr.mxu0 0.0
    %1521 = vmatpush1.msra.mxu0 0.0
    %1522 = vmatprep.subr.mxu0 0.0
    %1523 = vmatpush1.msra.mxu0 0.0
    %1524 = vmatprep.subr.mxu0 0.0
    %1525 = vmatpush1.msra.mxu0 0.0
    %1526 = vmatprep.subr.mxu0 0.0
    %1527 = vmatpush1.msra.mxu0 0.0
    %1528 = vmatprep.subr.mxu0 0.0
    %1529 = vmatpush1.msra.mxu0 0.0
    %1530 = vmatprep.mubr.f32.mxu0 0.0
    %1531 = vmatmul.mubr.f32.gmra.mrb[0].mxu0 %v1464
    %v1532 = vpop.f32.mrb[0].mxu0
    %v1533 = vadd.f32 0.0, %v1532
    %v1534 = vpop.f32.mrb[0].mxu0
    %1535 = vdwg.mxu0
    %1536 = vrot.lane.b32.xlu0 %v1362, 112
    %v1537 = vpop.permute.xlu0 %1536
    %1538 = vrot.lane.b32.xlu0 %v1362, 80
    %v1539 = vpop.permute.xlu0 %1538
    %v1540 = vsel %vm202, %v1537, 0
    %v1542 = vsel %vm202, %v1539, 0
    %1544 = vmatprep.subr.mxu0 0.0
    %1545 = vmatpush1.xpose.msra.mxu0 %v1542
    %1546 = vmatprep.subr.mxu0 0.0
    %1547 = vmatpush1.xpose.msra.mxu0 0.0
    %1548 = vmatprep.subr.mxu0 0.0
    %1549 = vmatpush1.xpose.msra.mxu0 0.0
    %1550 = vmatprep.subr.mxu0 0.0
    %1551 = vmatpush1.xpose.msra.mxu0 0.0
    %1552 = vmatprep.subr.mxu0 0.0
    %1553 = vmatpush1.xpose.msra.mxu0 0.0
    %1554 = vmatprep.subr.mxu0 0.0
    %1555 = vmatpush1.xpose.msra.mxu0 0.0
    %1556 = vmatprep.subr.mxu0 0.0
    %1557 = vmatpush1.xpose.msra.mxu0 0.0
    %1558 = vmatprep.subr.mxu0 0.0
    %1559 = vmatpush1.xpose.msra.mxu0 0.0
    %1560 = vmatprep.subr.mxu0 0.0
    %1561 = vmatpush1.xpose.msra.mxu0 0.0
    %1562 = vmatprep.subr.mxu0 0.0
    %1563 = vmatpush1.xpose.msra.mxu0 0.0
    %1564 = vmatprep.subr.mxu0 0.0
    %1565 = vmatpush1.xpose.msra.mxu0 0.0
    %1566 = vmatprep.subr.mxu0 0.0
    %1567 = vmatpush1.xpose.msra.mxu0 0.0
    %1568 = vmatprep.subr.mxu0 0.0
    %1569 = vmatpush1.xpose.msra.mxu0 0.0
    %1570 = vmatprep.subr.mxu0 0.0
    %1571 = vmatpush1.xpose.msra.mxu0 0.0
    %1572 = vmatprep.subr.mxu0 0.0
    %1573 = vmatpush1.xpose.msra.mxu0 0.0
    %1574 = vmatprep.subr.mxu0 0.0
    %1575 = vmatpush1.xpose.msra.mxu0 0.0
    %1576 = vmatprep.subr.mxu0 0.0
    %1577 = vmatpush1.xpose.msra.mxu0 0.0
    %1578 = vmatprep.subr.mxu0 0.0
    %1579 = vmatpush1.xpose.msra.mxu0 0.0
    %1580 = vmatprep.subr.mxu0 0.0
    %1581 = vmatpush1.xpose.msra.mxu0 0.0
    %1582 = vmatprep.subr.mxu0 0.0
    %1583 = vmatpush1.xpose.msra.mxu0 0.0
    %1584 = vmatprep.subr.mxu0 0.0
    %1585 = vmatpush1.xpose.msra.mxu0 0.0
    %1586 = vmatprep.subr.mxu0 0.0
    %1587 = vmatpush1.xpose.msra.mxu0 0.0
    %1588 = vmatprep.subr.mxu0 0.0
    %1589 = vmatpush1.xpose.msra.mxu0 0.0
    %1590 = vmatprep.subr.mxu0 0.0
    %1591 = vmatpush1.xpose.msra.mxu0 0.0
    %1592 = vmatprep.subr.mxu0 0.0
    %1593 = vmatpush1.xpose.msra.mxu0 0.0
    %1594 = vmatprep.subr.mxu0 0.0
    %1595 = vmatpush1.xpose.msra.mxu0 0.0
    %1596 = vmatprep.subr.mxu0 0.0
    %1597 = vmatpush1.xpose.msra.mxu0 0.0
    %1598 = vmatprep.subr.mxu0 0.0
    %1599 = vmatpush1.xpose.msra.mxu0 0.0
    %1600 = vmatprep.subr.mxu0 0.0
    %1601 = vmatpush1.xpose.msra.mxu0 0.0
    %1602 = vmatprep.subr.mxu0 0.0
    %1603 = vmatpush1.xpose.msra.mxu0 0.0
    %1604 = vmatprep.subr.mxu0 0.0
    %1605 = vmatpush1.xpose.msra.mxu0 0.0
    %1606 = vmatprep.subr.mxu0 0.0
    %1607 = vmatpush1.xpose.msra.mxu0 0.0
    %1608 = vmatprep.mubr.f32.mxu0 0.0
    %1609 = vmatmul.mubr.f32.gmra.mrb[0].mxu0 %v1540
    %v1610 = vpop.f32.mrb[0].mxu0
    %v1611 = vadd.f32 0.0, %v1610
    %v1612 = vpop.f32.mrb[0].mxu0
    %1613 = vdwg.mxu0
    %v1614 = vmul.f32 %v1611, 0.25
    %v1615 = vadd.f32 %v1614, %v281
    %v1616 = vsel %vm283, %v1615, -inf
    %1617 = vmax.xlane.f32.xlu0 %v1616
    %v1618 = vpop.xlane.xlu0 %1617
    %v1619 = vsub.f32 %v1615, %v1618
    %v1620 = vmul.f32 %v1619, 1.442695
    %v1621 = vpow.pop %v1620
    %v1622 = vsel %vm283, %v1621, 0.0
    %1623 = vadd.xlane.f32.xlu0 %v1622
    %v1624 = vpop.xlane.xlu0 %1623
    %v1625 = vrcp.pop %v1624
    %v1626 = vmul.f32 %v1621, %v1625
    %1627 = vrot.lane.b32.xlu0 %v1362, 48
    %v1628 = vpop.permute.xlu0 %1627
    %v1631 = vsel %vm283, %v1626, 0
    %1633 = vmatprep.subr.mxu0 0.0
    %1634 = vmatpush1.msra.mxu0 %v1628
    %1635 = vmatprep.subr.mxu0 0.0
    %1636 = vmatpush1.msra.mxu0 0.0
    %1637 = vmatprep.subr.mxu0 0.0
    %1638 = vmatpush1.msra.mxu0 0.0
    %1639 = vmatprep.subr.mxu0 0.0
    %1640 = vmatpush1.msra.mxu0 0.0
    %1641 = vmatprep.subr.mxu0 0.0
    %1642 = vmatpush1.msra.mxu0 0.0
    %1643 = vmatprep.subr.mxu0 0.0
    %1644 = vmatpush1.msra.mxu0 0.0
    %1645 = vmatprep.subr.mxu0 0.0
    %1646 = vmatpush1.msra.mxu0 0.0
    %1647 = vmatprep.subr.mxu0 0.0
    %1648 = vmatpush1.msra.mxu0 0.0
    %1649 = vmatprep.subr.mxu0 0.0
    %1650 = vmatpush1.msra.mxu0 0.0
    %1651 = vmatprep.subr.mxu0 0.0
    %1652 = vmatpush1.msra.mxu0 0.0
    %1653 = vmatprep.subr.mxu0 0.0
    %1654 = vmatpush1.msra.mxu0 0.0
    %1655 = vmatprep.subr.mxu0 0.0
    %1656 = vmatpush1.msra.mxu0 0.0
    %1657 = vmatprep.subr.mxu0 0.0
    %1658 = vmatpush1.msra.mxu0 0.0
    %1659 = vmatprep.subr.mxu0 0.0
    %1660 = vmatpush1.msra.mxu0 0.0
    %1661 = vmatprep.subr.mxu0 0.0
    %1662 = vmatpush1.msra.mxu0 0.0
    %1663 = vmatprep.subr.mxu0 0.0
    %1664 = vmatpush1.msra.mxu0 0.0
    %1665 = vmatprep.subr.mxu0 0.0
    %1666 = vmatpush1.msra.mxu0 0.0
    %1667 = vmatprep.subr.mxu0 0.0
    %1668 = vmatpush1.msra.mxu0 0.0
    %1669 = vmatprep.subr.mxu0 0.0
    %1670 = vmatpush1.msra.mxu0 0.0
    %1671 = vmatprep.subr.mxu0 0.0
    %1672 = vmatpush1.msra.mxu0 0.0
    %1673 = vmatprep.subr.mxu0 0.0
    %1674 = vmatpush1.msra.mxu0 0.0
    %1675 = vmatprep.subr.mxu0 0.0
    %1676 = vmatpush1.msra.mxu0 0.0
    %1677 = vmatprep.subr.mxu0 0.0
    %1678 = vmatpush1.msra.mxu0 0.0
    %1679 = vmatprep.subr.mxu0 0.0
    %1680 = vmatpush1.msra.mxu0 0.0
    %1681 = vmatprep.subr.mxu0 0.0
    %1682 = vmatpush1.msra.mxu0 0.0
    %1683 = vmatprep.subr.mxu0 0.0
    %1684 = vmatpush1.msra.mxu0 0.0
    %1685 = vmatprep.subr.mxu0 0.0
    %1686 = vmatpush1.msra.mxu0 0.0
    %1687 = vmatprep.subr.mxu0 0.0
    %1688 = vmatpush1.msra.mxu0 0.0
    %1689 = vmatprep.subr.mxu0 0.0
    %1690 = vmatpush1.msra.mxu0 0.0
    %1691 = vmatprep.subr.mxu0 0.0
    %1692 = vmatpush1.msra.mxu0 0.0
    %1693 = vmatprep.subr.mxu0 0.0
    %1694 = vmatpush1.msra.mxu0 0.0
    %1695 = vmatprep.subr.mxu0 0.0
    %1696 = vmatpush1.msra.mxu0 0.0
    %1697 = vmatprep.mubr.f32.mxu0 0.0
    %1698 = vmatmul.mubr.f32.gmra.mrb[0].mxu0 %v1631
    %v1699 = vpop.f32.mrb[0].mxu0
    %v1700 = vadd.f32 0.0, %v1699
    %v1701 = vpop.f32.mrb[0].mxu0
    %1702 = vdwg.mxu0
    %1704 = vrot.lane.b32.xlu0 %v1700, 16
    %v1705 = vpop.permute.xlu0 %1704
    %v1707 = vsel %vm202, %v1533, %v1705
    %1709 = vrot.lane.b32.xlu0 %v1367, 96
    %v1710 = vpop.permute.xlu0 %1709
    %v1711 = vsel %vm202, %v1367, 0
    %v1713 = vsel %vm202, %v1710, 0
    %1715 = vmatprep.subr.mxu0 0.0
    %1716 = vmatpush1.xpose.msra.mxu0 %v1713
    %1717 = vmatprep.subr.mxu0 0.0
    %1718 = vmatpush1.xpose.msra.mxu0 0.0
    %1719 = vmatprep.subr.mxu0 0.0
    %1720 = vmatpush1.xpose.msra.mxu0 0.0
    %1721 = vmatprep.subr.mxu0 0.0
    %1722 = vmatpush1.xpose.msra.mxu0 0.0
    %1723 = vmatprep.subr.mxu0 0.0
    %1724 = vmatpush1.xpose.msra.mxu0 0.0
    %1725 = vmatprep.subr.mxu0 0.0
    %1726 = vmatpush1.xpose.msra.mxu0 0.0
    %1727 = vmatprep.subr.mxu0 0.0
    %1728 = vmatpush1.xpose.msra.mxu0 0.0
    %1729 = vmatprep.subr.mxu0 0.0
    %1730 = vmatpush1.xpose.msra.mxu0 0.0
    %1731 = vmatprep.subr.mxu0 0.0
    %1732 = vmatpush1.xpose.msra.mxu0 0.0
    %1733 = vmatprep.subr.mxu0 0.0
    %1734 = vmatpush1.xpose.msra.mxu0 0.0
    %1735 = vmatprep.subr.mxu0 0.0
    %1736 = vmatpush1.xpose.msra.mxu0 0.0
    %1737 = vmatprep.subr.mxu0 0.0
    %1738 = vmatpush1.xpose.msra.mxu0 0.0
    %1739 = vmatprep.subr.mxu0 0.0
    %1740 = vmatpush1.xpose.msra.mxu0 0.0
    %1741 = vmatprep.subr.mxu0 0.0
    %1742 = vmatpush1.xpose.msra.mxu0 0.0
    %1743 = vmatprep.subr.mxu0 0.0
    %1744 = vmatpush1.xpose.msra.mxu0 0.0
    %1745 = vmatprep.subr.mxu0 0.0
    %1746 = vmatpush1.xpose.msra.mxu0 0.0
    %1747 = vmatprep.subr.mxu0 0.0
    %1748 = vmatpush1.xpose.msra.mxu0 0.0
    %1749 = vmatprep.subr.mxu0 0.0
    %1750 = vmatpush1.xpose.msra.mxu0 0.0
    %1751 = vmatprep.subr.mxu0 0.0
    %1752 = vmatpush1.xpose.msra.mxu0 0.0
    %1753 = vmatprep.subr.mxu0 0.0
    %1754 = vmatpush1.xpose.msra.mxu0 0.0
    %1755 = vmatprep.subr.mxu0 0.0
    %1756 = vmatpush1.xpose.msra.mxu0 0.0
    %1757 = vmatprep.subr.mxu0 0.0
    %1758 = vmatpush1.xpose.msra.mxu0 0.0
    %1759 = vmatprep.subr.mxu0 0.0
    %1760 = vmatpush1.xpose.msra.mxu0 0.0
    %1761 = vmatprep.subr.mxu0 0.0
    %1762 = vmatpush1.xpose.msra.mxu0 0.0
    %1763 = vmatprep.subr.mxu0 0.0
    %1764 = vmatpush1.xpose.msra.mxu0 0.0
    %1765 = vmatprep.subr.mxu0 0.0
    %1766 = vmatpush1.xpose.msra.mxu0 0.0
    %1767 = vmatprep.subr.mxu0 0.0
    %1768 = vmatpush1.xpose.msra.mxu0 0.0
    %1769 = vmatprep.subr.mxu0 0.0
    %1770 = vmatpush1.xpose.msra.mxu0 0.0
    %1771 = vmatprep.subr.mxu0 0.0
    %1772 = vmatpush1.xpose.msra.mxu0 0.0
    %1773 = vmatprep.subr.mxu0 0.0
    %1774 = vmatpush1.xpose.msra.mxu0 0.0
    %1775 = vmatprep.subr.mxu0 0.0
    %1776 = vmatpush1.xpose.msra.mxu0 0.0
    %1777 = vmatprep.subr.mxu0 0.0
    %1778 = vmatpush1.xpose.msra.mxu0 0.0
    %1779 = vmatprep.mubr.f32.mxu0 0.0
    %1780 = vmatmul.mubr.f32.gmra.mrb[0].mxu0 %v1711
    %v1781 = vpop.f32.mrb[0].mxu0
    %v1782 = vadd.f32 0.0, %v1781
    %v1783 = vpop.f32.mrb[0].mxu0
    %1784 = vdwg.mxu0
    %v1785 = vmul.f32 %v1782, 0.25
    %v1786 = vadd.f32 %v1785, %v624
    %v1787 = vsel %vm283, %v1786, -inf
    %1788 = vmax.xlane.f32.xlu0 %v1787
    %v1789 = vpop.xlane.xlu0 %1788
    %v1790 = vsub.f32 %v1786, %v1789
    %v1791 = vmul.f32 %v1790, 1.442695
    %v1792 = vpow.pop %v1791
    %v1793 = vsel %vm283, %v1792, 0.0
    %1794 = vadd.xlane.f32.xlu0 %v1793
    %v1795 = vpop.xlane.xlu0 %1794
    %v1796 = vrcp.pop %v1795
    %v1797 = vmul.f32 %v1792, %v1796
    %1798 = vrot.lane.b32.xlu0 %v1367, 64
    %v1799 = vpop.permute.xlu0 %1798
    %v1802 = vsel %vm283, %v1797, 0
    %1804 = vmatprep.subr.mxu0 0.0
    %1805 = vmatpush1.msra.mxu0 %v1799
    %1806 = vmatprep.subr.mxu0 0.0
    %1807 = vmatpush1.msra.mxu0 0.0
    %1808 = vmatprep.subr.mxu0 0.0
    %1809 = vmatpush1.msra.mxu0 0.0
    %1810 = vmatprep.subr.mxu0 0.0
    %1811 = vmatpush1.msra.mxu0 0.0
    %1812 = vmatprep.subr.mxu0 0.0
    %1813 = vmatpush1.msra.mxu0 0.0
    %1814 = vmatprep.subr.mxu0 0.0
    %1815 = vmatpush1.msra.mxu0 0.0
    %1816 = vmatprep.subr.mxu0 0.0
    %1817 = vmatpush1.msra.mxu0 0.0
    %1818 = vmatprep.subr.mxu0 0.0
    %1819 = vmatpush1.msra.mxu0 0.0
    %1820 = vmatprep.subr.mxu0 0.0
    %1821 = vmatpush1.msra.mxu0 0.0
    %1822 = vmatprep.subr.mxu0 0.0
    %1823 = vmatpush1.msra.mxu0 0.0
    %1824 = vmatprep.subr.mxu0 0.0
    %1825 = vmatpush1.msra.mxu0 0.0
    %1826 = vmatprep.subr.mxu0 0.0
    %1827 = vmatpush1.msra.mxu0 0.0
    %1828 = vmatprep.subr.mxu0 0.0
    %1829 = vmatpush1.msra.mxu0 0.0
    %1830 = vmatprep.subr.mxu0 0.0
    %1831 = vmatpush1.msra.mxu0 0.0
    %1832 = vmatprep.subr.mxu0 0.0
    %1833 = vmatpush1.msra.mxu0 0.0
    %1834 = vmatprep.subr.mxu0 0.0
    %1835 = vmatpush1.msra.mxu0 0.0
    %1836 = vmatprep.subr.mxu0 0.0
    %1837 = vmatpush1.msra.mxu0 0.0
    %1838 = vmatprep.subr.mxu0 0.0
    %1839 = vmatpush1.msra.mxu0 0.0
    %1840 = vmatprep.subr.mxu0 0.0
    %1841 = vmatpush1.msra.mxu0 0.0
    %1842 = vmatprep.subr.mxu0 0.0
    %1843 = vmatpush1.msra.mxu0 0.0
    %1844 = vmatprep.subr.mxu0 0.0
    %1845 = vmatpush1.msra.mxu0 0.0
    %1846 = vmatprep.subr.mxu0 0.0
    %1847 = vmatpush1.msra.mxu0 0.0
    %1848 = vmatprep.subr.mxu0 0.0
    %1849 = vmatpush1.msra.mxu0 0.0
    %1850 = vmatprep.subr.mxu0 0.0
    %1851 = vmatpush1.msra.mxu0 0.0
    %1852 = vmatprep.subr.mxu0 0.0
    %1853 = vmatpush1.msra.mxu0 0.0
    %1854 = vmatprep.subr.mxu0 0.0
    %1855 = vmatpush1.msra.mxu0 0.0
    %1856 = vmatprep.subr.mxu0 0.0
    %1857 = vmatpush1.msra.mxu0 0.0
    %1858 = vmatprep.subr.mxu0 0.0
    %1859 = vmatpush1.msra.mxu0 0.0
    %1860 = vmatprep.subr.mxu0 0.0
    %1861 = vmatpush1.msra.mxu0 0.0
    %1862 = vmatprep.subr.mxu0 0.0
    %1863 = vmatpush1.msra.mxu0 0.0
    %1864 = vmatprep.subr.mxu0 0.0
    %1865 = vmatpush1.msra.mxu0 0.0
    %1866 = vmatprep.subr.mxu0 0.0
    %1867 = vmatpush1.msra.mxu0 0.0
    %1868 = vmatprep.mubr.f32.mxu0 0.0
    %1869 = vmatmul.mubr.f32.gmra.mrb[0].mxu0 %v1802
    %v1870 = vpop.f32.mrb[0].mxu0
    %v1871 = vadd.f32 0.0, %v1870
    %v1872 = vpop.f32.mrb[0].mxu0
    %1873 = vdwg.mxu0
    %1874 = vrot.lane.b32.xlu0 %v1367, 112
    %v1875 = vpop.permute.xlu0 %1874
    %1876 = vrot.lane.b32.xlu0 %v1367, 80
    %v1877 = vpop.permute.xlu0 %1876
    %v1878 = vsel %vm202, %v1875, 0
    %v1880 = vsel %vm202, %v1877, 0
    %1882 = vmatprep.subr.mxu0 0.0
    %1883 = vmatpush1.xpose.msra.mxu0 %v1880
    %1884 = vmatprep.subr.mxu0 0.0
    %1885 = vmatpush1.xpose.msra.mxu0 0.0
    %1886 = vmatprep.subr.mxu0 0.0
    %1887 = vmatpush1.xpose.msra.mxu0 0.0
    %1888 = vmatprep.subr.mxu0 0.0
    %1889 = vmatpush1.xpose.msra.mxu0 0.0
    %1890 = vmatprep.subr.mxu0 0.0
    %1891 = vmatpush1.xpose.msra.mxu0 0.0
    %1892 = vmatprep.subr.mxu0 0.0
    %1893 = vmatpush1.xpose.msra.mxu0 0.0
    %1894 = vmatprep.subr.mxu0 0.0
    %1895 = vmatpush1.xpose.msra.mxu0 0.0
    %1896 = vmatprep.subr.mxu0 0.0
    %1897 = vmatpush1.xpose.msra.mxu0 0.0
    %1898 = vmatprep.subr.mxu0 0.0
    %1899 = vmatpush1.xpose.msra.mxu0 0.0
    %1900 = vmatprep.subr.mxu0 0.0
    %1901 = vmatpush1.xpose.msra.mxu0 0.0
    %1902 = vmatprep.subr.mxu0 0.0
    %1903 = vmatpush1.xpose.msra.mxu0 0.0
    %1904 = vmatprep.subr.mxu0 0.0
    %1905 = vmatpush1.xpose.msra.mxu0 0.0
    %1906 = vmatprep.subr.mxu0 0.0
    %1907 = vmatpush1.xpose.msra.mxu0 0.0
    %1908 = vmatprep.subr.mxu0 0.0
    %1909 = vmatpush1.xpose.msra.mxu0 0.0
    %1910 = vmatprep.subr.mxu0 0.0
    %1911 = vmatpush1.xpose.msra.mxu0 0.0
    %1912 = vmatprep.subr.mxu0 0.0
    %1913 = vmatpush1.xpose.msra.mxu0 0.0
    %1914 = vmatprep.subr.mxu0 0.0
    %1915 = vmatpush1.xpose.msra.mxu0 0.0
    %1916 = vmatprep.subr.mxu0 0.0
    %1917 = vmatpush1.xpose.msra.mxu0 0.0
    %1918 = vmatprep.subr.mxu0 0.0
    %1919 = vmatpush1.xpose.msra.mxu0 0.0
    %1920 = vmatprep.subr.mxu0 0.0
    %1921 = vmatpush1.xpose.msra.mxu0 0.0
    %1922 = vmatprep.subr.mxu0 0.0
    %1923 = vmatpush1.xpose.msra.mxu0 0.0
    %1924 = vmatprep.subr.mxu0 0.0
    %1925 = vmatpush1.xpose.msra.mxu0 0.0
    %1926 = vmatprep.subr.mxu0 0.0
    %1927 = vmatpush1.xpose.msra.mxu0 0.0
    %1928 = vmatprep.subr.mxu0 0.0
    %1929 = vmatpush1.xpose.msra.mxu0 0.0
    %1930 = vmatprep.subr.mxu0 0.0
    %1931 = vmatpush1.xpose.msra.mxu0 0.0
    %1932 = vmatprep.subr.mxu0 0.0
    %1933 = vmatpush1.xpose.msra.mxu0 0.0
    %1934 = vmatprep.subr.mxu0 0.0
    %1935 = vmatpush1.xpose.msra.mxu0 0.0
    %1936 = vmatprep.subr.mxu0 0.0
    %1937 = vmatpush1.xpose.msra.mxu0 0.0
    %1938 = vmatprep.subr.mxu0 0.0
    %1939 = vmatpush1.xpose.msra.mxu0 0.0
    %1940 = vmatprep.subr.mxu0 0.0
    %1941 = vmatpush1.xpose.msra.mxu0 0.0
    %1942 = vmatprep.subr.mxu0 0.0
    %1943 = vmatpush1.xpose.msra.mxu0 0.0
    %1944 = vmatprep.subr.mxu0 0.0
    %1945 = vmatpush1.xpose.msra.mxu0 0.0
    %1946 = vmatprep.mubr.f32.mxu0 0.0
    %1947 = vmatmul.mubr.f32.gmra.mrb[0].mxu0 %v1878
    %v1948 = vpop.f32.mrb[0].mxu0
    %v1949 = vadd.f32 0.0, %v1948
    %v1950 = vpop.f32.mrb[0].mxu0
    %1951 = vdwg.mxu0
    %v1952 = vmul.f32 %v1949, 0.25
    %v1953 = vadd.f32 %v1952, %v624
    %v1954 = vsel %vm283, %v1953, -inf
    %1955 = vmax.xlane.f32.xlu0 %v1954
    %v1956 = vpop.xlane.xlu0 %1955
    %v1957 = vsub.f32 %v1953, %v1956
    %v1958 = vmul.f32 %v1957, 1.442695
    %v1959 = vpow.pop %v1958
    %v1960 = vsel %vm283, %v1959, 0.0
    %1961 = vadd.xlane.f32.xlu0 %v1960
    %v1962 = vpop.xlane.xlu0 %1961
    %v1963 = vrcp.pop %v1962
    %v1964 = vmul.f32 %v1959, %v1963
    %1965 = vrot.lane.b32.xlu0 %v1367, 48
    %v1966 = vpop.permute.xlu0 %1965
    %v1969 = vsel %vm283, %v1964, 0
    %1971 = vmatprep.subr.mxu0 0.0
    %1972 = vmatpush1.msra.mxu0 %v1966
    %1973 = vmatprep.subr.mxu0 0.0
    %1974 = vmatpush1.msra.mxu0 0.0
    %1975 = vmatprep.subr.mxu0 0.0
    %1976 = vmatpush1.msra.mxu0 0.0
    %1977 = vmatprep.subr.mxu0 0.0
    %1978 = vmatpush1.msra.mxu0 0.0
    %1979 = vmatprep.subr.mxu0 0.0
    %1980 = vmatpush1.msra.mxu0 0.0
    %1981 = vmatprep.subr.mxu0 0.0
    %1982 = vmatpush1.msra.mxu0 0.0
    %1983 = vmatprep.subr.mxu0 0.0
    %1984 = vmatpush1.msra.mxu0 0.0
    %1985 = vmatprep.subr.mxu0 0.0
    %1986 = vmatpush1.msra.mxu0 0.0
    %1987 = vmatprep.subr.mxu0 0.0
    %1988 = vmatpush1.msra.mxu0 0.0
    %1989 = vmatprep.subr.mxu0 0.0
    %1990 = vmatpush1.msra.mxu0 0.0
    %1991 = vmatprep.subr.mxu0 0.0
    %1992 = vmatpush1.msra.mxu0 0.0
    %1993 = vmatprep.subr.mxu0 0.0
    %1994 = vmatpush1.msra.mxu0 0.0
    %1995 = vmatprep.subr.mxu0 0.0
    %1996 = vmatpush1.msra.mxu0 0.0
    %1997 = vmatprep.subr.mxu0 0.0
    %1998 = vmatpush1.msra.mxu0 0.0
    %1999 = vmatprep.subr.mxu0 0.0
    %2000 = vmatpush1.msra.mxu0 0.0
    %2001 = vmatprep.subr.mxu0 0.0
    %2002 = vmatpush1.msra.mxu0 0.0
    %2003 = vmatprep.subr.mxu0 0.0
    %2004 = vmatpush1.msra.mxu0 0.0
    %2005 = vmatprep.subr.mxu0 0.0
    %2006 = vmatpush1.msra.mxu0 0.0
    %2007 = vmatprep.subr.mxu0 0.0
    %2008 = vmatpush1.msra.mxu0 0.0
    %2009 = vmatprep.subr.mxu0 0.0
    %2010 = vmatpush1.msra.mxu0 0.0
    %2011 = vmatprep.subr.mxu0 0.0
    %2012 = vmatpush1.msra.mxu0 0.0
    %2013 = vmatprep.subr.mxu0 0.0
    %2014 = vmatpush1.msra.mxu0 0.0
    %2015 = vmatprep.subr.mxu0 0.0
    %2016 = vmatpush1.msra.mxu0 0.0
    %2017 = vmatprep.subr.mxu0 0.0
    %2018 = vmatpush1.msra.mxu0 0.0
    %2019 = vmatprep.subr.mxu0 0.0
    %2020 = vmatpush1.msra.mxu0 0.0
    %2021 = vmatprep.subr.mxu0 0.0
    %2022 = vmatpush1.msra.mxu0 0.0
    %2023 = vmatprep.subr.mxu0 0.0
    %2024 = vmatpush1.msra.mxu0 0.0
    %2025 = vmatprep.subr.mxu0 0.0
    %2026 = vmatpush1.msra.mxu0 0.0
    %2027 = vmatprep.subr.mxu0 0.0
    %2028 = vmatpush1.msra.mxu0 0.0
    %2029 = vmatprep.subr.mxu0 0.0
    %2030 = vmatpush1.msra.mxu0 0.0
    %2031 = vmatprep.subr.mxu0 0.0
    %2032 = vmatpush1.msra.mxu0 0.0
    %2033 = vmatprep.subr.mxu0 0.0
    %2034 = vmatpush1.msra.mxu0 0.0
    %2035 = vmatprep.mubr.f32.mxu0 0.0
    %2036 = vmatmul.mubr.f32.gmra.mrb[0].mxu0 %v1969
    %v2037 = vpop.f32.mrb[0].mxu0
    %v2038 = vadd.f32 0.0, %v2037
    %v2039 = vpop.f32.mrb[0].mxu0
    %2040 = vdwg.mxu0
    %2042 = vrot.lane.b32.xlu0 %v2038, 16
    %v2043 = vpop.permute.xlu0 %2042
    %v2045 = vsel %vm202, %v1871, %v2043
    %s2046 = scalar_lea.vmem %s7, 32
    %v2047 = vld [vmem:[%s2046] sm:$0xff]
    %v2048 = vld [vmem:[%s2046 + $0x8] sm:$0xff]
    %v2049 = vld [vmem:[%s2046 + $0x10] sm:$0xff]
    %v2050 = vld [vmem:[%s2046 + $0x18] sm:$0xff]
    %s2051 = scalar_lea.vmem %s8, 1
    %v2052 = vld [vmem:[%s2051] sm:$0x1]
    %v2054 = vlaneseq
    %v2055 = vshrl.u32 %v2054, 7
    %v2056 = vsub.s32 0, %v2055
    %v2057 = vrot.slane %v2052, %v2056
    %v2060 = vsel %vm63, %v1707, 0
    %v2063 = vsel %vm63, %v2045, 0
    %2065 = vmatprep.subr.mxu0 0.0
    %2066 = vmatpush1.msra.mxu0 %v2047
    %2067 = vmatprep.subr.mxu0 0.0
    %2068 = vmatpush1.msra.mxu0 %v2048
    %2069 = vmatprep.subr.mxu0 0.0
    %2070 = vmatpush1.msra.mxu0 %v2049
    %2071 = vmatprep.subr.mxu0 0.0
    %2072 = vmatpush1.msra.mxu0 %v2050
    %2073 = vmatprep.subr.mxu0 0.0
    %2074 = vmatpush1.msra.mxu0 0.0
    %2075 = vmatprep.subr.mxu0 0.0
    %2076 = vmatpush1.msra.mxu0 0.0
    %2077 = vmatprep.subr.mxu0 0.0
    %2078 = vmatpush1.msra.mxu0 0.0
    %2079 = vmatprep.subr.mxu0 0.0
    %2080 = vmatpush1.msra.mxu0 0.0
    %2081 = vmatprep.subr.mxu0 0.0
    %2082 = vmatpush1.msra.mxu0 0.0
    %2083 = vmatprep.subr.mxu0 0.0
    %2084 = vmatpush1.msra.mxu0 0.0
    %2085 = vmatprep.subr.mxu0 0.0
    %2086 = vmatpush1.msra.mxu0 0.0
    %2087 = vmatprep.subr.mxu0 0.0
    %2088 = vmatpush1.msra.mxu0 0.0
    %2089 = vmatprep.subr.mxu0 0.0
    %2090 = vmatpush1.msra.mxu0 0.0
    %2091 = vmatprep.subr.mxu0 0.0
    %2092 = vmatpush1.msra.mxu0 0.0
    %2093 = vmatprep.subr.mxu0 0.0
    %2094 = vmatpush1.msra.mxu0 0.0
    %2095 = vmatprep.subr.mxu0 0.0
    %2096 = vmatpush1.msra.mxu0 0.0
    %2097 = vmatprep.subr.mxu0 0.0
    %2098 = vmatpush1.msra.mxu0 0.0
    %2099 = vmatprep.subr.mxu0 0.0
    %2100 = vmatpush1.msra.mxu0 0.0
    %2101 = vmatprep.subr.mxu0 0.0
    %2102 = vmatpush1.msra.mxu0 0.0
    %2103 = vmatprep.subr.mxu0 0.0
    %2104 = vmatpush1.msra.mxu0 0.0
    %2105 = vmatprep.subr.mxu0 0.0
    %2106 = vmatpush1.msra.mxu0 0.0
    %2107 = vmatprep.subr.mxu0 0.0
    %2108 = vmatpush1.msra.mxu0 0.0
    %2109 = vmatprep.subr.mxu0 0.0
    %2110 = vmatpush1.msra.mxu0 0.0
    %2111 = vmatprep.subr.mxu0 0.0
    %2112 = vmatpush1.msra.mxu0 0.0
    %2113 = vmatprep.subr.mxu0 0.0
    %2114 = vmatpush1.msra.mxu0 0.0
    %2115 = vmatprep.subr.mxu0 0.0
    %2116 = vmatpush1.msra.mxu0 0.0
    %2117 = vmatprep.subr.mxu0 0.0
    %2118 = vmatpush1.msra.mxu0 0.0
    %2119 = vmatprep.subr.mxu0 0.0
    %2120 = vmatpush1.msra.mxu0 0.0
    %2121 = vmatprep.subr.mxu0 0.0
    %2122 = vmatpush1.msra.mxu0 0.0
    %2123 = vmatprep.subr.mxu0 0.0
    %2124 = vmatpush1.msra.mxu0 0.0
    %2125 = vmatprep.subr.mxu0 0.0
    %2126 = vmatpush1.msra.mxu0 0.0
    %2127 = vmatprep.subr.mxu0 0.0
    %2128 = vmatpush1.msra.mxu0 0.0
    %2129 = vmatprep.mubr.f32.mxu0 0.0
    %2130 = vmatmul.mubr.f32.gmra.mrb[0].mxu0 %v2060
    %v2131 = vpop.f32.mrb[0].mxu0
    %v2132 = vadd.f32 %v2057, %v2131
    %v2133 = vpop.f32.mrb[0].mxu0
    %2134 = vmatprep.mubr.f32.mxu0 0.0
    %2135 = vmatmul.mubr.f32.gmra.mrb[0].mxu0 %v2063
    %v2136 = vpop.f32.mrb[0].mxu0
    %v2137 = vadd.f32 %v2057, %v2136
    %v2138 = vpop.f32.mrb[0].mxu0
    %2139 = vdwg.mxu0
    %v2140 = vadd.f32 %v2132, %v1274
    %v2141 = vadd.f32 %v2137, %v1275
    %s2142 = scalar_lea.vmem %s9, 1
    %v2143 = vld [vmem:[%s2142] sm:$0x1]
    %s2144 = scalar_lea.vmem %s10, 1
    %v2145 = vld [vmem:[%s2144] sm:$0x1]
    %v2146 = vsel %vm63, %v2140, 0.0
    %2147 = vadd.xlane.f32.xlu0 %v2146
    %v2148 = vpop.xlane.xlu0 %2147
    %v2149 = vsel %vm63, %v2141, 0.0
    %2150 = vadd.xlane.f32.xlu0 %v2149
    %v2151 = vpop.xlane.xlu0 %2150
    %v2152 = vmul.f32 %v2148, %v70
    %v2153 = vmul.f32 %v2151, %v70
    %v2154 = vsub.f32 %v2140, %v2152
    %v2155 = vsub.f32 %v2141, %v2153
    %v2156 = vmul.f32 %v2154, %v2154
    %v2157 = vmul.f32 %v2155, %v2155
    %v2158 = vsel %vm63, %v2156, 0.0
    %2159 = vadd.xlane.f32.xlu0 %v2158
    %v2160 = vpop.xlane.xlu0 %2159
    %v2161 = vsel %vm63, %v2157, 0.0
    %2162 = vadd.xlane.f32.xlu0 %v2161
    %v2163 = vpop.xlane.xlu0 %2162
    %v2164 = vmul.f32 %v2160, %v70
    %v2165 = vmul.f32 %v2163, %v70
    %v2166 = vadd.f32 %v2164, 1e-12
    %v2167 = vadd.f32 %v2165, 1e-12
    %v2168 = vrsqrt.pop %v2166
    %v2169 = vrsqrt.pop %v2167
    %v2170 = vmul.f32 %v2154, %v2168
    %v2171 = vmul.f32 %v2155, %v2169
    %v2173 = vlaneseq
    %v2174 = vshrl.u32 %v2173, 7
    %v2175 = vsub.s32 0, %v2174
    %v2176 = vrot.slane %v2143, %v2175
    %v2178 = vmul.f32 %v2170, %v2176
    %v2179 = vmul.f32 %v2171, %v2176
    %v2181 = vlaneseq
    %v2182 = vshrl.u32 %v2181, 7
    %v2183 = vsub.s32 0, %v2182
    %v2184 = vrot.slane %v2145, %v2183
    %v2186 = vadd.f32 %v2178, %v2184
    %v2187 = vadd.f32 %v2179, %v2184
    %s2188 = scalar_lea.vmem %s11, 32
    %v2189 = vld [vmem:[%s2188] sm:$0xff]
    %v2190 = vld [vmem:[%s2188 + $0x8] sm:$0xff]
    %v2191 = vld [vmem:[%s2188 + $0x10] sm:$0xff]
    %v2192 = vld [vmem:[%s2188 + $0x18] sm:$0xff]
    %s2193 = scalar_lea.vmem %s12, 1
    %v2194 = vld [vmem:[%s2193] sm:$0x1]
    %v2196 = vlaneseq
    %v2197 = vshrl.u32 %v2196, 7
    %v2198 = vsub.s32 0, %v2197
    %v2199 = vrot.slane %v2194, %v2198
    %v2202 = vsel %vm63, %v2186, 0
    %v2205 = vsel %vm63, %v2187, 0
    %2207 = vmatprep.subr.mxu0 0.0
    %2208 = vmatpush1.msra.mxu0 %v2189
    %2209 = vmatprep.subr.mxu0 0.0
    %2210 = vmatpush1.msra.mxu0 %v2190
    %2211 = vmatprep.subr.mxu0 0.0
    %2212 = vmatpush1.msra.mxu0 %v2191
    %2213 = vmatprep.subr.mxu0 0.0
    %2214 = vmatpush1.msra.mxu0 %v2192
    %2215 = vmatprep.subr.mxu0 0.0
    %2216 = vmatpush1.msra.mxu0 0.0
    %2217 = vmatprep.subr.mxu0 0.0
    %2218 = vmatpush1.msra.mxu0 0.0
    %2219 = vmatprep.subr.mxu0 0.0
    %2220 = vmatpush1.msra.mxu0 0.0
    %2221 = vmatprep.subr.mxu0 0.0
    %2222 = vmatpush1.msra.mxu0 0.0
    %2223 = vmatprep.subr.mxu0 0.0
    %2224 = vmatpush1.msra.mxu0 0.0
    %2225 = vmatprep.subr.mxu0 0.0
    %2226 = vmatpush1.msra.mxu0 0.0
    %2227 = vmatprep.subr.mxu0 0.0
    %2228 = vmatpush1.msra.mxu0 0.0
    %2229 = vmatprep.subr.mxu0 0.0
    %2230 = vmatpush1.msra.mxu0 0.0
    %2231 = vmatprep.subr.mxu0 0.0
    %2232 = vmatpush1.msra.mxu0 0.0
    %2233 = vmatprep.subr.mxu0 0.0
    %2234 = vmatpush1.msra.mxu0 0.0
    %2235 = vmatprep.subr.mxu0 0.0
    %2236 = vmatpush1.msra.mxu0 0.0
    %2237 = vmatprep.subr.mxu0 0.0
    %2238 = vmatpush1.msra.mxu0 0.0
    %2239 = vmatprep.subr.mxu0 0.0
    %2240 = vmatpush1.msra.mxu0 0.0
    %2241 = vmatprep.subr.mxu0 0.0
    %2242 = vmatpush1.msra.mxu0 0.0
    %2243 = vmatprep.subr.mxu0 0.0
    %2244 = vmatpush1.msra.mxu0 0.0
    %2245 = vmatprep.subr.mxu0 0.0
    %2246 = vmatpush1.msra.mxu0 0.0
    %2247 = vmatprep.subr.mxu0 0.0
    %2248 = vmatpush1.msra.mxu0 0.0
    %2249 = vmatprep.subr.mxu0 0.0
    %2250 = vmatpush1.msra.mxu0 0.0
    %2251 = vmatprep.subr.mxu0 0.0
    %2252 = vmatpush1.msra.mxu0 0.0
    %2253 = vmatprep.subr.mxu0 0.0
    %2254 = vmatpush1.msra.mxu0 0.0
    %2255 = vmatprep.subr.mxu0 0.0
    %2256 = vmatpush1.msra.mxu0 0.0
    %2257 = vmatprep.subr.mxu0 0.0
    %2258 = vmatpush1.msra.mxu0 0.0
    %2259 = vmatprep.subr.mxu0 0.0
    %2260 = vmatpush1.msra.mxu0 0.0
    %2261 = vmatprep.subr.mxu0 0.0
    %2262 = vmatpush1.msra.mxu0 0.0
    %2263 = vmatprep.subr.mxu0 0.0
    %2264 = vmatpush1.msra.mxu0 0.0
    %2265 = vmatprep.subr.mxu0 0.0
    %2266 = vmatpush1.msra.mxu0 0.0
    %2267 = vmatprep.subr.mxu0 0.0
    %2268 = vmatpush1.msra.mxu0 0.0
    %2269 = vmatprep.subr.mxu0 0.0
    %2270 = vmatpush1.msra.mxu0 0.0
    %2271 = vmatprep.mubr.f32.mxu0 0.0
    %2272 = vmatmul.mubr.f32.gmra.mrb[0].mxu0 %v2202
    %v2273 = vpop.f32.mrb[0].mxu0
    %v2274 = vadd.f32 %v2199, %v2273
    %v2275 = vpop.f32.mrb[0].mxu0
    %2276 = vmatprep.mubr.f32.mxu0 0.0
    %2277 = vmatmul.mubr.f32.gmra.mrb[0].mxu0 %v2205
    %v2278 = vpop.f32.mrb[0].mxu0
    %v2279 = vadd.f32 %v2199, %v2278
    %v2280 = vpop.f32.mrb[0].mxu0
    %2281 = vdwg.mxu0
    %v2282 = vmul.f32 %v2274, 0.5
    %v2283 = vmul.f32 %v2279, 0.5
    %v2284 = vmul.f32 %v2274, 0.044715
    %v2285 = vmul.f32 %v2279, 0.044715
    %v2286 = vmul.f32 %v2284, %v2274
    %v2287 = vmul.f32 %v2285, %v2279
    %v2288 = vmul.f32 %v2286, %v2274
    %v2289 = vmul.f32 %v2287, %v2279
    %v2290 = vadd.f32 %v2274, %v2288
    %v2291 = vadd.f32 %v2279, %v2289
    %v2292 = vmul.f32 %v2290, 0.7978846
    %v2293 = vmul.f32 %v2291, 0.7978846
    %v2294 = vtanh.pop %v2292
    %v2295 = vtanh.pop %v2293
    %v2296 = vadd.f32 %v2294, 1.0
    %v2297 = vadd.f32 %v2295, 1.0
    %v2298 = vmul.f32 %v2282, %v2296
    %v2299 = vmul.f32 %v2283, %v2297
    %s2300 = scalar_lea.vmem %s13, 64
    %v2301 = vld [vmem:[%s2300] sm:$0xff]
    %v2302 = vld [vmem:[%s2300 + $0x8] sm:$0xff]
    %v2303 = vld [vmem:[%s2300 + $0x10] sm:$0xff]
    %v2304 = vld [vmem:[%s2300 + $0x18] sm:$0xff]
    %v2305 = vld [vmem:[%s2300 + $0x20] sm:$0xff]
    %v2306 = vld [vmem:[%s2300 + $0x28] sm:$0xff]
    %v2307 = vld [vmem:[%s2300 + $0x30] sm:$0xff]
    %v2308 = vld [vmem:[%s2300 + $0x38] sm:$0xff]
    %s2309 = scalar_lea.vmem %s14, 1
    %v2310 = vld [vmem:[%s2309] sm:$0x1]
    %v2312 = vlaneseq
    %v2313 = vshrl.u32 %v2312, 7
    %v2314 = vsub.s32 0, %v2313
    %v2315 = vrot.slane %v2310, %v2314
    %v2318 = vsel %vm1148, %v2298, 0
    %v2321 = vsel %vm1148, %v2299, 0
    %2323 = vmatprep.subr.mxu0 0.0
    %2324 = vmatpush1.msra.mxu0 %v2301
    %2325 = vmatprep.subr.mxu0 0.0
    %2326 = vmatpush1.msra.mxu0 %v2302
    %2327 = vmatprep.subr.mxu0 0.0
    %2328 = vmatpush1.msra.mxu0 %v2303
    %2329 = vmatprep.subr.mxu0 0.0
    %2330 = vmatpush1.msra.mxu0 %v2304
    %2331 = vmatprep.subr.mxu0 0.0
    %2332 = vmatpush1.msra.mxu0 %v2305
    %2333 = vmatprep.subr.mxu0 0.0
    %2334 = vmatpush1.msra.mxu0 %v2306
    %2335 = vmatprep.subr.mxu0 0.0
    %2336 = vmatpush1.msra.mxu0 %v2307
    %2337 = vmatprep.subr.mxu0 0.0
    %2338 = vmatpush1.msra.mxu0 %v2308
    %2339 = vmatprep.subr.mxu0 0.0
    %2340 = vmatpush1.msra.mxu0 0.0
    %2341 = vmatprep.subr.mxu0 0.0
    %2342 = vmatpush1.msra.mxu0 0.0
    %2343 = vmatprep.subr.mxu0 0.0
    %2344 = vmatpush1.msra.mxu0 0.0
    %2345 = vmatprep.subr.mxu0 0.0
    %2346 = vmatpush1.msra.mxu0 0.0
    %2347 = vmatprep.subr.mxu0 0.0
    %2348 = vmatpush1.msra.mxu0 0.0
    %2349 = vmatprep.subr.mxu0 0.0
    %2350 = vmatpush1.msra.mxu0 0.0
    %2351 = vmatprep.subr.mxu0 0.0
    %2352 = vmatpush1.msra.mxu0 0.0
    %2353 = vmatprep.subr.mxu0 0.0
    %2354 = vmatpush1.msra.mxu0 0.0
    %2355 = vmatprep.subr.mxu0 0.0
    %2356 = vmatpush1.msra.mxu0 0.0
    %2357 = vmatprep.subr.mxu0 0.0
    %2358 = vmatpush1.msra.mxu0 0.0
    %2359 = vmatprep.subr.mxu0 0.0
    %2360 = vmatpush1.msra.mxu0 0.0
    %2361 = vmatprep.subr.mxu0 0.0
    %2362 = vmatpush1.msra.mxu0 0.0
    %2363 = vmatprep.subr.mxu0 0.0
    %2364 = vmatpush1.msra.mxu0 0.0
    %2365 = vmatprep.subr.mxu0 0.0
    %2366 = vmatpush1.msra.mxu0 0.0
    %2367 = vmatprep.subr.mxu0 0.0
    %2368 = vmatpush1.msra.mxu0 0.0
    %2369 = vmatprep.subr.mxu0 0.0
    %2370 = vmatpush1.msra.mxu0 0.0
    %2371 = vmatprep.subr.mxu0 0.0
    %2372 = vmatpush1.msra.mxu0 0.0
    %2373 = vmatprep.subr.mxu0 0.0
    %2374 = vmatpush1.msra.mxu0 0.0
    %2375 = vmatprep.subr.mxu0 0.0
    %2376 = vmatpush1.msra.mxu0 0.0
    %2377 = vmatprep.subr.mxu0 0.0
    %2378 = vmatpush1.msra.mxu0 0.0
    %2379 = vmatprep.subr.mxu0 0.0
    %2380 = vmatpush1.msra.mxu0 0.0
    %2381 = vmatprep.subr.mxu0 0.0
    %2382 = vmatpush1.msra.mxu0 0.0
    %2383 = vmatprep.subr.mxu0 0.0
    %2384 = vmatpush1.msra.mxu0 0.0
    %2385 = vmatprep.subr.mxu0 0.0
    %2386 = vmatpush1.msra.mxu0 0.0
    %2387 = vmatprep.mubr.f32.mxu0 0.0
    %2388 = vmatmul.mubr.f32.gmra.mrb[0].mxu0 %v2318
    %v2389 = vpop.f32.mrb[0].mxu0
    %v2390 = vadd.f32 %v2315, %v2389
    %v2391 = vpop.f32.mrb[0].mxu0
    %2392 = vmatprep.mubr.f32.mxu0 0.0
    %2393 = vmatmul.mubr.f32.gmra.mrb[0].mxu0 %v2321
    %v2394 = vpop.f32.mrb[0].mxu0
    %v2395 = vadd.f32 %v2315, %v2394
    %v2396 = vpop.f32.mrb[0].mxu0
    %2397 = vdwg.mxu0
    %v2398 = vadd.f32 %v2390, %v2186
    %v2399 = vadd.f32 %v2395, %v2187
    %s2400 = scalar_lea.vmem %s15, 1
    %v2401 = vld [vmem:[%s2400] sm:$0x1]
    %s2402 = scalar_lea.vmem %s16, 1
    %v2403 = vld [vmem:[%s2402] sm:$0x1]
    %v2404 = vsel %vm63, %v2398, 0.0
    %2405 = vadd.xlane.f32.xlu0 %v2404
    %v2406 = vpop.xlane.xlu0 %2405
    %v2407 = vsel %vm63, %v2399, 0.0
    %2408 = vadd.xlane.f32.xlu0 %v2407
    %v2409 = vpop.xlane.xlu0 %2408
    %v2410 = vmul.f32 %v2406, %v70
    %v2411 = vmul.f32 %v2409, %v70
    %v2412 = vsub.f32 %v2398, %v2410
    %v2413 = vsub.f32 %v2399, %v2411
    %v2414 = vmul.f32 %v2412, %v2412
    %v2415 = vmul.f32 %v2413, %v2413
    %v2416 = vsel %vm63, %v2414, 0.0
    %2417 = vadd.xlane.f32.xlu0 %v2416
    %v2418 = vpop.xlane.xlu0 %2417
    %v2419 = vsel %vm63, %v2415, 0.0
    %2420 = vadd.xlane.f32.xlu0 %v2419
    %v2421 = vpop.xlane.xlu0 %2420
    %v2422 = vmul.f32 %v2418, %v70
    %v2423 = vmul.f32 %v2421, %v70
    %v2424 = vadd.f32 %v2422, 1e-12
    %v2425 = vadd.f32 %v2423, 1e-12
    %v2426 = vrsqrt.pop %v2424
    %v2427 = vrsqrt.pop %v2425
    %v2428 = vmul.f32 %v2412, %v2426
    %v2429 = vmul.f32 %v2413, %v2427
    %v2431 = vlaneseq
    %v2432 = vshrl.u32 %v2431, 7
    %v2433 = vsub.s32 0, %v2432
    %v2434 = vrot.slane %v2401, %v2433
    %v2436 = vmul.f32 %v2428, %v2434
    %v2437 = vmul.f32 %v2429, %v2434
    %v2439 = vlaneseq
    %v2440 = vshrl.u32 %v2439, 7
    %v2441 = vsub.s32 0, %v2440
    %v2442 = vrot.slane %v2403, %v2441
    %v2444 = vadd.f32 %v2436, %v2442
    %v2445 = vadd.f32 %v2437, %v2442
    %v2447 = vsel %vm283, %v58, 0
    %2449 = vmatprep.subr.mxu0 0.0
    %2450 = vmatpush1.msra.mxu0 %v2444
    %2451 = vmatprep.subr.mxu0 0.0
    %2452 = vmatpush1.msra.mxu0 0.0
    %2453 = vmatprep.subr.mxu0 0.0
    %2454 = vmatpush1.msra.mxu0 0.0
    %2455 = vmatprep.subr.mxu0 0.0
    %2456 = vmatpush1.msra.mxu0 0.0
    %2457 = vmatprep.subr.mxu0 0.0
    %2458 = vmatpush1.msra.mxu0 0.0
    %2459 = vmatprep.subr.mxu0 0.0
    %2460 = vmatpush1.msra.mxu0 0.0
    %2461 = vmatprep.subr.mxu0 0.0
    %2462 = vmatpush1.msra.mxu0 0.0
    %2463 = vmatprep.subr.mxu0 0.0
    %2464 = vmatpush1.msra.mxu0 0.0
    %2465 = vmatprep.subr.mxu0 0.0
    %2466 = vmatpush1.msra.mxu0 0.0
    %2467 = vmatprep.subr.mxu0 0.0
    %2468 = vmatpush1.msra.mxu0 0.0
    %2469 = vmatprep.subr.mxu0 0.0
    %2470 = vmatpush1.msra.mxu0 0.0
    %2471 = vmatprep.subr.mxu0 0.0
    %2472 = vmatpush1.msra.mxu0 0.0
    %2473 = vmatprep.subr.mxu0 0.0
    %2474 = vmatpush1.msra.mxu0 0.0
    %2475 = vmatprep.subr.mxu0 0.0
    %2476 = vmatpush1.msra.mxu0 0.0
    %2477 = vmatprep.subr.mxu0 0.0
    %2478 = vmatpush1.msra.mxu0 0.0
    %2479 = vmatprep.subr.mxu0 0.0
    %2480 = vmatpush1.msra.mxu0 0.0
    %2481 = vmatprep.subr.mxu0 0.0
    %2482 = vmatpush1.msra.mxu0 0.0
    %2483 = vmatprep.subr.mxu0 0.0
    %2484 = vmatpush1.msra.mxu0 0.0
    %2485 = vmatprep.subr.mxu0 0.0
    %2486 = vmatpush1.msra.mxu0 0.0
    %2487 = vmatprep.subr.mxu0 0.0
    %2488 = vmatpush1.msra.mxu0 0.0
    %2489 = vmatprep.subr.mxu0 0.0
    %2490 = vmatpush1.msra.mxu0 0.0
    %2491 = vmatprep.subr.mxu0 0.0
    %2492 = vmatpush1.msra.mxu0 0.0
    %2493 = vmatprep.subr.mxu0 0.0
    %2494 = vmatpush1.msra.mxu0 0.0
    %2495 = vmatprep.subr.mxu0 0.0
    %2496 = vmatpush1.msra.mxu0 0.0
    %2497 = vmatprep.subr.mxu0 0.0
    %2498 = vmatpush1.msra.mxu0 0.0
    %2499 = vmatprep.subr.mxu0 0.0
    %2500 = vmatpush1.msra.mxu0 0.0
    %2501 = vmatprep.subr.mxu0 0.0
    %2502 = vmatpush1.msra.mxu0 0.0
    %2503 = vmatprep.subr.mxu0 0.0
    %2504 = vmatpush1.msra.mxu0 0.0
    %2505 = vmatprep.subr.mxu0 0.0
    %2506 = vmatpush1.msra.mxu0 0.0
    %2507 = vmatprep.subr.mxu0 0.0
    %2508 = vmatpush1.msra.mxu0 0.0
    %2509 = vmatprep.subr.mxu0 0.0
    %2510 = vmatpush1.msra.mxu0 0.0
    %2511 = vmatprep.subr.mxu0 0.0
    %2512 = vmatpush1.msra.mxu0 0.0
    %2513 = vmatprep.mubr.f32.mxu0 0.0
    %2514 = vmatmul.mubr.f32.gmra.mrb[0].mxu0 %v2447
    %v2515 = vpop.f32.mrb[0].mxu0
    %v2516 = vadd.f32 0.0, %v2515
    %v2517 = vpop.f32.mrb[0].mxu0
    %2518 = vdwg.mxu0
    %vm2519 = vcmask 57344
    %v2520 = vsel %vm2519, %v58, 0.0
    %2521 = vadd.xlane.f32.xlu0 %v2520
    %v2522 = vpop.xlane.xlu0 %2521
    %v2523 = vrcp.pop %v2522
    %v2524 = vmul.f32 %v2516, %v2523
    %v2525 = vrot.slane %v58, 1
    %v2526 = vsel %vm283, %v2525, 0
    %2528 = vmatprep.subr.mxu0 0.0
    %2529 = vmatpush1.msra.mxu0 %v2445
    %2530 = vmatprep.subr.mxu0 0.0
    %2531 = vmatpush1.msra.mxu0 0.0
    %2532 = vmatprep.subr.mxu0 0.0
    %2533 = vmatpush1.msra.mxu0 0.0
    %2534 = vmatprep.subr.mxu0 0.0
    %2535 = vmatpush1.msra.mxu0 0.0
    %2536 = vmatprep.subr.mxu0 0.0
    %2537 = vmatpush1.msra.mxu0 0.0
    %2538 = vmatprep.subr.mxu0 0.0
    %2539 = vmatpush1.msra.mxu0 0.0
    %2540 = vmatprep.subr.mxu0 0.0
    %2541 = vmatpush1.msra.mxu0 0.0
    %2542 = vmatprep.subr.mxu0 0.0
    %2543 = vmatpush1.msra.mxu0 0.0
    %2544 = vmatprep.subr.mxu0 0.0
    %2545 = vmatpush1.msra.mxu0 0.0
    %2546 = vmatprep.subr.mxu0 0.0
    %2547 = vmatpush1.msra.mxu0 0.0
    %2548 = vmatprep.subr.mxu0 0.0
    %2549 = vmatpush1.msra.mxu0 0.0
    %2550 = vmatprep.subr.mxu0 0.0
    %2551 = vmatpush1.msra.mxu0 0.0
    %2552 = vmatprep.subr.mxu0 0.0
    %2553 = vmatpush1.msra.mxu0 0.0
    %2554 = vmatprep.subr.mxu0 0.0
    %2555 = vmatpush1.msra.mxu0 0.0
    %2556 = vmatprep.subr.mxu0 0.0
    %2557 = vmatpush1.msra.mxu0 0.0
    %2558 = vmatprep.subr.mxu0 0.0
    %2559 = vmatpush1.msra.mxu0 0.0
    %2560 = vmatprep.subr.mxu0 0.0
    %2561 = vmatpush1.msra.mxu0 0.0
    %2562 = vmatprep.subr.mxu0 0.0
    %2563 = vmatpush1.msra.mxu0 0.0
    %2564 = vmatprep.subr.mxu0 0.0
    %2565 = vmatpush1.msra.mxu0 0.0
    %2566 = vmatprep.subr.mxu0 0.0
    %2567 = vmatpush1.msra.mxu0 0.0
    %2568 = vmatprep.subr.mxu0 0.0
    %2569 = vmatpush1.msra.mxu0 0.0
    %2570 = vmatprep.subr.mxu0 0.0
    %2571 = vmatpush1.msra.mxu0 0.0
    %2572 = vmatprep.subr.mxu0 0.0
    %2573 = vmatpush1.msra.mxu0 0.0
    %2574 = vmatprep.subr.mxu0 0.0
    %2575 = vmatpush1.msra.mxu0 0.0
    %2576 = vmatprep.subr.mxu0 0.0
    %2577 = vmatpush1.msra.mxu0 0.0
    %2578 = vmatprep.subr.mxu0 0.0
    %2579 = vmatpush1.msra.mxu0 0.0
    %2580 = vmatprep.subr.mxu0 0.0
    %2581 = vmatpush1.msra.mxu0 0.0
    %2582 = vmatprep.subr.mxu0 0.0
    %2583 = vmatpush1.msra.mxu0 0.0
    %2584 = vmatprep.subr.mxu0 0.0
    %2585 = vmatpush1.msra.mxu0 0.0
    %2586 = vmatprep.subr.mxu0 0.0
    %2587 = vmatpush1.msra.mxu0 0.0
    %2588 = vmatprep.subr.mxu0 0.0
    %2589 = vmatpush1.msra.mxu0 0.0
    %2590 = vmatprep.subr.mxu0 0.0
    %2591 = vmatpush1.msra.mxu0 0.0
    %2592 = vmatprep.mubr.f32.mxu0 0.0
    %2593 = vmatmul.mubr.f32.gmra.mrb[0].mxu0 %v2526
    %v2594 = vpop.f32.mrb[0].mxu0
    %v2595 = vadd.f32 0.0, %v2594
    %v2596 = vpop.f32.mrb[0].mxu0
    %2597 = vdwg.mxu0
    %vm2598 = vcmask 58369
    %v2599 = vsel %vm2598, %v58, 0.0
    %2600 = vadd.xlane.f32.xlu0 %v2599
    %v2601 = vpop.xlane.xlu0 %2600
    %v2603 = vrot.slane %v2601, 1
    %v2605 = vrcp.pop %v2603
    %v2606 = vmul.f32 %v2595, %v2605
    %v2608 = vrot.slane %v2606, 7
    %vm2610 = vcmask 1040384
    %v2611 = vsel %vm2610, %v2524, %v2608
    %vm2612 = vcmask 254976
    %2613 = vst.msk [vmem:[#allocation2] sm:$0x3] %vm2612, %v2611
    // Predicated region
    $region70: #{sr_title_embed_forward.1} parent=1 // pred_check
      _
    $region71: #{sr_title_embed_forward.1} parent=1 // pred_check_branch
      %2615 = sbr.rel (0) target = $region73
    $region72: #{sr_title_embed_forward.1} parent=1 // pred_region
      %s2617 = ssub.s32 32, 32
      %2618 = vsyncadd [#allocation3], %s2617
      %s2620 = sshll.u32 [#allocation2], 4
      %s2621 = int_to_ptr.vmem [resolvable:$true] %s2620
      %2623 = dma.vmem_to_hbm [thread:$0]  %s2621, 32, %s17, [#allocation3]
    $region73: #{sr_title_embed_forward.1} parent=1 // pred_fallthru
      _
    // Predicated region
    $region74: #{sr_title_embed_forward.1} parent=1 // pred_check
      _
    $region75: #{sr_title_embed_forward.1} parent=1 // pred_check_branch
      %2625 = sbr.rel (0) target = $region77
    $region76: #{sr_title_embed_forward.1} parent=1 // pred_region
      %2626 = dma.done [#allocation3], 32
    $region77: #{sr_title_embed_forward.1} parent=1 // pred_fallthru
      _
    %2627 = vsyncpa [#allocation3], 1

</llo_original>
